<compile_context>
chip_gen: v5e
topology: v5e:2x2
jax: 0.10.0
libtpu: 0.0.40
codegen_flags: <defaults>
</compile_context>

<pallas_src>
import math

import jax
import jax.numpy as jnp
import numpy as np
from jax.experimental import pallas as pl
from jax.experimental.pallas import tpu as pltpu


# ---------------------------------------------------------------------------
# Fused whole-network kernel (built per static configuration)
# ---------------------------------------------------------------------------

def _make_fused_cnn_kernel(B, stage_meta):
    """Builds the fused forward kernel.

    stage_meta[s] = dict(k, cin, cout, H, W) -- static metadata per conv stage
    Ref order: x, (w, b, S) per stage, fc_w, fc_b, out_w, out_b | out | scratch.
    """
    nconv = len(stage_meta)

    def kernel(x_ref, *refs):
        conv_refs = refs[:3 * nconv]
        fcw_ref, fcb_ref, outw_ref, outb_ref, o_ref, aflat_ref = refs[3 * nconv:]

        # ---- stage-0 input: zero-pad x into the padded flat layout, in VMEM ----
        m0 = stage_meta[0]
        k0 = m0["k"]
        p0 = k0 // 2
        H0, W0 = m0["H"], m0["W"]
        Hp0, Wp0 = H0 + 2 * p0, W0 + 2 * p0
        F0 = Hp0 * Wp0
        aflat_ref[...] = jnp.zeros(aflat_ref.shape, jnp.float32)
        xv = x_ref[...]                                     # (B, 1, H0, W0) f32
        for b in range(B):
            img = xv[b, 0]                                  # (H0, W0)
            for y in range(H0):
                start = b * F0 + (y + p0) * Wp0 + p0
                aflat_ref[:, start:start + W0] = img[y:y + 1, :]

        a = None            # bf16 flat activation (cin, width) for stages >= 1
        feat_rows = None
        for s in range(nconv):
            m = stage_meta[s]
            k, cin, cout = m["k"], m["cin"], m["cout"]
            H, W = m["H"], m["W"]
            p = k // 2
            Hp, Wp = H + 2 * p, W + 2 * p
            F = Hp * Wp                   # per-image padded frame size
            L = B * F                     # flat extent covering all valid outputs
            Lc = L + Wp + 2               # conv extent (covers all pool taps)
            offs = [dy * Wp + dx for dy in range(k) for dx in range(k)]
            w_ref = conv_refs[3 * s]
            b_ref = conv_refs[3 * s + 1]
            s_ref = conv_refs[3 * s + 2]

            if s == 0:
                taps = [aflat_ref[:, off:off + Lc] for off in offs]        # f32 (1, Lc)
            else:
                taps = [a[:, off:off + Lc] for off in offs]                # bf16 (cin, Lc)

            if cin == 1:
                # Depth-1 conv: k*k shifted multiply-adds on the VPU, f32 weights.
                wf = w_ref[...].astype(jnp.float32)                        # (cout, k*k)
                acc = wf[:, 0:1] * taps[0].astype(jnp.float32)
                for t in range(1, len(taps)):
                    acc = acc + wf[:, t:t + 1] * taps[t].astype(jnp.float32)
            else:
                # In-VMEM im2col (already bf16) -> one lane-dense MXU matmul.
                patches = jnp.concatenate(taps, axis=0)                    # (cin*k*k, Lc)
                acc = jnp.dot(w_ref[...], patches,
                              preferred_element_type=jnp.float32)          # (cout, Lc)

            # 2x2 max-pool first (pairwise max on the flat layout), then the
            # per-channel bias + ReLU ONCE on the pooled result.
            pooled = acc[:, 0:L]
            for t in (1, Wp, Wp + 1):
                pooled = jnp.maximum(pooled, acc[:, t:t + L])
            act = jnp.maximum(pooled + b_ref[...], 0.0).astype(jnp.bfloat16)

            # Stride-2 down-selection (+ re-pad for the next stage, or the head
            # flatten layout) as a per-image 0/1 selection matmul, VMEM only.
            S = s_ref[...]                                                 # (F, dst) bf16
            blocks = [
                jnp.dot(act[:, b * F:(b + 1) * F], S,
                        preferred_element_type=jnp.float32)                # (cout, dst)
                for b in range(B)
            ]

            if s + 1 < nconv:
                mn = stage_meta[s + 1]
                kn = mn["k"]
                pn = kn // 2
                Wpn = mn["W"] + 2 * pn
                tail = (kn - 1) * (Wpn + 1) + Wpn + 2   # slack for next conv/pool taps
                blocks.append(jnp.zeros((cout, tail), jnp.float32))
                a = jnp.concatenate(blocks, axis=1).astype(jnp.bfloat16)
            else:
                # Head features per image, flattened in torch (c, y, x) order.
                feat_rows = []
                for blk in blocks:                                         # (cout, Ho*Wo)
                    pieces = [blk[c:c + 1, :] for c in range(cout)]
                    feat_rows.append(jnp.concatenate(pieces, axis=1))      # (1, cout*Ho*Wo)

        # ---- fused FC1 + ReLU + FC2 head (bf16 MXU, f32 accumulate/elementwise) ----
        feat = jnp.concatenate(feat_rows, axis=0).astype(jnp.bfloat16)     # (B, feat)
        h = jnp.dot(feat, fcw_ref[...], preferred_element_type=jnp.float32) + fcb_ref[...]
        h = jnp.maximum(h, 0.0).astype(jnp.bfloat16)
        o_ref[...] = jnp.dot(h, outw_ref[...],
                             preferred_element_type=jnp.float32) + outb_ref[...]

    return kernel


# ---------------------------------------------------------------------------
# Forward pass: exactly one pallas_call, no XLA glue ops
# ---------------------------------------------------------------------------

def simple_cnn_forward(x, params):
    """x: (B, 1, H, W) f32; params from prepare_params()."""
    B, cin0, H, W = x.shape
    assert cin0 == 1

    # Derive static stage metadata from array shapes (valid under jit).
    stage_meta = []
    cin, h, w = 1, H, W
    for st in params["convs"]:
        cout = st["w"].shape[0]
        k = math.isqrt(st["w"].shape[1] // cin)
        p = k // 2
        # Flat conv+pool layout requires a same-size conv (odd k) and even dims,
        # otherwise the stride-2 down-select would pull pad-border garbage.
        assert k % 2 == 1 and h % 2 == 0 and w % 2 == 0
        assert st["S"].shape[0] == (h + 2 * p) * (w + 2 * p), \
            "prepare_params image_hw does not match the input spatial size"
        stage_meta.append(dict(k=k, cin=cin, cout=cout, H=h, W=w))
        cin, h, w = cout, h // 2, w // 2
    assert params["fc_w"].shape[0] == cin * h * w, "feature size mismatch"

    m0 = stage_meta[0]
    k0, p0 = m0["k"], m0["k"] // 2
    Hp0, Wp0 = H + 2 * p0, W + 2 * p0
    flat_w = B * Hp0 * Wp0 + (k0 - 1) * (Wp0 + 1) + Wp0 + 2
    flat_w = ((flat_w + 127) // 128) * 128

    conv_args = []
    for st in params["convs"]:
        conv_args += [st["w"], st["b"], st["S"]]
    num_classes = params["out_w"].shape[1]
    n_in = 1 + len(conv_args) + 4
    vmem = pl.BlockSpec(memory_space=pltpu.MemorySpace.VMEM)

    kernel = _make_fused_cnn_kernel(B, stage_meta)
    return pl.pallas_call(
        kernel,
        out_shape=jax.ShapeDtypeStruct((B, num_classes), jnp.float32),
        in_specs=[vmem] * n_in,
        out_specs=vmem,
        scratch_shapes=[pltpu.VMEM((1, flat_w), jnp.float32)],
    )(x, *conv_args, params["fc_w"], params["fc_b"],
      params["out_w"], params["out_b"])


# ---------------------------------------------------------------------------
# Parameter / selection-matrix preparation (once, outside jit)
# ---------------------------------------------------------------------------

def _pool_select_matrix(Hp, Wp, Ho, Wo, dst_w, dst_off, dst_stride):
    """0/1 matrix routing the stride-2 max-pool down-selection on the flat
    layout: source (2y)*Wp + 2x  ->  dest (y+dst_off)*dst_stride + (x+dst_off)."""
    S = np.zeros((Hp * Wp, dst_w), np.float32)
    for y in range(Ho):
        for x in range(Wo):
            S[(2 * y) * Wp + 2 * x, (y + dst_off) * dst_stride + (x + dst_off)] = 1.0
    return jnp.asarray(S, dtype=jnp.bfloat16)


def prepare_params(params, image_hw=(28, 28)):
    """One-time weight re-layout (outside jit):
      * conv weights -> (cout, k*k*cin) patch matrices in (dy, dx, ci) order;
        f32 for the depth-1 VPU stage, bf16 for MXU stages,
      * per-stage 0/1 down-selection matrices (bf16) that also apply the next
        stage's zero re-padding (or the head's torch flatten layout),
      * FC weights pre-transposed to (K, N) bf16, biases as f32 rows."""
    H, W = image_hw
    nconv = len(params["convs"])
    prepped = {"convs": []}
    cin = 1
    for s, (w, b) in enumerate(params["convs"]):
        cout, cin_w, k, _ = w.shape
        assert cin_w == cin
        assert k % 2 == 1, "flat-conv layout requires an odd (same-size) kernel"
        assert H % 2 == 0 and W % 2 == 0, "2x2 max-pool downselect requires even dims"
        p = k // 2
        Hp, Wp = H + 2 * p, W + 2 * p
        Ho, Wo = H // 2, W // 2
        wmat = jnp.transpose(w, (0, 2, 3, 1)).reshape(cout, k * k * cin)
        wmat = wmat.astype(jnp.float32 if cin == 1 else jnp.bfloat16)
        bcol = jnp.reshape(b, (cout, 1)).astype(jnp.float32)
        if s + 1 < nconv:
            kn = params["convs"][s + 1][0].shape[2]
            pn = kn // 2
            Hpn, Wpn = Ho + 2 * pn, Wo + 2 * pn
            S = _pool_select_matrix(Hp, Wp, Ho, Wo, Hpn * Wpn, pn, Wpn)
        else:
            S = _pool_select_matrix(Hp, Wp, Ho, Wo, Ho * Wo, 0, Wo)
        prepped["convs"].append({"w": wmat, "b": bcol, "S": S})
        cin, H, W = cout, Ho, Wo
    prepped["fc_w"] = jnp.transpose(params["fc_w"]).astype(jnp.bfloat16)
    prepped["fc_b"] = jnp.reshape(params["fc_b"], (1, -1)).astype(jnp.float32)
    prepped["out_w"] = jnp.transpose(params["out_w"]).astype(jnp.bfloat16)
    prepped["out_b"] = jnp.reshape(params["out_b"], (1, -1)).astype(jnp.float32)
    return prepped


# ---------------------------------------------------------------------------
# Pure-JAX reference (f32) for a correctness check
# ---------------------------------------------------------------------------

def reference_forward(x, params):
    a = x
    for w, b in params["convs"]:
        a = jax.lax.conv_general_dilated(
            a, w, (1, 1), "SAME", dimension_numbers=("NCHW", "OIHW", "NCHW"))
        a = jnp.maximum(a + b.reshape(1, -1, 1, 1), 0.0)
        a = jax.lax.reduce_window(a, -jnp.inf, jax.lax.max,
                                  (1, 1, 2, 2), (1, 1, 2, 2), "VALID")
    B = a.shape[0]
    a = a.reshape(B, -1)
    h = jnp.maximum(a @ params["fc_w"].T + params["fc_b"], 0.0)
    return h @ params["out_w"].T + params["out_b"]


# ---------------------------------------------------------------------------
# Deterministic setup + smoke test
# ---------------------------------------------------------------------------

if __name__ == "__main__":
    kernel_sizes = (3, 3)
    channel_sizes = (8, 16)
    fc_size = 32
    num_classes = 10
    batch = 2

    key = jax.random.PRNGKey(0)
    keys = jax.random.split(key, 16)
    ki = 0

    params = {"convs": []}
    in_ch = 1
    for k, out_ch in zip(kernel_sizes, channel_sizes):
        w = 0.1 * jax.random.normal(keys[ki], (out_ch, in_ch, k, k), jnp.float32); ki += 1
        b = 0.1 * jax.random.normal(keys[ki], (out_ch,), jnp.float32); ki += 1
        params["convs"].append((w, b))
        in_ch = out_ch

    feature_size = in_ch * (28 // 2 ** len(kernel_sizes)) ** 2   # 16 * 7 * 7 = 784
    params["fc_w"] = 0.05 * jax.random.normal(keys[ki], (fc_size, feature_size), jnp.float32); ki += 1
    params["fc_b"] = 0.05 * jax.random.normal(keys[ki], (fc_size,), jnp.float32); ki += 1
    params["out_w"] = 0.1 * jax.random.normal(keys[ki], (num_classes, fc_size), jnp.float32); ki += 1
    params["out_b"] = 0.1 * jax.random.normal(keys[ki], (num_classes,), jnp.float32); ki += 1

    # MNIST-style input (the module hardcodes 28x28 via feature_size).
    x = jax.random.normal(keys[ki], (batch, 1, 28, 28), jnp.float32)

    prepped = prepare_params(params, image_hw=(28, 28))   # one-time re-layout
    out = jax.jit(simple_cnn_forward)(x, prepped)
    out = jax.block_until_ready(out)

    assert out.shape == (batch, num_classes), out.shape
    assert bool(jnp.all(jnp.isfinite(out)))

    # bf16 MXU activations vs f32 reference: tolerance covers the intended
    # bf16 rounding of conv2 / head operands (inference-grade precision).
    ref = reference_forward(x, params)
    max_err = float(jnp.max(jnp.abs(out - ref)))
    assert bool(jnp.allclose(out, ref, rtol=5e-2, atol=8e-2)), max_err

    print("KERNEL_OK")
</pallas_src>

<mosaic_0001>
module attributes {stable_mosaic.version = 11 : i64} {
  func.func @kernel(%arg0: memref<2x1x28x28xf32, #tpu.memory_space<vmem>>, %arg1: memref<8x9xf32, #tpu.memory_space<vmem>>, %arg2: memref<8x1xf32, #tpu.memory_space<vmem>>, %arg3: memref<900x256xbf16, #tpu.memory_space<vmem>>, %arg4: memref<16x72xbf16, #tpu.memory_space<vmem>>, %arg5: memref<16x1xf32, #tpu.memory_space<vmem>>, %arg6: memref<256x49xbf16, #tpu.memory_space<vmem>>, %arg7: memref<784x32xbf16, #tpu.memory_space<vmem>>, %arg8: memref<1x32xf32, #tpu.memory_space<vmem>>, %arg9: memref<32x10xbf16, #tpu.memory_space<vmem>>, %arg10: memref<1x10xf32, #tpu.memory_space<vmem>>, %arg11: memref<2x10xf32, #tpu.memory_space<vmem>>, %arg12: memref<1x1920xf32, #tpu.memory_space<vmem>>) attributes {dimension_semantics = [], scalar_prefetch = 0 : i64, scratch_operands = 1 : i64, tpu.core_type = #tpu.core_type<tc>} {
    %cst = arith.constant 0.000000e+00 : f32
    %0 = vector.broadcast %cst : f32 to vector<1x1920xf32>
    %c0 = arith.constant 0 : index
    %c0_0 = arith.constant 0 : index
    %1 = vector.load %arg12[%c0, %c0_0] : memref<1x1920xf32, #tpu.memory_space<vmem>>, vector<1x1920xf32>
    tpu.vector_store %arg12[%c0, %c0_0], %0 {strides = array<i32>} : memref<1x1920xf32, #tpu.memory_space<vmem>>, vector<1x1920xf32>,
    %c0_1 = arith.constant 0 : index
    %c0_2 = arith.constant 0 : index
    %c0_3 = arith.constant 0 : index
    %c0_4 = arith.constant 0 : index
    %2 = vector.load %arg0[%c0_1, %c0_2, %c0_3, %c0_4] : memref<2x1x28x28xf32, #tpu.memory_space<vmem>>, vector<2x1x28x28xf32>
    %3 = vector.extract_strided_slice %2 {offsets = [0, 0, 0, 0], sizes = [1, 1, 28, 28], strides = [1, 1, 1, 1]} : vector<2x1x28x28xf32> to vector<1x1x28x28xf32>
    %4 = vector.shape_cast %3 : vector<1x1x28x28xf32> to vector<28x28xf32>
    %5 = vector.extract_strided_slice %4 {offsets = [0, 0], sizes = [1, 28], strides = [1, 1]} : vector<28x28xf32> to vector<1x28xf32>
    %c0_5 = arith.constant 0 : index
    %c31 = arith.constant 31 : index
    %6 = vector.load %arg12[%c0_5, %c31] : memref<1x1920xf32, #tpu.memory_space<vmem>>, vector<1x28xf32>
    tpu.vector_store %arg12[%c0_5, %c31], %5 {strides = array<i32>} : memref<1x1920xf32, #tpu.memory_space<vmem>>, vector<1x28xf32>,
    %7 = vector.extract_strided_slice %4 {offsets = [1, 0], sizes = [1, 28], strides = [1, 1]} : vector<28x28xf32> to vector<1x28xf32>
    %c0_6 = arith.constant 0 : index
    %c61 = arith.constant 61 : index
    %8 = vector.load %arg12[%c0_6, %c61] : memref<1x1920xf32, #tpu.memory_space<vmem>>, vector<1x28xf32>
    tpu.vector_store %arg12[%c0_6, %c61], %7 {strides = array<i32>} : memref<1x1920xf32, #tpu.memory_space<vmem>>, vector<1x28xf32>,
    %9 = vector.extract_strided_slice %4 {offsets = [2, 0], sizes = [1, 28], strides = [1, 1]} : vector<28x28xf32> to vector<1x28xf32>
    %c0_7 = arith.constant 0 : index
    %c91 = arith.constant 91 : index
    %10 = vector.load %arg12[%c0_7, %c91] : memref<1x1920xf32, #tpu.memory_space<vmem>>, vector<1x28xf32>
    tpu.vector_store %arg12[%c0_7, %c91], %9 {strides = array<i32>} : memref<1x1920xf32, #tpu.memory_space<vmem>>, vector<1x28xf32>,
    %11 = vector.extract_strided_slice %4 {offsets = [3, 0], sizes = [1, 28], strides = [1, 1]} : vector<28x28xf32> to vector<1x28xf32>
    %c0_8 = arith.constant 0 : index
    %c121 = arith.constant 121 : index
    %12 = vector.load %arg12[%c0_8, %c121] : memref<1x1920xf32, #tpu.memory_space<vmem>>, vector<1x28xf32>
    tpu.vector_store %arg12[%c0_8, %c121], %11 {strides = array<i32>} : memref<1x1920xf32, #tpu.memory_space<vmem>>, vector<1x28xf32>,
    %13 = vector.extract_strided_slice %4 {offsets = [4, 0], sizes = [1, 28], strides = [1, 1]} : vector<28x28xf32> to vector<1x28xf32>
    %c0_9 = arith.constant 0 : index
    %c151 = arith.constant 151 : index
    %14 = vector.load %arg12[%c0_9, %c151] : memref<1x1920xf32, #tpu.memory_space<vmem>>, vector<1x28xf32>
    tpu.vector_store %arg12[%c0_9, %c151], %13 {strides = array<i32>} : memref<1x1920xf32, #tpu.memory_space<vmem>>, vector<1x28xf32>,
    %15 = vector.extract_strided_slice %4 {offsets = [5, 0], sizes = [1, 28], strides = [1, 1]} : vector<28x28xf32> to vector<1x28xf32>
    %c0_10 = arith.constant 0 : index
    %c181 = arith.constant 181 : index
    %16 = vector.load %arg12[%c0_10, %c181] : memref<1x1920xf32, #tpu.memory_space<vmem>>, vector<1x28xf32>
    tpu.vector_store %arg12[%c0_10, %c181], %15 {strides = array<i32>} : memref<1x1920xf32, #tpu.memory_space<vmem>>, vector<1x28xf32>,
    %17 = vector.extract_strided_slice %4 {offsets = [6, 0], sizes = [1, 28], strides = [1, 1]} : vector<28x28xf32> to vector<1x28xf32>
    %c0_11 = arith.constant 0 : index
    %c211 = arith.constant 211 : index
    %18 = vector.load %arg12[%c0_11, %c211] : memref<1x1920xf32, #tpu.memory_space<vmem>>, vector<1x28xf32>
    tpu.vector_store %arg12[%c0_11, %c211], %17 {strides = array<i32>} : memref<1x1920xf32, #tpu.memory_space<vmem>>, vector<1x28xf32>,
    %19 = vector.extract_strided_slice %4 {offsets = [7, 0], sizes = [1, 28], strides = [1, 1]} : vector<28x28xf32> to vector<1x28xf32>
    %c0_12 = arith.constant 0 : index
    %c241 = arith.constant 241 : index
    %20 = vector.load %arg12[%c0_12, %c241] : memref<1x1920xf32, #tpu.memory_space<vmem>>, vector<1x28xf32>
    tpu.vector_store %arg12[%c0_12, %c241], %19 {strides = array<i32>} : memref<1x1920xf32, #tpu.memory_space<vmem>>, vector<1x28xf32>,
    %21 = vector.extract_strided_slice %4 {offsets = [8, 0], sizes = [1, 28], strides = [1, 1]} : vector<28x28xf32> to vector<1x28xf32>
    %c0_13 = arith.constant 0 : index
    %c271 = arith.constant 271 : index
    %22 = vector.load %arg12[%c0_13, %c271] : memref<1x1920xf32, #tpu.memory_space<vmem>>, vector<1x28xf32>
    tpu.vector_store %arg12[%c0_13, %c271], %21 {strides = array<i32>} : memref<1x1920xf32, #tpu.memory_space<vmem>>, vector<1x28xf32>,
    %23 = vector.extract_strided_slice %4 {offsets = [9, 0], sizes = [1, 28], strides = [1, 1]} : vector<28x28xf32> to vector<1x28xf32>
    %c0_14 = arith.constant 0 : index
    %c301 = arith.constant 301 : index
    %24 = vector.load %arg12[%c0_14, %c301] : memref<1x1920xf32, #tpu.memory_space<vmem>>, vector<1x28xf32>
    tpu.vector_store %arg12[%c0_14, %c301], %23 {strides = array<i32>} : memref<1x1920xf32, #tpu.memory_space<vmem>>, vector<1x28xf32>,
    %25 = vector.extract_strided_slice %4 {offsets = [10, 0], sizes = [1, 28], strides = [1, 1]} : vector<28x28xf32> to vector<1x28xf32>
    %c0_15 = arith.constant 0 : index
    %c331 = arith.constant 331 : index
    %26 = vector.load %arg12[%c0_15, %c331] : memref<1x1920xf32, #tpu.memory_space<vmem>>, vector<1x28xf32>
    tpu.vector_store %arg12[%c0_15, %c331], %25 {strides = array<i32>} : memref<1x1920xf32, #tpu.memory_space<vmem>>, vector<1x28xf32>,
    %27 = vector.extract_strided_slice %4 {offsets = [11, 0], sizes = [1, 28], strides = [1, 1]} : vector<28x28xf32> to vector<1x28xf32>
    %c0_16 = arith.constant 0 : index
    %c361 = arith.constant 361 : index
    %28 = vector.load %arg12[%c0_16, %c361] : memref<1x1920xf32, #tpu.memory_space<vmem>>, vector<1x28xf32>
    tpu.vector_store %arg12[%c0_16, %c361], %27 {strides = array<i32>} : memref<1x1920xf32, #tpu.memory_space<vmem>>, vector<1x28xf32>,
    %29 = vector.extract_strided_slice %4 {offsets = [12, 0], sizes = [1, 28], strides = [1, 1]} : vector<28x28xf32> to vector<1x28xf32>
    %c0_17 = arith.constant 0 : index
    %c391 = arith.constant 391 : index
    %30 = vector.load %arg12[%c0_17, %c391] : memref<1x1920xf32, #tpu.memory_space<vmem>>, vector<1x28xf32>
    tpu.vector_store %arg12[%c0_17, %c391], %29 {strides = array<i32>} : memref<1x1920xf32, #tpu.memory_space<vmem>>, vector<1x28xf32>,
    %31 = vector.extract_strided_slice %4 {offsets = [13, 0], sizes = [1, 28], strides = [1, 1]} : vector<28x28xf32> to vector<1x28xf32>
    %c0_18 = arith.constant 0 : index
    %c421 = arith.constant 421 : index
    %32 = vector.load %arg12[%c0_18, %c421] : memref<1x1920xf32, #tpu.memory_space<vmem>>, vector<1x28xf32>
    tpu.vector_store %arg12[%c0_18, %c421], %31 {strides = array<i32>} : memref<1x1920xf32, #tpu.memory_space<vmem>>, vector<1x28xf32>,
    %33 = vector.extract_strided_slice %4 {offsets = [14, 0], sizes = [1, 28], strides = [1, 1]} : vector<28x28xf32> to vector<1x28xf32>
    %c0_19 = arith.constant 0 : index
    %c451 = arith.constant 451 : index
    %34 = vector.load %arg12[%c0_19, %c451] : memref<1x1920xf32, #tpu.memory_space<vmem>>, vector<1x28xf32>
    tpu.vector_store %arg12[%c0_19, %c451], %33 {strides = array<i32>} : memref<1x1920xf32, #tpu.memory_space<vmem>>, vector<1x28xf32>,
    %35 = vector.extract_strided_slice %4 {offsets = [15, 0], sizes = [1, 28], strides = [1, 1]} : vector<28x28xf32> to vector<1x28xf32>
    %c0_20 = arith.constant 0 : index
    %c481 = arith.constant 481 : index
    %36 = vector.load %arg12[%c0_20, %c481] : memref<1x1920xf32, #tpu.memory_space<vmem>>, vector<1x28xf32>
    tpu.vector_store %arg12[%c0_20, %c481], %35 {strides = array<i32>} : memref<1x1920xf32, #tpu.memory_space<vmem>>, vector<1x28xf32>,
    %37 = vector.extract_strided_slice %4 {offsets = [16, 0], sizes = [1, 28], strides = [1, 1]} : vector<28x28xf32> to vector<1x28xf32>
    %c0_21 = arith.constant 0 : index
    %c511 = arith.constant 511 : index
    %38 = vector.load %arg12[%c0_21, %c511] : memref<1x1920xf32, #tpu.memory_space<vmem>>, vector<1x28xf32>
    tpu.vector_store %arg12[%c0_21, %c511], %37 {strides = array<i32>} : memref<1x1920xf32, #tpu.memory_space<vmem>>, vector<1x28xf32>,
    %39 = vector.extract_strided_slice %4 {offsets = [17, 0], sizes = [1, 28], strides = [1, 1]} : vector<28x28xf32> to vector<1x28xf32>
    %c0_22 = arith.constant 0 : index
    %c541 = arith.constant 541 : index
    %40 = vector.load %arg12[%c0_22, %c541] : memref<1x1920xf32, #tpu.memory_space<vmem>>, vector<1x28xf32>
    tpu.vector_store %arg12[%c0_22, %c541], %39 {strides = array<i32>} : memref<1x1920xf32, #tpu.memory_space<vmem>>, vector<1x28xf32>,
    %41 = vector.extract_strided_slice %4 {offsets = [18, 0], sizes = [1, 28], strides = [1, 1]} : vector<28x28xf32> to vector<1x28xf32>
    %c0_23 = arith.constant 0 : index
    %c571 = arith.constant 571 : index
    %42 = vector.load %arg12[%c0_23, %c571] : memref<1x1920xf32, #tpu.memory_space<vmem>>, vector<1x28xf32>
    tpu.vector_store %arg12[%c0_23, %c571], %41 {strides = array<i32>} : memref<1x1920xf32, #tpu.memory_space<vmem>>, vector<1x28xf32>,
    %43 = vector.extract_strided_slice %4 {offsets = [19, 0], sizes = [1, 28], strides = [1, 1]} : vector<28x28xf32> to vector<1x28xf32>
    %c0_24 = arith.constant 0 : index
    %c601 = arith.constant 601 : index
    %44 = vector.load %arg12[%c0_24, %c601] : memref<1x1920xf32, #tpu.memory_space<vmem>>, vector<1x28xf32>
    tpu.vector_store %arg12[%c0_24, %c601], %43 {strides = array<i32>} : memref<1x1920xf32, #tpu.memory_space<vmem>>, vector<1x28xf32>,
    %45 = vector.extract_strided_slice %4 {offsets = [20, 0], sizes = [1, 28], strides = [1, 1]} : vector<28x28xf32> to vector<1x28xf32>
    %c0_25 = arith.constant 0 : index
    %c631 = arith.constant 631 : index
    %46 = vector.load %arg12[%c0_25, %c631] : memref<1x1920xf32, #tpu.memory_space<vmem>>, vector<1x28xf32>
    tpu.vector_store %arg12[%c0_25, %c631], %45 {strides = array<i32>} : memref<1x1920xf32, #tpu.memory_space<vmem>>, vector<1x28xf32>,
    %47 = vector.extract_strided_slice %4 {offsets = [21, 0], sizes = [1, 28], strides = [1, 1]} : vector<28x28xf32> to vector<1x28xf32>
    %c0_26 = arith.constant 0 : index
    %c661 = arith.constant 661 : index
    %48 = vector.load %arg12[%c0_26, %c661] : memref<1x1920xf32, #tpu.memory_space<vmem>>, vector<1x28xf32>
    tpu.vector_store %arg12[%c0_26, %c661], %47 {strides = array<i32>} : memref<1x1920xf32, #tpu.memory_space<vmem>>, vector<1x28xf32>,
    %49 = vector.extract_strided_slice %4 {offsets = [22, 0], sizes = [1, 28], strides = [1, 1]} : vector<28x28xf32> to vector<1x28xf32>
    %c0_27 = arith.constant 0 : index
    %c691 = arith.constant 691 : index
    %50 = vector.load %arg12[%c0_27, %c691] : memref<1x1920xf32, #tpu.memory_space<vmem>>, vector<1x28xf32>
    tpu.vector_store %arg12[%c0_27, %c691], %49 {strides = array<i32>} : memref<1x1920xf32, #tpu.memory_space<vmem>>, vector<1x28xf32>,
    %51 = vector.extract_strided_slice %4 {offsets = [23, 0], sizes = [1, 28], strides = [1, 1]} : vector<28x28xf32> to vector<1x28xf32>
    %c0_28 = arith.constant 0 : index
    %c721 = arith.constant 721 : index
    %52 = vector.load %arg12[%c0_28, %c721] : memref<1x1920xf32, #tpu.memory_space<vmem>>, vector<1x28xf32>
    tpu.vector_store %arg12[%c0_28, %c721], %51 {strides = array<i32>} : memref<1x1920xf32, #tpu.memory_space<vmem>>, vector<1x28xf32>,
    %53 = vector.extract_strided_slice %4 {offsets = [24, 0], sizes = [1, 28], strides = [1, 1]} : vector<28x28xf32> to vector<1x28xf32>
    %c0_29 = arith.constant 0 : index
    %c751 = arith.constant 751 : index
    %54 = vector.load %arg12[%c0_29, %c751] : memref<1x1920xf32, #tpu.memory_space<vmem>>, vector<1x28xf32>
    tpu.vector_store %arg12[%c0_29, %c751], %53 {strides = array<i32>} : memref<1x1920xf32, #tpu.memory_space<vmem>>, vector<1x28xf32>,
    %55 = vector.extract_strided_slice %4 {offsets = [25, 0], sizes = [1, 28], strides = [1, 1]} : vector<28x28xf32> to vector<1x28xf32>
    %c0_30 = arith.constant 0 : index
    %c781 = arith.constant 781 : index
    %56 = vector.load %arg12[%c0_30, %c781] : memref<1x1920xf32, #tpu.memory_space<vmem>>, vector<1x28xf32>
    tpu.vector_store %arg12[%c0_30, %c781], %55 {strides = array<i32>} : memref<1x1920xf32, #tpu.memory_space<vmem>>, vector<1x28xf32>,
    %57 = vector.extract_strided_slice %4 {offsets = [26, 0], sizes = [1, 28], strides = [1, 1]} : vector<28x28xf32> to vector<1x28xf32>
    %c0_31 = arith.constant 0 : index
    %c811 = arith.constant 811 : index
    %58 = vector.load %arg12[%c0_31, %c811] : memref<1x1920xf32, #tpu.memory_space<vmem>>, vector<1x28xf32>
    tpu.vector_store %arg12[%c0_31, %c811], %57 {strides = array<i32>} : memref<1x1920xf32, #tpu.memory_space<vmem>>, vector<1x28xf32>,
    %59 = vector.extract_strided_slice %4 {offsets = [27, 0], sizes = [1, 28], strides = [1, 1]} : vector<28x28xf32> to vector<1x28xf32>
    %c0_32 = arith.constant 0 : index
    %c841 = arith.constant 841 : index
    %60 = vector.load %arg12[%c0_32, %c841] : memref<1x1920xf32, #tpu.memory_space<vmem>>, vector<1x28xf32>
    tpu.vector_store %arg12[%c0_32, %c841], %59 {strides = array<i32>} : memref<1x1920xf32, #tpu.memory_space<vmem>>, vector<1x28xf32>,
    %61 = vector.extract_strided_slice %2 {offsets = [1, 0, 0, 0], sizes = [1, 1, 28, 28], strides = [1, 1, 1, 1]} : vector<2x1x28x28xf32> to vector<1x1x28x28xf32>
    %62 = vector.shape_cast %61 : vector<1x1x28x28xf32> to vector<28x28xf32>
    %63 = vector.extract_strided_slice %62 {offsets = [0, 0], sizes = [1, 28], strides = [1, 1]} : vector<28x28xf32> to vector<1x28xf32>
    %c0_33 = arith.constant 0 : index
    %c931 = arith.constant 931 : index
    %64 = vector.load %arg12[%c0_33, %c931] : memref<1x1920xf32, #tpu.memory_space<vmem>>, vector<1x28xf32>
    tpu.vector_store %arg12[%c0_33, %c931], %63 {strides = array<i32>} : memref<1x1920xf32, #tpu.memory_space<vmem>>, vector<1x28xf32>,
    %65 = vector.extract_strided_slice %62 {offsets = [1, 0], sizes = [1, 28], strides = [1, 1]} : vector<28x28xf32> to vector<1x28xf32>
    %c0_34 = arith.constant 0 : index
    %c961 = arith.constant 961 : index
    %66 = vector.load %arg12[%c0_34, %c961] : memref<1x1920xf32, #tpu.memory_space<vmem>>, vector<1x28xf32>
    tpu.vector_store %arg12[%c0_34, %c961], %65 {strides = array<i32>} : memref<1x1920xf32, #tpu.memory_space<vmem>>, vector<1x28xf32>,
    %67 = vector.extract_strided_slice %62 {offsets = [2, 0], sizes = [1, 28], strides = [1, 1]} : vector<28x28xf32> to vector<1x28xf32>
    %c0_35 = arith.constant 0 : index
    %c991 = arith.constant 991 : index
    %68 = vector.load %arg12[%c0_35, %c991] : memref<1x1920xf32, #tpu.memory_space<vmem>>, vector<1x28xf32>
    tpu.vector_store %arg12[%c0_35, %c991], %67 {strides = array<i32>} : memref<1x1920xf32, #tpu.memory_space<vmem>>, vector<1x28xf32>,
    %69 = vector.extract_strided_slice %62 {offsets = [3, 0], sizes = [1, 28], strides = [1, 1]} : vector<28x28xf32> to vector<1x28xf32>
    %c0_36 = arith.constant 0 : index
    %c1021 = arith.constant 1021 : index
    %70 = vector.load %arg12[%c0_36, %c1021] : memref<1x1920xf32, #tpu.memory_space<vmem>>, vector<1x28xf32>
    tpu.vector_store %arg12[%c0_36, %c1021], %69 {strides = array<i32>} : memref<1x1920xf32, #tpu.memory_space<vmem>>, vector<1x28xf32>,
    %71 = vector.extract_strided_slice %62 {offsets = [4, 0], sizes = [1, 28], strides = [1, 1]} : vector<28x28xf32> to vector<1x28xf32>
    %c0_37 = arith.constant 0 : index
    %c1051 = arith.constant 1051 : index
    %72 = vector.load %arg12[%c0_37, %c1051] : memref<1x1920xf32, #tpu.memory_space<vmem>>, vector<1x28xf32>
    tpu.vector_store %arg12[%c0_37, %c1051], %71 {strides = array<i32>} : memref<1x1920xf32, #tpu.memory_space<vmem>>, vector<1x28xf32>,
    %73 = vector.extract_strided_slice %62 {offsets = [5, 0], sizes = [1, 28], strides = [1, 1]} : vector<28x28xf32> to vector<1x28xf32>
    %c0_38 = arith.constant 0 : index
    %c1081 = arith.constant 1081 : index
    %74 = vector.load %arg12[%c0_38, %c1081] : memref<1x1920xf32, #tpu.memory_space<vmem>>, vector<1x28xf32>
    tpu.vector_store %arg12[%c0_38, %c1081], %73 {strides = array<i32>} : memref<1x1920xf32, #tpu.memory_space<vmem>>, vector<1x28xf32>,
    %75 = vector.extract_strided_slice %62 {offsets = [6, 0], sizes = [1, 28], strides = [1, 1]} : vector<28x28xf32> to vector<1x28xf32>
    %c0_39 = arith.constant 0 : index
    %c1111 = arith.constant 1111 : index
    %76 = vector.load %arg12[%c0_39, %c1111] : memref<1x1920xf32, #tpu.memory_space<vmem>>, vector<1x28xf32>
    tpu.vector_store %arg12[%c0_39, %c1111], %75 {strides = array<i32>} : memref<1x1920xf32, #tpu.memory_space<vmem>>, vector<1x28xf32>,
    %77 = vector.extract_strided_slice %62 {offsets = [7, 0], sizes = [1, 28], strides = [1, 1]} : vector<28x28xf32> to vector<1x28xf32>
    %c0_40 = arith.constant 0 : index
    %c1141 = arith.constant 1141 : index
    %78 = vector.load %arg12[%c0_40, %c1141] : memref<1x1920xf32, #tpu.memory_space<vmem>>, vector<1x28xf32>
    tpu.vector_store %arg12[%c0_40, %c1141], %77 {strides = array<i32>} : memref<1x1920xf32, #tpu.memory_space<vmem>>, vector<1x28xf32>,
    %79 = vector.extract_strided_slice %62 {offsets = [8, 0], sizes = [1, 28], strides = [1, 1]} : vector<28x28xf32> to vector<1x28xf32>
    %c0_41 = arith.constant 0 : index
    %c1171 = arith.constant 1171 : index
    %80 = vector.load %arg12[%c0_41, %c1171] : memref<1x1920xf32, #tpu.memory_space<vmem>>, vector<1x28xf32>
    tpu.vector_store %arg12[%c0_41, %c1171], %79 {strides = array<i32>} : memref<1x1920xf32, #tpu.memory_space<vmem>>, vector<1x28xf32>,
    %81 = vector.extract_strided_slice %62 {offsets = [9, 0], sizes = [1, 28], strides = [1, 1]} : vector<28x28xf32> to vector<1x28xf32>
    %c0_42 = arith.constant 0 : index
    %c1201 = arith.constant 1201 : index
    %82 = vector.load %arg12[%c0_42, %c1201] : memref<1x1920xf32, #tpu.memory_space<vmem>>, vector<1x28xf32>
    tpu.vector_store %arg12[%c0_42, %c1201], %81 {strides = array<i32>} : memref<1x1920xf32, #tpu.memory_space<vmem>>, vector<1x28xf32>,
    %83 = vector.extract_strided_slice %62 {offsets = [10, 0], sizes = [1, 28], strides = [1, 1]} : vector<28x28xf32> to vector<1x28xf32>
    %c0_43 = arith.constant 0 : index
    %c1231 = arith.constant 1231 : index
    %84 = vector.load %arg12[%c0_43, %c1231] : memref<1x1920xf32, #tpu.memory_space<vmem>>, vector<1x28xf32>
    tpu.vector_store %arg12[%c0_43, %c1231], %83 {strides = array<i32>} : memref<1x1920xf32, #tpu.memory_space<vmem>>, vector<1x28xf32>,
    %85 = vector.extract_strided_slice %62 {offsets = [11, 0], sizes = [1, 28], strides = [1, 1]} : vector<28x28xf32> to vector<1x28xf32>
    %c0_44 = arith.constant 0 : index
    %c1261 = arith.constant 1261 : index
    %86 = vector.load %arg12[%c0_44, %c1261] : memref<1x1920xf32, #tpu.memory_space<vmem>>, vector<1x28xf32>
    tpu.vector_store %arg12[%c0_44, %c1261], %85 {strides = array<i32>} : memref<1x1920xf32, #tpu.memory_space<vmem>>, vector<1x28xf32>,
    %87 = vector.extract_strided_slice %62 {offsets = [12, 0], sizes = [1, 28], strides = [1, 1]} : vector<28x28xf32> to vector<1x28xf32>
    %c0_45 = arith.constant 0 : index
    %c1291 = arith.constant 1291 : index
    %88 = vector.load %arg12[%c0_45, %c1291] : memref<1x1920xf32, #tpu.memory_space<vmem>>, vector<1x28xf32>
    tpu.vector_store %arg12[%c0_45, %c1291], %87 {strides = array<i32>} : memref<1x1920xf32, #tpu.memory_space<vmem>>, vector<1x28xf32>,
    %89 = vector.extract_strided_slice %62 {offsets = [13, 0], sizes = [1, 28], strides = [1, 1]} : vector<28x28xf32> to vector<1x28xf32>
    %c0_46 = arith.constant 0 : index
    %c1321 = arith.constant 1321 : index
    %90 = vector.load %arg12[%c0_46, %c1321] : memref<1x1920xf32, #tpu.memory_space<vmem>>, vector<1x28xf32>
    tpu.vector_store %arg12[%c0_46, %c1321], %89 {strides = array<i32>} : memref<1x1920xf32, #tpu.memory_space<vmem>>, vector<1x28xf32>,
    %91 = vector.extract_strided_slice %62 {offsets = [14, 0], sizes = [1, 28], strides = [1, 1]} : vector<28x28xf32> to vector<1x28xf32>
    %c0_47 = arith.constant 0 : index
    %c1351 = arith.constant 1351 : index
    %92 = vector.load %arg12[%c0_47, %c1351] : memref<1x1920xf32, #tpu.memory_space<vmem>>, vector<1x28xf32>
    tpu.vector_store %arg12[%c0_47, %c1351], %91 {strides = array<i32>} : memref<1x1920xf32, #tpu.memory_space<vmem>>, vector<1x28xf32>,
    %93 = vector.extract_strided_slice %62 {offsets = [15, 0], sizes = [1, 28], strides = [1, 1]} : vector<28x28xf32> to vector<1x28xf32>
    %c0_48 = arith.constant 0 : index
    %c1381 = arith.constant 1381 : index
    %94 = vector.load %arg12[%c0_48, %c1381] : memref<1x1920xf32, #tpu.memory_space<vmem>>, vector<1x28xf32>
    tpu.vector_store %arg12[%c0_48, %c1381], %93 {strides = array<i32>} : memref<1x1920xf32, #tpu.memory_space<vmem>>, vector<1x28xf32>,
    %95 = vector.extract_strided_slice %62 {offsets = [16, 0], sizes = [1, 28], strides = [1, 1]} : vector<28x28xf32> to vector<1x28xf32>
    %c0_49 = arith.constant 0 : index
    %c1411 = arith.constant 1411 : index
    %96 = vector.load %arg12[%c0_49, %c1411] : memref<1x1920xf32, #tpu.memory_space<vmem>>, vector<1x28xf32>
    tpu.vector_store %arg12[%c0_49, %c1411], %95 {strides = array<i32>} : memref<1x1920xf32, #tpu.memory_space<vmem>>, vector<1x28xf32>,
    %97 = vector.extract_strided_slice %62 {offsets = [17, 0], sizes = [1, 28], strides = [1, 1]} : vector<28x28xf32> to vector<1x28xf32>
    %c0_50 = arith.constant 0 : index
    %c1441 = arith.constant 1441 : index
    %98 = vector.load %arg12[%c0_50, %c1441] : memref<1x1920xf32, #tpu.memory_space<vmem>>, vector<1x28xf32>
    tpu.vector_store %arg12[%c0_50, %c1441], %97 {strides = array<i32>} : memref<1x1920xf32, #tpu.memory_space<vmem>>, vector<1x28xf32>,
    %99 = vector.extract_strided_slice %62 {offsets = [18, 0], sizes = [1, 28], strides = [1, 1]} : vector<28x28xf32> to vector<1x28xf32>
    %c0_51 = arith.constant 0 : index
    %c1471 = arith.constant 1471 : index
    %100 = vector.load %arg12[%c0_51, %c1471] : memref<1x1920xf32, #tpu.memory_space<vmem>>, vector<1x28xf32>
    tpu.vector_store %arg12[%c0_51, %c1471], %99 {strides = array<i32>} : memref<1x1920xf32, #tpu.memory_space<vmem>>, vector<1x28xf32>,
    %101 = vector.extract_strided_slice %62 {offsets = [19, 0], sizes = [1, 28], strides = [1, 1]} : vector<28x28xf32> to vector<1x28xf32>
    %c0_52 = arith.constant 0 : index
    %c1501 = arith.constant 1501 : index
    %102 = vector.load %arg12[%c0_52, %c1501] : memref<1x1920xf32, #tpu.memory_space<vmem>>, vector<1x28xf32>
    tpu.vector_store %arg12[%c0_52, %c1501], %101 {strides = array<i32>} : memref<1x1920xf32, #tpu.memory_space<vmem>>, vector<1x28xf32>,
    %103 = vector.extract_strided_slice %62 {offsets = [20, 0], sizes = [1, 28], strides = [1, 1]} : vector<28x28xf32> to vector<1x28xf32>
    %c0_53 = arith.constant 0 : index
    %c1531 = arith.constant 1531 : index
    %104 = vector.load %arg12[%c0_53, %c1531] : memref<1x1920xf32, #tpu.memory_space<vmem>>, vector<1x28xf32>
    tpu.vector_store %arg12[%c0_53, %c1531], %103 {strides = array<i32>} : memref<1x1920xf32, #tpu.memory_space<vmem>>, vector<1x28xf32>,
    %105 = vector.extract_strided_slice %62 {offsets = [21, 0], sizes = [1, 28], strides = [1, 1]} : vector<28x28xf32> to vector<1x28xf32>
    %c0_54 = arith.constant 0 : index
    %c1561 = arith.constant 1561 : index
    %106 = vector.load %arg12[%c0_54, %c1561] : memref<1x1920xf32, #tpu.memory_space<vmem>>, vector<1x28xf32>
    tpu.vector_store %arg12[%c0_54, %c1561], %105 {strides = array<i32>} : memref<1x1920xf32, #tpu.memory_space<vmem>>, vector<1x28xf32>,
    %107 = vector.extract_strided_slice %62 {offsets = [22, 0], sizes = [1, 28], strides = [1, 1]} : vector<28x28xf32> to vector<1x28xf32>
    %c0_55 = arith.constant 0 : index
    %c1591 = arith.constant 1591 : index
    %108 = vector.load %arg12[%c0_55, %c1591] : memref<1x1920xf32, #tpu.memory_space<vmem>>, vector<1x28xf32>
    tpu.vector_store %arg12[%c0_55, %c1591], %107 {strides = array<i32>} : memref<1x1920xf32, #tpu.memory_space<vmem>>, vector<1x28xf32>,
    %109 = vector.extract_strided_slice %62 {offsets = [23, 0], sizes = [1, 28], strides = [1, 1]} : vector<28x28xf32> to vector<1x28xf32>
    %c0_56 = arith.constant 0 : index
    %c1621 = arith.constant 1621 : index
    %110 = vector.load %arg12[%c0_56, %c1621] : memref<1x1920xf32, #tpu.memory_space<vmem>>, vector<1x28xf32>
    tpu.vector_store %arg12[%c0_56, %c1621], %109 {strides = array<i32>} : memref<1x1920xf32, #tpu.memory_space<vmem>>, vector<1x28xf32>,
    %111 = vector.extract_strided_slice %62 {offsets = [24, 0], sizes = [1, 28], strides = [1, 1]} : vector<28x28xf32> to vector<1x28xf32>
    %c0_57 = arith.constant 0 : index
    %c1651 = arith.constant 1651 : index
    %112 = vector.load %arg12[%c0_57, %c1651] : memref<1x1920xf32, #tpu.memory_space<vmem>>, vector<1x28xf32>
    tpu.vector_store %arg12[%c0_57, %c1651], %111 {strides = array<i32>} : memref<1x1920xf32, #tpu.memory_space<vmem>>, vector<1x28xf32>,
    %113 = vector.extract_strided_slice %62 {offsets = [25, 0], sizes = [1, 28], strides = [1, 1]} : vector<28x28xf32> to vector<1x28xf32>
    %c0_58 = arith.constant 0 : index
    %c1681 = arith.constant 1681 : index
    %114 = vector.load %arg12[%c0_58, %c1681] : memref<1x1920xf32, #tpu.memory_space<vmem>>, vector<1x28xf32>
    tpu.vector_store %arg12[%c0_58, %c1681], %113 {strides = array<i32>} : memref<1x1920xf32, #tpu.memory_space<vmem>>, vector<1x28xf32>,
    %115 = vector.extract_strided_slice %62 {offsets = [26, 0], sizes = [1, 28], strides = [1, 1]} : vector<28x28xf32> to vector<1x28xf32>
    %c0_59 = arith.constant 0 : index
    %c1711 = arith.constant 1711 : index
    %116 = vector.load %arg12[%c0_59, %c1711] : memref<1x1920xf32, #tpu.memory_space<vmem>>, vector<1x28xf32>
    tpu.vector_store %arg12[%c0_59, %c1711], %115 {strides = array<i32>} : memref<1x1920xf32, #tpu.memory_space<vmem>>, vector<1x28xf32>,
    %117 = vector.extract_strided_slice %62 {offsets = [27, 0], sizes = [1, 28], strides = [1, 1]} : vector<28x28xf32> to vector<1x28xf32>
    %c0_60 = arith.constant 0 : index
    %c1741 = arith.constant 1741 : index
    %118 = vector.load %arg12[%c0_60, %c1741] : memref<1x1920xf32, #tpu.memory_space<vmem>>, vector<1x28xf32>
    tpu.vector_store %arg12[%c0_60, %c1741], %117 {strides = array<i32>} : memref<1x1920xf32, #tpu.memory_space<vmem>>, vector<1x28xf32>,
    %c0_61 = arith.constant 0 : index
    %c0_62 = arith.constant 0 : index
    %119 = vector.load %arg12[%c0_61, %c0_62] : memref<1x1920xf32, #tpu.memory_space<vmem>>, vector<1x1832xf32>
    %c0_63 = arith.constant 0 : index
    %c1 = arith.constant 1 : index
    %120 = vector.load %arg12[%c0_63, %c1] : memref<1x1920xf32, #tpu.memory_space<vmem>>, vector<1x1832xf32>
    %c0_64 = arith.constant 0 : index
    %c2 = arith.constant 2 : index
    %121 = vector.load %arg12[%c0_64, %c2] : memref<1x1920xf32, #tpu.memory_space<vmem>>, vector<1x1832xf32>
    %c0_65 = arith.constant 0 : index
    %c30 = arith.constant 30 : index
    %122 = vector.load %arg12[%c0_65, %c30] : memref<1x1920xf32, #tpu.memory_space<vmem>>, vector<1x1832xf32>
    %c0_66 = arith.constant 0 : index
    %c31_67 = arith.constant 31 : index
    %123 = vector.load %arg12[%c0_66, %c31_67] : memref<1x1920xf32, #tpu.memory_space<vmem>>, vector<1x1832xf32>
    %c0_68 = arith.constant 0 : index
    %c32 = arith.constant 32 : index
    %124 = vector.load %arg12[%c0_68, %c32] : memref<1x1920xf32, #tpu.memory_space<vmem>>, vector<1x1832xf32>
    %c0_69 = arith.constant 0 : index
    %c60 = arith.constant 60 : index
    %125 = vector.load %arg12[%c0_69, %c60] : memref<1x1920xf32, #tpu.memory_space<vmem>>, vector<1x1832xf32>
    %c0_70 = arith.constant 0 : index
    %c61_71 = arith.constant 61 : index
    %126 = vector.load %arg12[%c0_70, %c61_71] : memref<1x1920xf32, #tpu.memory_space<vmem>>, vector<1x1832xf32>
    %c0_72 = arith.constant 0 : index
    %c62 = arith.constant 62 : index
    %127 = vector.load %arg12[%c0_72, %c62] : memref<1x1920xf32, #tpu.memory_space<vmem>>, vector<1x1832xf32>
    %c0_73 = arith.constant 0 : index
    %c0_74 = arith.constant 0 : index
    %128 = vector.load %arg1[%c0_73, %c0_74] : memref<8x9xf32, #tpu.memory_space<vmem>>, vector<8x9xf32>
    %129 = vector.extract_strided_slice %128 {offsets = [0, 0], sizes = [8, 1], strides = [1, 1]} : vector<8x9xf32> to vector<8x1xf32>
    %130 = vector.broadcast %129 : vector<8x1xf32> to vector<8x1832xf32>
    %131 = vector.broadcast %119 : vector<1x1832xf32> to vector<8x1832xf32>
    %132 = arith.mulf %130, %131 : vector<8x1832xf32>
    %133 = vector.extract_strided_slice %128 {offsets = [0, 1], sizes = [8, 1], strides = [1, 1]} : vector<8x9xf32> to vector<8x1xf32>
    %134 = vector.broadcast %133 : vector<8x1xf32> to vector<8x1832xf32>
    %135 = vector.broadcast %120 : vector<1x1832xf32> to vector<8x1832xf32>
    %136 = arith.mulf %134, %135 : vector<8x1832xf32>
    %137 = arith.addf %132, %136 : vector<8x1832xf32>
    %138 = vector.extract_strided_slice %128 {offsets = [0, 2], sizes = [8, 1], strides = [1, 1]} : vector<8x9xf32> to vector<8x1xf32>
    %139 = vector.broadcast %138 : vector<8x1xf32> to vector<8x1832xf32>
    %140 = vector.broadcast %121 : vector<1x1832xf32> to vector<8x1832xf32>
    %141 = arith.mulf %139, %140 : vector<8x1832xf32>
    %142 = arith.addf %137, %141 : vector<8x1832xf32>
    %143 = vector.extract_strided_slice %128 {offsets = [0, 3], sizes = [8, 1], strides = [1, 1]} : vector<8x9xf32> to vector<8x1xf32>
    %144 = vector.broadcast %143 : vector<8x1xf32> to vector<8x1832xf32>
    %145 = vector.broadcast %122 : vector<1x1832xf32> to vector<8x1832xf32>
    %146 = arith.mulf %144, %145 : vector<8x1832xf32>
    %147 = arith.addf %142, %146 : vector<8x1832xf32>
    %148 = vector.extract_strided_slice %128 {offsets = [0, 4], sizes = [8, 1], strides = [1, 1]} : vector<8x9xf32> to vector<8x1xf32>
    %149 = vector.broadcast %148 : vector<8x1xf32> to vector<8x1832xf32>
    %150 = vector.broadcast %123 : vector<1x1832xf32> to vector<8x1832xf32>
    %151 = arith.mulf %149, %150 : vector<8x1832xf32>
    %152 = arith.addf %147, %151 : vector<8x1832xf32>
    %153 = vector.extract_strided_slice %128 {offsets = [0, 5], sizes = [8, 1], strides = [1, 1]} : vector<8x9xf32> to vector<8x1xf32>
    %154 = vector.broadcast %153 : vector<8x1xf32> to vector<8x1832xf32>
    %155 = vector.broadcast %124 : vector<1x1832xf32> to vector<8x1832xf32>
    %156 = arith.mulf %154, %155 : vector<8x1832xf32>
    %157 = arith.addf %152, %156 : vector<8x1832xf32>
    %158 = vector.extract_strided_slice %128 {offsets = [0, 6], sizes = [8, 1], strides = [1, 1]} : vector<8x9xf32> to vector<8x1xf32>
    %159 = vector.broadcast %158 : vector<8x1xf32> to vector<8x1832xf32>
    %160 = vector.broadcast %125 : vector<1x1832xf32> to vector<8x1832xf32>
    %161 = arith.mulf %159, %160 : vector<8x1832xf32>
    %162 = arith.addf %157, %161 : vector<8x1832xf32>
    %163 = vector.extract_strided_slice %128 {offsets = [0, 7], sizes = [8, 1], strides = [1, 1]} : vector<8x9xf32> to vector<8x1xf32>
    %164 = vector.broadcast %163 : vector<8x1xf32> to vector<8x1832xf32>
    %165 = vector.broadcast %126 : vector<1x1832xf32> to vector<8x1832xf32>
    %166 = arith.mulf %164, %165 : vector<8x1832xf32>
    %167 = arith.addf %162, %166 : vector<8x1832xf32>
    %168 = vector.extract_strided_slice %128 {offsets = [0, 8], sizes = [8, 1], strides = [1, 1]} : vector<8x9xf32> to vector<8x1xf32>
    %169 = vector.broadcast %168 : vector<8x1xf32> to vector<8x1832xf32>
    %170 = vector.broadcast %127 : vector<1x1832xf32> to vector<8x1832xf32>
    %171 = arith.mulf %169, %170 : vector<8x1832xf32>
    %172 = arith.addf %167, %171 : vector<8x1832xf32>
    %173 = vector.extract_strided_slice %172 {offsets = [0, 0], sizes = [8, 1800], strides = [1, 1]} : vector<8x1832xf32> to vector<8x1800xf32>
    %174 = vector.extract_strided_slice %172 {offsets = [0, 1], sizes = [8, 1800], strides = [1, 1]} : vector<8x1832xf32> to vector<8x1800xf32>
    %175 = arith.maximumf %173, %174 : vector<8x1800xf32>
    %176 = vector.extract_strided_slice %172 {offsets = [0, 30], sizes = [8, 1800], strides = [1, 1]} : vector<8x1832xf32> to vector<8x1800xf32>
    %177 = arith.maximumf %175, %176 : vector<8x1800xf32>
    %178 = vector.extract_strided_slice %172 {offsets = [0, 31], sizes = [8, 1800], strides = [1, 1]} : vector<8x1832xf32> to vector<8x1800xf32>
    %179 = arith.maximumf %177, %178 : vector<8x1800xf32>
    %c0_75 = arith.constant 0 : index
    %c0_76 = arith.constant 0 : index
    %180 = vector.load %arg2[%c0_75, %c0_76] : memref<8x1xf32, #tpu.memory_space<vmem>>, vector<8x1xf32>
    %181 = vector.broadcast %180 : vector<8x1xf32> to vector<8x1800xf32>
    %182 = arith.addf %179, %181 : vector<8x1800xf32>
    %cst_77 = arith.constant 0.000000e+00 : f32
    %183 = vector.broadcast %cst_77 : f32 to vector<8x1800xf32>
    %184 = arith.maximumf %182, %183 : vector<8x1800xf32>
    %185 = arith.truncf %184 : vector<8x1800xf32> to vector<8x1800xbf16>
    %c0_78 = arith.constant 0 : index
    %c0_79 = arith.constant 0 : index
    %186 = vector.load %arg3[%c0_78, %c0_79] : memref<900x256xbf16, #tpu.memory_space<vmem>>, vector<900x256xbf16>
    %187 = vector.extract_strided_slice %185 {offsets = [0, 0], sizes = [8, 900], strides = [1, 1]} : vector<8x1800xbf16> to vector<8x900xbf16>
    %cst_80 = arith.constant dense<0.000000e+00> : vector<8x256xf32>
    %188 = tpu.matmul %187, %186, %cst_80 {dimension_numbers = #tpu.dot_dimension_numbers<[1], [0], [0], [1], [0, 0, 1, 1], [], []>} : vector<8x900xbf16>, vector<900x256xbf16>, vector<8x256xf32> -> vector<8x256xf32>
    %189 = vector.extract_strided_slice %185 {offsets = [0, 900], sizes = [8, 900], strides = [1, 1]} : vector<8x1800xbf16> to vector<8x900xbf16>
    %cst_81 = arith.constant dense<0.000000e+00> : vector<8x256xf32>
    %190 = tpu.matmul %189, %186, %cst_81 {dimension_numbers = #tpu.dot_dimension_numbers<[1], [0], [0], [1], [0, 0, 1, 1], [], []>} : vector<8x900xbf16>, vector<900x256xbf16>, vector<8x256xf32> -> vector<8x256xf32>
    %cst_82 = arith.constant 0.000000e+00 : f32
    %191 = vector.broadcast %cst_82 : f32 to vector<8x52xf32>
    %192 = tpu.concatenate %188, %190, %191 in 1 : vector<8x256xf32>, vector<8x256xf32>, vector<8x52xf32> -> vector<8x564xf32>
    %193 = arith.truncf %192 : vector<8x564xf32> to vector<8x564xbf16>
    %194 = vector.extract_strided_slice %193 {offsets = [0, 0], sizes = [8, 530], strides = [1, 1]} : vector<8x564xbf16> to vector<8x530xbf16>
    %195 = vector.extract_strided_slice %193 {offsets = [0, 1], sizes = [8, 530], strides = [1, 1]} : vector<8x564xbf16> to vector<8x530xbf16>
    %196 = vector.extract_strided_slice %193 {offsets = [0, 2], sizes = [8, 530], strides = [1, 1]} : vector<8x564xbf16> to vector<8x530xbf16>
    %197 = vector.extract_strided_slice %193 {offsets = [0, 16], sizes = [8, 530], strides = [1, 1]} : vector<8x564xbf16> to vector<8x530xbf16>
    %198 = vector.extract_strided_slice %193 {offsets = [0, 17], sizes = [8, 530], strides = [1, 1]} : vector<8x564xbf16> to vector<8x530xbf16>
    %199 = vector.extract_strided_slice %193 {offsets = [0, 18], sizes = [8, 530], strides = [1, 1]} : vector<8x564xbf16> to vector<8x530xbf16>
    %200 = vector.extract_strided_slice %193 {offsets = [0, 32], sizes = [8, 530], strides = [1, 1]} : vector<8x564xbf16> to vector<8x530xbf16>
    %201 = vector.extract_strided_slice %193 {offsets = [0, 33], sizes = [8, 530], strides = [1, 1]} : vector<8x564xbf16> to vector<8x530xbf16>
    %202 = vector.extract_strided_slice %193 {offsets = [0, 34], sizes = [8, 530], strides = [1, 1]} : vector<8x564xbf16> to vector<8x530xbf16>
    %203 = tpu.concatenate %194, %195, %196, %197, %198, %199, %200, %201, %202 in 0 : vector<8x530xbf16>, vector<8x530xbf16>, vector<8x530xbf16>, vector<8x530xbf16>, vector<8x530xbf16>, vector<8x530xbf16>, vector<8x530xbf16>, vector<8x530xbf16>, vector<8x530xbf16> -> vector<72x530xbf16>
    %c0_83 = arith.constant 0 : index
    %c0_84 = arith.constant 0 : index
    %204 = vector.load %arg4[%c0_83, %c0_84] : memref<16x72xbf16, #tpu.memory_space<vmem>>, vector<16x72xbf16>
    %cst_85 = arith.constant dense<0.000000e+00> : vector<16x530xf32>
    %205 = tpu.matmul %204, %203, %cst_85 {dimension_numbers = #tpu.dot_dimension_numbers<[1], [0], [0], [1], [0, 0, 1, 1], [], []>} : vector<16x72xbf16>, vector<72x530xbf16>, vector<16x530xf32> -> vector<16x530xf32>
    %206 = vector.extract_strided_slice %205 {offsets = [0, 0], sizes = [16, 512], strides = [1, 1]} : vector<16x530xf32> to vector<16x512xf32>
    %207 = vector.extract_strided_slice %205 {offsets = [0, 1], sizes = [16, 512], strides = [1, 1]} : vector<16x530xf32> to vector<16x512xf32>
    %208 = arith.maximumf %206, %207 : vector<16x512xf32>
    %209 = vector.extract_strided_slice %205 {offsets = [0, 16], sizes = [16, 512], strides = [1, 1]} : vector<16x530xf32> to vector<16x512xf32>
    %210 = arith.maximumf %208, %209 : vector<16x512xf32>
    %211 = vector.extract_strided_slice %205 {offsets = [0, 17], sizes = [16, 512], strides = [1, 1]} : vector<16x530xf32> to vector<16x512xf32>
    %212 = arith.maximumf %210, %211 : vector<16x512xf32>
    %c0_86 = arith.constant 0 : index
    %c0_87 = arith.constant 0 : index
    %213 = vector.load %arg5[%c0_86, %c0_87] : memref<16x1xf32, #tpu.memory_space<vmem>>, vector<16x1xf32>
    %214 = vector.broadcast %213 : vector<16x1xf32> to vector<16x512xf32>
    %215 = arith.addf %212, %214 : vector<16x512xf32>
    %cst_88 = arith.constant 0.000000e+00 : f32
    %216 = vector.broadcast %cst_88 : f32 to vector<16x512xf32>
    %217 = arith.maximumf %215, %216 : vector<16x512xf32>
    %218 = arith.truncf %217 : vector<16x512xf32> to vector<16x512xbf16>
    %c0_89 = arith.constant 0 : index
    %c0_90 = arith.constant 0 : index
    %219 = vector.load %arg6[%c0_89, %c0_90] : memref<256x49xbf16, #tpu.memory_space<vmem>>, vector<256x49xbf16>
    %220 = vector.extract_strided_slice %218 {offsets = [0, 0], sizes = [16, 256], strides = [1, 1]} : vector<16x512xbf16> to vector<16x256xbf16>
    %cst_91 = arith.constant dense<0.000000e+00> : vector<16x49xf32>
    %221 = tpu.matmul %220, %219, %cst_91 {dimension_numbers = #tpu.dot_dimension_numbers<[1], [0], [0], [1], [0, 0, 1, 1], [], []>} : vector<16x256xbf16>, vector<256x49xbf16>, vector<16x49xf32> -> vector<16x49xf32>
    %222 = vector.extract_strided_slice %218 {offsets = [0, 256], sizes = [16, 256], strides = [1, 1]} : vector<16x512xbf16> to vector<16x256xbf16>
    %cst_92 = arith.constant dense<0.000000e+00> : vector<16x49xf32>
    %223 = tpu.matmul %222, %219, %cst_92 {dimension_numbers = #tpu.dot_dimension_numbers<[1], [0], [0], [1], [0, 0, 1, 1], [], []>} : vector<16x256xbf16>, vector<256x49xbf16>, vector<16x49xf32> -> vector<16x49xf32>
    %224 = vector.extract_strided_slice %221 {offsets = [0, 0], sizes = [1, 49], strides = [1, 1]} : vector<16x49xf32> to vector<1x49xf32>
    %225 = vector.extract_strided_slice %221 {offsets = [1, 0], sizes = [1, 49], strides = [1, 1]} : vector<16x49xf32> to vector<1x49xf32>
    %226 = vector.extract_strided_slice %221 {offsets = [2, 0], sizes = [1, 49], strides = [1, 1]} : vector<16x49xf32> to vector<1x49xf32>
    %227 = vector.extract_strided_slice %221 {offsets = [3, 0], sizes = [1, 49], strides = [1, 1]} : vector<16x49xf32> to vector<1x49xf32>
    %228 = vector.extract_strided_slice %221 {offsets = [4, 0], sizes = [1, 49], strides = [1, 1]} : vector<16x49xf32> to vector<1x49xf32>
    %229 = vector.extract_strided_slice %221 {offsets = [5, 0], sizes = [1, 49], strides = [1, 1]} : vector<16x49xf32> to vector<1x49xf32>
    %230 = vector.extract_strided_slice %221 {offsets = [6, 0], sizes = [1, 49], strides = [1, 1]} : vector<16x49xf32> to vector<1x49xf32>
    %231 = vector.extract_strided_slice %221 {offsets = [7, 0], sizes = [1, 49], strides = [1, 1]} : vector<16x49xf32> to vector<1x49xf32>
    %232 = vector.extract_strided_slice %221 {offsets = [8, 0], sizes = [1, 49], strides = [1, 1]} : vector<16x49xf32> to vector<1x49xf32>
    %233 = vector.extract_strided_slice %221 {offsets = [9, 0], sizes = [1, 49], strides = [1, 1]} : vector<16x49xf32> to vector<1x49xf32>
    %234 = vector.extract_strided_slice %221 {offsets = [10, 0], sizes = [1, 49], strides = [1, 1]} : vector<16x49xf32> to vector<1x49xf32>
    %235 = vector.extract_strided_slice %221 {offsets = [11, 0], sizes = [1, 49], strides = [1, 1]} : vector<16x49xf32> to vector<1x49xf32>
    %236 = vector.extract_strided_slice %221 {offsets = [12, 0], sizes = [1, 49], strides = [1, 1]} : vector<16x49xf32> to vector<1x49xf32>
    %237 = vector.extract_strided_slice %221 {offsets = [13, 0], sizes = [1, 49], strides = [1, 1]} : vector<16x49xf32> to vector<1x49xf32>
    %238 = vector.extract_strided_slice %221 {offsets = [14, 0], sizes = [1, 49], strides = [1, 1]} : vector<16x49xf32> to vector<1x49xf32>
    %239 = vector.extract_strided_slice %221 {offsets = [15, 0], sizes = [1, 49], strides = [1, 1]} : vector<16x49xf32> to vector<1x49xf32>
    %240 = tpu.concatenate %224, %225, %226, %227, %228, %229, %230, %231, %232, %233, %234, %235, %236, %237, %238, %239 in 1 : vector<1x49xf32>, vector<1x49xf32>, vector<1x49xf32>, vector<1x49xf32>, vector<1x49xf32>, vector<1x49xf32>, vector<1x49xf32>, vector<1x49xf32>, vector<1x49xf32>, vector<1x49xf32>, vector<1x49xf32>, vector<1x49xf32>, vector<1x49xf32>, vector<1x49xf32>, vector<1x49xf32>, vector<1x49xf32> -> vector<1x784xf32>
    %241 = vector.extract_strided_slice %223 {offsets = [0, 0], sizes = [1, 49], strides = [1, 1]} : vector<16x49xf32> to vector<1x49xf32>
    %242 = vector.extract_strided_slice %223 {offsets = [1, 0], sizes = [1, 49], strides = [1, 1]} : vector<16x49xf32> to vector<1x49xf32>
    %243 = vector.extract_strided_slice %223 {offsets = [2, 0], sizes = [1, 49], strides = [1, 1]} : vector<16x49xf32> to vector<1x49xf32>
    %244 = vector.extract_strided_slice %223 {offsets = [3, 0], sizes = [1, 49], strides = [1, 1]} : vector<16x49xf32> to vector<1x49xf32>
    %245 = vector.extract_strided_slice %223 {offsets = [4, 0], sizes = [1, 49], strides = [1, 1]} : vector<16x49xf32> to vector<1x49xf32>
    %246 = vector.extract_strided_slice %223 {offsets = [5, 0], sizes = [1, 49], strides = [1, 1]} : vector<16x49xf32> to vector<1x49xf32>
    %247 = vector.extract_strided_slice %223 {offsets = [6, 0], sizes = [1, 49], strides = [1, 1]} : vector<16x49xf32> to vector<1x49xf32>
    %248 = vector.extract_strided_slice %223 {offsets = [7, 0], sizes = [1, 49], strides = [1, 1]} : vector<16x49xf32> to vector<1x49xf32>
    %249 = vector.extract_strided_slice %223 {offsets = [8, 0], sizes = [1, 49], strides = [1, 1]} : vector<16x49xf32> to vector<1x49xf32>
    %250 = vector.extract_strided_slice %223 {offsets = [9, 0], sizes = [1, 49], strides = [1, 1]} : vector<16x49xf32> to vector<1x49xf32>
    %251 = vector.extract_strided_slice %223 {offsets = [10, 0], sizes = [1, 49], strides = [1, 1]} : vector<16x49xf32> to vector<1x49xf32>
    %252 = vector.extract_strided_slice %223 {offsets = [11, 0], sizes = [1, 49], strides = [1, 1]} : vector<16x49xf32> to vector<1x49xf32>
    %253 = vector.extract_strided_slice %223 {offsets = [12, 0], sizes = [1, 49], strides = [1, 1]} : vector<16x49xf32> to vector<1x49xf32>
    %254 = vector.extract_strided_slice %223 {offsets = [13, 0], sizes = [1, 49], strides = [1, 1]} : vector<16x49xf32> to vector<1x49xf32>
    %255 = vector.extract_strided_slice %223 {offsets = [14, 0], sizes = [1, 49], strides = [1, 1]} : vector<16x49xf32> to vector<1x49xf32>
    %256 = vector.extract_strided_slice %223 {offsets = [15, 0], sizes = [1, 49], strides = [1, 1]} : vector<16x49xf32> to vector<1x49xf32>
    %257 = tpu.concatenate %241, %242, %243, %244, %245, %246, %247, %248, %249, %250, %251, %252, %253, %254, %255, %256 in 1 : vector<1x49xf32>, vector<1x49xf32>, vector<1x49xf32>, vector<1x49xf32>, vector<1x49xf32>, vector<1x49xf32>, vector<1x49xf32>, vector<1x49xf32>, vector<1x49xf32>, vector<1x49xf32>, vector<1x49xf32>, vector<1x49xf32>, vector<1x49xf32>, vector<1x49xf32>, vector<1x49xf32>, vector<1x49xf32> -> vector<1x784xf32>
    %258 = tpu.concatenate %240, %257 in 0 : vector<1x784xf32>, vector<1x784xf32> -> vector<2x784xf32>
    %259 = arith.truncf %258 : vector<2x784xf32> to vector<2x784xbf16>
    %c0_93 = arith.constant 0 : index
    %c0_94 = arith.constant 0 : index
    %260 = vector.load %arg7[%c0_93, %c0_94] : memref<784x32xbf16, #tpu.memory_space<vmem>>, vector<784x32xbf16>
    %cst_95 = arith.constant dense<0.000000e+00> : vector<2x32xf32>
    %261 = tpu.matmul %259, %260, %cst_95 {dimension_numbers = #tpu.dot_dimension_numbers<[1], [0], [0], [1], [0, 0, 1, 1], [], []>} : vector<2x784xbf16>, vector<784x32xbf16>, vector<2x32xf32> -> vector<2x32xf32>
    %c0_96 = arith.constant 0 : index
    %c0_97 = arith.constant 0 : index
    %262 = vector.load %arg8[%c0_96, %c0_97] : memref<1x32xf32, #tpu.memory_space<vmem>>, vector<1x32xf32>
    %263 = vector.broadcast %262 : vector<1x32xf32> to vector<2x32xf32>
    %264 = arith.addf %261, %263 : vector<2x32xf32>
    %cst_98 = arith.constant 0.000000e+00 : f32
    %265 = vector.broadcast %cst_98 : f32 to vector<2x32xf32>
    %266 = arith.maximumf %264, %265 : vector<2x32xf32>
    %267 = arith.truncf %266 : vector<2x32xf32> to vector<2x32xbf16>
    %c0_99 = arith.constant 0 : index
    %c0_100 = arith.constant 0 : index
    %268 = vector.load %arg9[%c0_99, %c0_100] : memref<32x10xbf16, #tpu.memory_space<vmem>>, vector<32x10xbf16>
    %cst_101 = arith.constant dense<0.000000e+00> : vector<2x10xf32>
    %269 = tpu.matmul %267, %268, %cst_101 {dimension_numbers = #tpu.dot_dimension_numbers<[1], [0], [0], [1], [0, 0, 1, 1], [], []>} : vector<2x32xbf16>, vector<32x10xbf16>, vector<2x10xf32> -> vector<2x10xf32>
    %c0_102 = arith.constant 0 : index
    %c0_103 = arith.constant 0 : index
    %270 = vector.load %arg10[%c0_102, %c0_103] : memref<1x10xf32, #tpu.memory_space<vmem>>, vector<1x10xf32>
    %271 = vector.broadcast %270 : vector<1x10xf32> to vector<2x10xf32>
    %272 = arith.addf %269, %271 : vector<2x10xf32>
    %c0_104 = arith.constant 0 : index
    %c0_105 = arith.constant 0 : index
    %273 = vector.load %arg11[%c0_104, %c0_105] : memref<2x10xf32, #tpu.memory_space<vmem>>, vector<2x10xf32>
    tpu.vector_store %arg11[%c0_104, %c0_105], %272 {strides = array<i32>} : memref<2x10xf32, #tpu.memory_space<vmem>>, vector<2x10xf32>,
    return
  }
}

</mosaic_0001>

<llo_original>
// kernel: simple_cnn_forward.1
$region0: #{simple_cnn_forward.1}
  #allocation0 [shape = 'u32[]', space=smem, size = 0x4, offset = 0x4, fixed_abs, tag = 'smem constant byte address 0x4 - core index']
  #allocation1 [shape = 'u32[72,128]{1,0:T(1,128)}', space=vmem, size = 0x9000, scoped, tag = 'internal scratch']
  #allocation2 [shape = 'f32[1,1920]{1,0:T(1,128)}', space=vmem, size = 0x1e00, scoped, tag = 'scratch operand']
  %s0 = inlined_call_operand.vmem [shape: f32[2,1,28,28], index: 0, kind: input, shape index: {}]
  %s1 = inlined_call_operand.vmem [shape: f32[8,9], index: 1, kind: input, shape index: {}]
  %s2 = inlined_call_operand.vmem [shape: f32[8,1], index: 2, kind: input, shape index: {}]
  %s3 = inlined_call_operand.hbm [shape: bf16[900,256], index: 3, kind: input, shape index: {}]
  %s4 = inlined_call_operand.vmem [shape: bf16[16,72], index: 4, kind: input, shape index: {}]
  %s5 = inlined_call_operand.vmem [shape: f32[16,1], index: 5, kind: input, shape index: {}]
  %s6 = inlined_call_operand.vmem [shape: bf16[256,49], index: 6, kind: input, shape index: {}]
  %s7 = inlined_call_operand.vmem [shape: bf16[784,32], index: 7, kind: input, shape index: {}]
  %s8 = inlined_call_operand.vmem [shape: f32[1,32], index: 8, kind: input, shape index: {}]
  %s9 = inlined_call_operand.vmem [shape: bf16[32,10], index: 9, kind: input, shape index: {}]
  %s10 = inlined_call_operand.vmem [shape: f32[1,10], index: 10, kind: input, shape index: {}]
  %s11 = inlined_call_operand.hbm [shape: f32[2,10], index: 11, kind: output, shape index: {}]
  %s12 = sld [smem:[#allocation0]]
  $region58: #{simple_cnn_forward.1} parent=0
    _
  %s14 = ssub.s32 1, %s12
  %s15 = scalar_select 0, %s14, %s12
  $region1: #{simple_cnn_forward.1} parent=0
    #allocation3 [shape = 'u8[462848]{0}', space=vmem, size = 0x71000, scoped, tag = 'input window, operand 3, single buffered']
    #allocation4 [shape = 's32[1]{0}', space=sflag, size = 0x4, scoped, tag = 'scoped memory for simple_cnn_forward.1']
    #allocation5 [shape = 's32[1]{0}', space=sflag, size = 0x4, scoped, tag = 'scoped memory for simple_cnn_forward.1']
    #allocation6 [shape = 'u8[1024]{0}', space=vmem, size = 0x400, scoped, tag = 'output window, operand 0, single buffered']
    %16 = vsyncpa [#allocation4], 0
    %17 = vsyncpa [#allocation5], 0
    // Predicated region
    $region2: #{simple_cnn_forward.1} parent=1 // pred_check
      _
    $region3: #{simple_cnn_forward.1} parent=1 // pred_check_branch
      %19 = sbr.rel (0) target = $region5
    $region4: #{simple_cnn_forward.1} parent=1 // pred_region
      _
    $region5: #{simple_cnn_forward.1} parent=1 // pred_fallthru
      _
    // Predicated region
    $region6: #{simple_cnn_forward.1} parent=1 // pred_check
      _
    $region7: #{simple_cnn_forward.1} parent=1 // pred_check_branch
      %21 = sbr.rel (0) target = $region9
    $region8: #{simple_cnn_forward.1} parent=1 // pred_region
      _
    $region9: #{simple_cnn_forward.1} parent=1 // pred_fallthru
      _
    // Predicated region
    $region10: #{simple_cnn_forward.1} parent=1 // pred_check
      _
    $region11: #{simple_cnn_forward.1} parent=1 // pred_check_branch
      %23 = sbr.rel (0) target = $region13
    $region12: #{simple_cnn_forward.1} parent=1 // pred_region
      _
    $region13: #{simple_cnn_forward.1} parent=1 // pred_fallthru
      _
    // Predicated region
    $region14: #{simple_cnn_forward.1} parent=1 // pred_check
      _
    $region15: #{simple_cnn_forward.1} parent=1 // pred_check_branch
      %25 = sbr.rel (0) target = $region17
    $region16: #{simple_cnn_forward.1} parent=1 // pred_region
      %27 = vsyncadd [#allocation4], 0
      %s28 = sshll.u32 %s3, 4
      %s29 = int_to_ptr.hbm [resolvable:$true] %s28
      %s30 = sshll.u32 [#allocation3], 4
      %s31 = int_to_ptr.vmem [resolvable:$true] %s30
      %36 = dma.hbm_to_vmem [thread:$0]  %s29, 14464, %s31, [#allocation4], 128, 128, 8
    $region17: #{simple_cnn_forward.1} parent=1 // pred_fallthru
      _
    // Predicated region
    $region18: #{simple_cnn_forward.1} parent=1 // pred_check
      _
    $region19: #{simple_cnn_forward.1} parent=1 // pred_check_branch
      %38 = sbr.rel (0) target = $region21
    $region20: #{simple_cnn_forward.1} parent=1 // pred_region
      _
    $region21: #{simple_cnn_forward.1} parent=1 // pred_fallthru
      _
    // Predicated region
    $region22: #{simple_cnn_forward.1} parent=1 // pred_check
      _
    $region23: #{simple_cnn_forward.1} parent=1 // pred_check_branch
      %40 = sbr.rel (0) target = $region25
    $region24: #{simple_cnn_forward.1} parent=1 // pred_region
      _
    $region25: #{simple_cnn_forward.1} parent=1 // pred_fallthru
      _
    // Predicated region
    $region26: #{simple_cnn_forward.1} parent=1 // pred_check
      _
    $region27: #{simple_cnn_forward.1} parent=1 // pred_check_branch
      %42 = sbr.rel (0) target = $region29
    $region28: #{simple_cnn_forward.1} parent=1 // pred_region
      _
    $region29: #{simple_cnn_forward.1} parent=1 // pred_fallthru
      _
    // Predicated region
    $region30: #{simple_cnn_forward.1} parent=1 // pred_check
      _
    $region31: #{simple_cnn_forward.1} parent=1 // pred_check_branch
      %44 = sbr.rel (0) target = $region33
    $region32: #{simple_cnn_forward.1} parent=1 // pred_region
      _
    $region33: #{simple_cnn_forward.1} parent=1 // pred_fallthru
      _
    // Predicated region
    $region34: #{simple_cnn_forward.1} parent=1 // pred_check
      _
    $region35: #{simple_cnn_forward.1} parent=1 // pred_check_branch
      %46 = sbr.rel (0) target = $region37
    $region36: #{simple_cnn_forward.1} parent=1 // pred_region
      _
    $region37: #{simple_cnn_forward.1} parent=1 // pred_fallthru
      _
    // Predicated region
    $region38: #{simple_cnn_forward.1} parent=1 // pred_check
      _
    $region39: #{simple_cnn_forward.1} parent=1 // pred_check_branch
      %48 = sbr.rel (0) target = $region41
    $region40: #{simple_cnn_forward.1} parent=1 // pred_region
      _
    $region41: #{simple_cnn_forward.1} parent=1 // pred_fallthru
      _
    // Predicated region
    $region42: #{simple_cnn_forward.1} parent=1 // pred_check
      _
    $region43: #{simple_cnn_forward.1} parent=1 // pred_check_branch
      %50 = sbr.rel (0) target = $region45
    $region44: #{simple_cnn_forward.1} parent=1 // pred_region
      _
    $region45: #{simple_cnn_forward.1} parent=1 // pred_fallthru
      _
    // Predicated region
    $region46: #{simple_cnn_forward.1} parent=1 // pred_check
      _
    $region47: #{simple_cnn_forward.1} parent=1 // pred_check_branch
      %52 = sbr.rel (0) target = $region49
    $region48: #{simple_cnn_forward.1} parent=1 // pred_region
      %54 = dma.done [#allocation4], 14464
    $region49: #{simple_cnn_forward.1} parent=1 // pred_fallthru
      _
    %56 = vst [vmem:[#allocation2] sm:$0xff] 0.0
    %v57 = vlaneseq
    %vm58 = vcmp.ge.s32.totalorder %v57, 0
    %vm59 = vcmp.lt.s32.totalorder %v57, 896
    %vm60 = vmand %vm58, %vm59
    %61 = vst.msk [vmem:[#allocation2 + $0x8] sm:$0x7f] %vm60, 0.0
    %v62 = vld [vmem:[%s0] sm:$0xff]
    %v63 = vld [vmem:[%s0 + $0x8] sm:$0xff]
    %v64 = vld [vmem:[%s0 + $0x10] sm:$0xff]
    %v65 = vld [vmem:[%s0 + $0x18] sm:$0xf]
    %v66 = vld [vmem:[%s0 + $0x20] sm:$0xff]
    %v67 = vld [vmem:[%s0 + $0x28] sm:$0xff]
    %v68 = vld [vmem:[%s0 + $0x30] sm:$0xff]
    %v69 = vld [vmem:[%s0 + $0x38] sm:$0xf]
    %71 = vrot.lane.b32.xlu0 %v62, 31
    %v72 = vpop.permute.xlu0 %71
    %vm74 = vcmp.ge.s32.totalorder %v57, 31
    %vm75 = vcmp.lt.s32.totalorder %v57, 59
    %vm76 = vmand %vm74, %vm75
    %77 = vst.msk [vmem:[#allocation2] sm:$0x1] %vm76, %v72
    %78 = vst [vmem:[#allocation1] sm:$0xff] %v62
    %s79 = scalar_lea.vmem [#allocation1], 1
    %v80 = vld [vmem:[%s79] ss:$9 sm:$0xff]
    %81 = vrot.lane.b32.xlu0 %v80, 61
    %v82 = vpop.permute.xlu0 %81
    %vm84 = vcmp.ge.s32.totalorder %v57, 61
    %vm85 = vcmp.lt.s32.totalorder %v57, 89
    %vm86 = vmand %vm84, %vm85
    %87 = vst.msk [vmem:[#allocation2] sm:$0x1] %vm86, %v82
    %88 = vst [vmem:[#allocation1] sm:$0xff] %v62
    %s89 = scalar_lea.vmem [#allocation1], 2
    %v90 = vld [vmem:[%s89] ss:$9 sm:$0xff]
    %91 = vrot.lane.b32.xlu0 %v90, 91
    %v92 = vpop.permute.xlu0 %91
    %vm94 = vcmp.ge.s32.totalorder %v57, 91
    %vm95 = vcmp.lt.s32.totalorder %v57, 119
    %vm96 = vmand %vm94, %vm95
    %97 = vst.msk [vmem:[#allocation2] sm:$0x1] %vm96, %v92
    %98 = vst [vmem:[#allocation1] sm:$0xff] %v62
    %s99 = scalar_lea.vmem [#allocation1], 3
    %v100 = vld [vmem:[%s99] ss:$9 sm:$0xff]
    %101 = vrot.lane.b32.xlu0 %v100, 121
    %v102 = vpop.permute.xlu0 %101
    %v103 = vrot.slane %v102, 7
    %vm104 = vcmask 990208
    %v105 = vsel %vm104, %v103, %v102
    %vm107 = vcmp.ge.s32.totalorder %v57, 121
    %vm108 = vcmp.lt.s32.totalorder %v57, 149
    %vm109 = vmand %vm107, %vm108
    %110 = vst.msk [vmem:[#allocation2] sm:$0x3] %vm109, %v105
    %111 = vst [vmem:[#allocation1] sm:$0xff] %v62
    %s112 = scalar_lea.vmem [#allocation1], 4
    %v113 = vld [vmem:[%s112] ss:$9 sm:$0xff]
    %114 = vrot.lane.b32.xlu0 %v113, 23
    %v115 = vpop.permute.xlu0 %114
    %vm117 = vcmp.ge.s32.totalorder %v57, 23
    %vm118 = vcmp.lt.s32.totalorder %v57, 51
    %vm119 = vmand %vm117, %vm118
    %120 = vst.msk [vmem:[#allocation2 + $0x1] sm:$0x1] %vm119, %v115
    %121 = vst [vmem:[#allocation1] sm:$0xff] %v62
    %s122 = scalar_lea.vmem [#allocation1], 5
    %v123 = vld [vmem:[%s122] ss:$9 sm:$0xff]
    %124 = vrot.lane.b32.xlu0 %v123, 53
    %v125 = vpop.permute.xlu0 %124
    %vm127 = vcmp.ge.s32.totalorder %v57, 53
    %vm128 = vcmp.lt.s32.totalorder %v57, 81
    %vm129 = vmand %vm127, %vm128
    %130 = vst.msk [vmem:[#allocation2 + $0x1] sm:$0x1] %vm129, %v125
    %131 = vst [vmem:[#allocation1] sm:$0xff] %v62
    %s132 = scalar_lea.vmem [#allocation1], 6
    %v133 = vld [vmem:[%s132] ss:$9 sm:$0xff]
    %134 = vrot.lane.b32.xlu0 %v133, 83
    %v135 = vpop.permute.xlu0 %134
    %vm137 = vcmp.ge.s32.totalorder %v57, 83
    %vm138 = vcmp.lt.s32.totalorder %v57, 111
    %vm139 = vmand %vm137, %vm138
    %140 = vst.msk [vmem:[#allocation2 + $0x1] sm:$0x1] %vm139, %v135
    %141 = vst [vmem:[#allocation1] sm:$0xff] %v62
    %s142 = scalar_lea.vmem [#allocation1], 7
    %v143 = vld [vmem:[%s142] ss:$9 sm:$0xff]
    %144 = vrot.lane.b32.xlu0 %v143, 113
    %v145 = vpop.permute.xlu0 %144
    %v146 = vrot.slane %v145, 7
    %vm147 = vcmask 924672
    %v148 = vsel %vm147, %v146, %v145
    %vm150 = vcmp.ge.s32.totalorder %v57, 113
    %vm151 = vcmp.lt.s32.totalorder %v57, 141
    %vm152 = vmand %vm150, %vm151
    %153 = vst.msk [vmem:[#allocation2 + $0x1] sm:$0x3] %vm152, %v148
    %155 = vrot.lane.b32.xlu0 %v63, 15
    %v156 = vpop.permute.xlu0 %155
    %vm158 = vcmp.ge.s32.totalorder %v57, 15
    %vm159 = vcmp.lt.s32.totalorder %v57, 43
    %vm160 = vmand %vm158, %vm159
    %161 = vst.msk [vmem:[#allocation2 + $0x2] sm:$0x1] %vm160, %v156
    %162 = vst [vmem:[#allocation1] sm:$0xff] %v63
    %s163 = scalar_lea.vmem [#allocation1], 1
    %v164 = vld [vmem:[%s163] ss:$9 sm:$0xff]
    %165 = vrot.lane.b32.xlu0 %v164, 45
    %v166 = vpop.permute.xlu0 %165
    %vm168 = vcmp.ge.s32.totalorder %v57, 45
    %vm169 = vcmp.lt.s32.totalorder %v57, 73
    %vm170 = vmand %vm168, %vm169
    %171 = vst.msk [vmem:[#allocation2 + $0x2] sm:$0x1] %vm170, %v166
    %172 = vst [vmem:[#allocation1] sm:$0xff] %v63
    %s173 = scalar_lea.vmem [#allocation1], 2
    %v174 = vld [vmem:[%s173] ss:$9 sm:$0xff]
    %175 = vrot.lane.b32.xlu0 %v174, 75
    %v176 = vpop.permute.xlu0 %175
    %vm178 = vcmp.ge.s32.totalorder %v57, 75
    %vm179 = vcmp.lt.s32.totalorder %v57, 103
    %vm180 = vmand %vm178, %vm179
    %181 = vst.msk [vmem:[#allocation2 + $0x2] sm:$0x1] %vm180, %v176
    %182 = vst [vmem:[#allocation1] sm:$0xff] %v63
    %s183 = scalar_lea.vmem [#allocation1], 3
    %v184 = vld [vmem:[%s183] ss:$9 sm:$0xff]
    %185 = vrot.lane.b32.xlu0 %v184, 105
    %v186 = vpop.permute.xlu0 %185
    %v187 = vrot.slane %v186, 7
    %vm188 = vcmask 859136
    %v189 = vsel %vm188, %v187, %v186
    %vm191 = vcmp.ge.s32.totalorder %v57, 105
    %vm192 = vcmp.lt.s32.totalorder %v57, 133
    %vm193 = vmand %vm191, %vm192
    %194 = vst.msk [vmem:[#allocation2 + $0x2] sm:$0x3] %vm193, %v189
    %195 = vst [vmem:[#allocation1] sm:$0xff] %v63
    %s196 = scalar_lea.vmem [#allocation1], 4
    %v197 = vld [vmem:[%s196] ss:$9 sm:$0xff]
    %198 = vrot.lane.b32.xlu0 %v197, 7
    %v199 = vpop.permute.xlu0 %198
    %vm201 = vcmp.ge.s32.totalorder %v57, 7
    %vm202 = vcmp.lt.s32.totalorder %v57, 35
    %vm203 = vmand %vm201, %vm202
    %204 = vst.msk [vmem:[#allocation2 + $0x3] sm:$0x1] %vm203, %v199
    %205 = vst [vmem:[#allocation1] sm:$0xff] %v63
    %s206 = scalar_lea.vmem [#allocation1], 5
    %v207 = vld [vmem:[%s206] ss:$9 sm:$0xff]
    %208 = vrot.lane.b32.xlu0 %v207, 37
    %v209 = vpop.permute.xlu0 %208
    %vm211 = vcmp.ge.s32.totalorder %v57, 37
    %vm212 = vcmp.lt.s32.totalorder %v57, 65
    %vm213 = vmand %vm211, %vm212
    %214 = vst.msk [vmem:[#allocation2 + $0x3] sm:$0x1] %vm213, %v209
    %215 = vst [vmem:[#allocation1] sm:$0xff] %v63
    %s216 = scalar_lea.vmem [#allocation1], 6
    %v217 = vld [vmem:[%s216] ss:$9 sm:$0xff]
    %218 = vrot.lane.b32.xlu0 %v217, 67
    %v219 = vpop.permute.xlu0 %218
    %vm221 = vcmp.ge.s32.totalorder %v57, 67
    %vm222 = vcmp.lt.s32.totalorder %v57, 95
    %vm223 = vmand %vm221, %vm222
    %224 = vst.msk [vmem:[#allocation2 + $0x3] sm:$0x1] %vm223, %v219
    %225 = vst [vmem:[#allocation1] sm:$0xff] %v63
    %s226 = scalar_lea.vmem [#allocation1], 7
    %v227 = vld [vmem:[%s226] ss:$9 sm:$0xff]
    %228 = vrot.lane.b32.xlu0 %v227, 97
    %v229 = vpop.permute.xlu0 %228
    %vm231 = vcmp.ge.s32.totalorder %v57, 97
    %vm232 = vcmp.lt.s32.totalorder %v57, 125
    %vm233 = vmand %vm231, %vm232
    %234 = vst.msk [vmem:[#allocation2 + $0x3] sm:$0x1] %vm233, %v229
    %236 = vrot.lane.b32.xlu0 %v64, 127
    %v237 = vpop.permute.xlu0 %236
    %v238 = vrot.slane %v237, 7
    %vm239 = vcmask 1039360
    %v240 = vsel %vm239, %v238, %v237
    %vm242 = vcmp.ge.s32.totalorder %v57, 127
    %vm243 = vcmp.lt.s32.totalorder %v57, 155
    %vm244 = vmand %vm242, %vm243
    %245 = vst.msk [vmem:[#allocation2 + $0x3] sm:$0x3] %vm244, %v240
    %246 = vst [vmem:[#allocation1] sm:$0xff] %v64
    %s247 = scalar_lea.vmem [#allocation1], 1
    %v248 = vld [vmem:[%s247] ss:$9 sm:$0xff]
    %249 = vrot.lane.b32.xlu0 %v248, 29
    %v250 = vpop.permute.xlu0 %249
    %vm252 = vcmp.ge.s32.totalorder %v57, 29
    %vm253 = vcmp.lt.s32.totalorder %v57, 57
    %vm254 = vmand %vm252, %vm253
    %255 = vst.msk [vmem:[#allocation2 + $0x4] sm:$0x1] %vm254, %v250
    %256 = vst [vmem:[#allocation1] sm:$0xff] %v64
    %s257 = scalar_lea.vmem [#allocation1], 2
    %v258 = vld [vmem:[%s257] ss:$9 sm:$0xff]
    %259 = vrot.lane.b32.xlu0 %v258, 59
    %v260 = vpop.permute.xlu0 %259
    %vm262 = vcmp.ge.s32.totalorder %v57, 59
    %vm263 = vcmp.lt.s32.totalorder %v57, 87
    %vm264 = vmand %vm262, %vm263
    %265 = vst.msk [vmem:[#allocation2 + $0x4] sm:$0x1] %vm264, %v260
    %266 = vst [vmem:[#allocation1] sm:$0xff] %v64
    %s267 = scalar_lea.vmem [#allocation1], 3
    %v268 = vld [vmem:[%s267] ss:$9 sm:$0xff]
    %269 = vrot.lane.b32.xlu0 %v268, 89
    %v270 = vpop.permute.xlu0 %269
    %vm272 = vcmp.ge.s32.totalorder %v57, 89
    %vm273 = vcmp.lt.s32.totalorder %v57, 117
    %vm274 = vmand %vm272, %vm273
    %275 = vst.msk [vmem:[#allocation2 + $0x4] sm:$0x1] %vm274, %v270
    %276 = vst [vmem:[#allocation1] sm:$0xff] %v64
    %s277 = scalar_lea.vmem [#allocation1], 4
    %v278 = vld [vmem:[%s277] ss:$9 sm:$0xff]
    %279 = vrot.lane.b32.xlu0 %v278, 119
    %v280 = vpop.permute.xlu0 %279
    %v281 = vrot.slane %v280, 7
    %vm282 = vcmask 973824
    %v283 = vsel %vm282, %v281, %v280
    %vm285 = vcmp.ge.s32.totalorder %v57, 119
    %vm286 = vcmp.lt.s32.totalorder %v57, 147
    %vm287 = vmand %vm285, %vm286
    %288 = vst.msk [vmem:[#allocation2 + $0x4] sm:$0x3] %vm287, %v283
    %289 = vst [vmem:[#allocation1] sm:$0xff] %v64
    %s290 = scalar_lea.vmem [#allocation1], 5
    %v291 = vld [vmem:[%s290] ss:$9 sm:$0xff]
    %292 = vrot.lane.b32.xlu0 %v291, 21
    %v293 = vpop.permute.xlu0 %292
    %vm295 = vcmp.ge.s32.totalorder %v57, 21
    %vm296 = vcmp.lt.s32.totalorder %v57, 49
    %vm297 = vmand %vm295, %vm296
    %298 = vst.msk [vmem:[#allocation2 + $0x5] sm:$0x1] %vm297, %v293
    %299 = vst [vmem:[#allocation1] sm:$0xff] %v64
    %s300 = scalar_lea.vmem [#allocation1], 6
    %v301 = vld [vmem:[%s300] ss:$9 sm:$0xff]
    %302 = vrot.lane.b32.xlu0 %v301, 51
    %v303 = vpop.permute.xlu0 %302
    %vm305 = vcmp.ge.s32.totalorder %v57, 51
    %vm306 = vcmp.lt.s32.totalorder %v57, 79
    %vm307 = vmand %vm305, %vm306
    %308 = vst.msk [vmem:[#allocation2 + $0x5] sm:$0x1] %vm307, %v303
    %309 = vst [vmem:[#allocation1] sm:$0xff] %v64
    %s310 = scalar_lea.vmem [#allocation1], 7
    %v311 = vld [vmem:[%s310] ss:$9 sm:$0xff]
    %312 = vrot.lane.b32.xlu0 %v311, 81
    %v313 = vpop.permute.xlu0 %312
    %vm315 = vcmp.ge.s32.totalorder %v57, 81
    %vm316 = vcmp.lt.s32.totalorder %v57, 109
    %vm317 = vmand %vm315, %vm316
    %318 = vst.msk [vmem:[#allocation2 + $0x5] sm:$0x1] %vm317, %v313
    %320 = vrot.lane.b32.xlu0 %v65, 111
    %v321 = vpop.permute.xlu0 %320
    %v322 = vrot.slane %v321, 7
    %vm323 = vcmask 908288
    %v324 = vsel %vm323, %v322, %v321
    %vm326 = vcmp.ge.s32.totalorder %v57, 111
    %vm327 = vcmp.lt.s32.totalorder %v57, 139
    %vm328 = vmand %vm326, %vm327
    %329 = vst.msk [vmem:[#allocation2 + $0x5] sm:$0x3] %vm328, %v324
    %330 = vst [vmem:[#allocation1] sm:$0xff] %v65
    %s331 = scalar_lea.vmem [#allocation1], 1
    %v332 = vld [vmem:[%s331] ss:$9 sm:$0xff]
    %333 = vrot.lane.b32.xlu0 %v332, 13
    %v334 = vpop.permute.xlu0 %333
    %vm336 = vcmp.ge.s32.totalorder %v57, 13
    %vm337 = vcmp.lt.s32.totalorder %v57, 41
    %vm338 = vmand %vm336, %vm337
    %339 = vst.msk [vmem:[#allocation2 + $0x6] sm:$0x1] %vm338, %v334
    %340 = vst [vmem:[#allocation1] sm:$0xff] %v65
    %s341 = scalar_lea.vmem [#allocation1], 2
    %v342 = vld [vmem:[%s341] ss:$9 sm:$0xff]
    %343 = vrot.lane.b32.xlu0 %v342, 43
    %v344 = vpop.permute.xlu0 %343
    %vm346 = vcmp.ge.s32.totalorder %v57, 43
    %vm347 = vcmp.lt.s32.totalorder %v57, 71
    %vm348 = vmand %vm346, %vm347
    %349 = vst.msk [vmem:[#allocation2 + $0x6] sm:$0x1] %vm348, %v344
    %350 = vst [vmem:[#allocation1] sm:$0xff] %v65
    %s351 = scalar_lea.vmem [#allocation1], 3
    %v352 = vld [vmem:[%s351] ss:$9 sm:$0xff]
    %353 = vrot.lane.b32.xlu0 %v352, 73
    %v354 = vpop.permute.xlu0 %353
    %vm356 = vcmp.ge.s32.totalorder %v57, 73
    %vm357 = vcmp.lt.s32.totalorder %v57, 101
    %vm358 = vmand %vm356, %vm357
    %359 = vst.msk [vmem:[#allocation2 + $0x6] sm:$0x1] %vm358, %v354
    %361 = vrot.lane.b32.xlu0 %v66, 35
    %v362 = vpop.permute.xlu0 %361
    %vm364 = vcmp.ge.s32.totalorder %v57, 35
    %vm365 = vcmp.lt.s32.totalorder %v57, 63
    %vm366 = vmand %vm364, %vm365
    %367 = vst.msk [vmem:[#allocation2 + $0x7] sm:$0x1] %vm366, %v362
    %368 = vst [vmem:[#allocation1] sm:$0xff] %v66
    %s369 = scalar_lea.vmem [#allocation1], 1
    %v370 = vld [vmem:[%s369] ss:$9 sm:$0xff]
    %371 = vrot.lane.b32.xlu0 %v370, 65
    %v372 = vpop.permute.xlu0 %371
    %vm374 = vcmp.ge.s32.totalorder %v57, 65
    %vm375 = vcmp.lt.s32.totalorder %v57, 93
    %vm376 = vmand %vm374, %vm375
    %377 = vst.msk [vmem:[#allocation2 + $0x7] sm:$0x1] %vm376, %v372
    %378 = vst [vmem:[#allocation1] sm:$0xff] %v66
    %s379 = scalar_lea.vmem [#allocation1], 2
    %v380 = vld [vmem:[%s379] ss:$9 sm:$0xff]
    %381 = vrot.lane.b32.xlu0 %v380, 95
    %v382 = vpop.permute.xlu0 %381
    %vm384 = vcmp.ge.s32.totalorder %v57, 95
    %vm385 = vcmp.lt.s32.totalorder %v57, 123
    %vm386 = vmand %vm384, %vm385
    %387 = vst.msk [vmem:[#allocation2 + $0x7] sm:$0x1] %vm386, %v382
    %388 = vst [vmem:[#allocation1] sm:$0xff] %v66
    %s389 = scalar_lea.vmem [#allocation1], 3
    %v390 = vld [vmem:[%s389] ss:$9 sm:$0xff]
    %391 = vrot.lane.b32.xlu0 %v390, 125
    %v392 = vpop.permute.xlu0 %391
    %v393 = vrot.slane %v392, 7
    %vm394 = vcmask 1022976
    %v395 = vsel %vm394, %v393, %v392
    %vm397 = vcmp.ge.s32.totalorder %v57, 125
    %vm398 = vcmp.lt.s32.totalorder %v57, 153
    %vm399 = vmand %vm397, %vm398
    %400 = vst.msk [vmem:[#allocation2 + $0x7] sm:$0x3] %vm399, %v395
    %401 = vst [vmem:[#allocation1] sm:$0xff] %v66
    %s402 = scalar_lea.vmem [#allocation1], 4
    %v403 = vld [vmem:[%s402] ss:$9 sm:$0xff]
    %404 = vrot.lane.b32.xlu0 %v403, 27
    %v405 = vpop.permute.xlu0 %404
    %vm407 = vcmp.ge.s32.totalorder %v57, 27
    %vm408 = vcmp.lt.s32.totalorder %v57, 55
    %vm409 = vmand %vm407, %vm408
    %410 = vst.msk [vmem:[#allocation2 + $0x8] sm:$0x1] %vm409, %v405
    %411 = vst [vmem:[#allocation1] sm:$0xff] %v66
    %s412 = scalar_lea.vmem [#allocation1], 5
    %v413 = vld [vmem:[%s412] ss:$9 sm:$0xff]
    %414 = vrot.lane.b32.xlu0 %v413, 57
    %v415 = vpop.permute.xlu0 %414
    %vm417 = vcmp.ge.s32.totalorder %v57, 57
    %vm418 = vcmp.lt.s32.totalorder %v57, 85
    %vm419 = vmand %vm417, %vm418
    %420 = vst.msk [vmem:[#allocation2 + $0x8] sm:$0x1] %vm419, %v415
    %421 = vst [vmem:[#allocation1] sm:$0xff] %v66
    %s422 = scalar_lea.vmem [#allocation1], 6
    %v423 = vld [vmem:[%s422] ss:$9 sm:$0xff]
    %424 = vrot.lane.b32.xlu0 %v423, 87
    %v425 = vpop.permute.xlu0 %424
    %vm427 = vcmp.ge.s32.totalorder %v57, 87
    %vm428 = vcmp.lt.s32.totalorder %v57, 115
    %vm429 = vmand %vm427, %vm428
    %430 = vst.msk [vmem:[#allocation2 + $0x8] sm:$0x1] %vm429, %v425
    %431 = vst [vmem:[#allocation1] sm:$0xff] %v66
    %s432 = scalar_lea.vmem [#allocation1], 7
    %v433 = vld [vmem:[%s432] ss:$9 sm:$0xff]
    %434 = vrot.lane.b32.xlu0 %v433, 117
    %v435 = vpop.permute.xlu0 %434
    %v436 = vrot.slane %v435, 7
    %vm437 = vcmask 957440
    %v438 = vsel %vm437, %v436, %v435
    %vm440 = vcmp.ge.s32.totalorder %v57, 117
    %vm441 = vcmp.lt.s32.totalorder %v57, 145
    %vm442 = vmand %vm440, %vm441
    %443 = vst.msk [vmem:[#allocation2 + $0x8] sm:$0x3] %vm442, %v438
    %445 = vrot.lane.b32.xlu0 %v67, 19
    %v446 = vpop.permute.xlu0 %445
    %vm448 = vcmp.ge.s32.totalorder %v57, 19
    %vm449 = vcmp.lt.s32.totalorder %v57, 47
    %vm450 = vmand %vm448, %vm449
    %451 = vst.msk [vmem:[#allocation2 + $0x9] sm:$0x1] %vm450, %v446
    %452 = vst [vmem:[#allocation1] sm:$0xff] %v67
    %s453 = scalar_lea.vmem [#allocation1], 1
    %v454 = vld [vmem:[%s453] ss:$9 sm:$0xff]
    %455 = vrot.lane.b32.xlu0 %v454, 49
    %v456 = vpop.permute.xlu0 %455
    %vm458 = vcmp.ge.s32.totalorder %v57, 49
    %vm459 = vcmp.lt.s32.totalorder %v57, 77
    %vm460 = vmand %vm458, %vm459
    %461 = vst.msk [vmem:[#allocation2 + $0x9] sm:$0x1] %vm460, %v456
    %462 = vst [vmem:[#allocation1] sm:$0xff] %v67
    %s463 = scalar_lea.vmem [#allocation1], 2
    %v464 = vld [vmem:[%s463] ss:$9 sm:$0xff]
    %465 = vrot.lane.b32.xlu0 %v464, 79
    %v466 = vpop.permute.xlu0 %465
    %vm468 = vcmp.ge.s32.totalorder %v57, 79
    %vm469 = vcmp.lt.s32.totalorder %v57, 107
    %vm470 = vmand %vm468, %vm469
    %471 = vst.msk [vmem:[#allocation2 + $0x9] sm:$0x1] %vm470, %v466
    %472 = vst [vmem:[#allocation1] sm:$0xff] %v67
    %s473 = scalar_lea.vmem [#allocation1], 3
    %v474 = vld [vmem:[%s473] ss:$9 sm:$0xff]
    %475 = vrot.lane.b32.xlu0 %v474, 109
    %v476 = vpop.permute.xlu0 %475
    %v477 = vrot.slane %v476, 7
    %vm478 = vcmask 891904
    %v479 = vsel %vm478, %v477, %v476
    %vm481 = vcmp.ge.s32.totalorder %v57, 109
    %vm482 = vcmp.lt.s32.totalorder %v57, 137
    %vm483 = vmand %vm481, %vm482
    %484 = vst.msk [vmem:[#allocation2 + $0x9] sm:$0x3] %vm483, %v479
    %485 = vst [vmem:[#allocation1] sm:$0xff] %v67
    %s486 = scalar_lea.vmem [#allocation1], 4
    %v487 = vld [vmem:[%s486] ss:$9 sm:$0xff]
    %488 = vrot.lane.b32.xlu0 %v487, 11
    %v489 = vpop.permute.xlu0 %488
    %vm491 = vcmp.ge.s32.totalorder %v57, 11
    %vm492 = vcmp.lt.s32.totalorder %v57, 39
    %vm493 = vmand %vm491, %vm492
    %494 = vst.msk [vmem:[#allocation2 + $0xa] sm:$0x1] %vm493, %v489
    %495 = vst [vmem:[#allocation1] sm:$0xff] %v67
    %s496 = scalar_lea.vmem [#allocation1], 5
    %v497 = vld [vmem:[%s496] ss:$9 sm:$0xff]
    %498 = vrot.lane.b32.xlu0 %v497, 41
    %v499 = vpop.permute.xlu0 %498
    %vm501 = vcmp.ge.s32.totalorder %v57, 41
    %vm502 = vcmp.lt.s32.totalorder %v57, 69
    %vm503 = vmand %vm501, %vm502
    %504 = vst.msk [vmem:[#allocation2 + $0xa] sm:$0x1] %vm503, %v499
    %505 = vst [vmem:[#allocation1] sm:$0xff] %v67
    %s506 = scalar_lea.vmem [#allocation1], 6
    %v507 = vld [vmem:[%s506] ss:$9 sm:$0xff]
    %508 = vrot.lane.b32.xlu0 %v507, 71
    %v509 = vpop.permute.xlu0 %508
    %vm511 = vcmp.ge.s32.totalorder %v57, 71
    %vm512 = vcmp.lt.s32.totalorder %v57, 99
    %vm513 = vmand %vm511, %vm512
    %514 = vst.msk [vmem:[#allocation2 + $0xa] sm:$0x1] %vm513, %v509
    %515 = vst [vmem:[#allocation1] sm:$0xff] %v67
    %s516 = scalar_lea.vmem [#allocation1], 7
    %v517 = vld [vmem:[%s516] ss:$9 sm:$0xff]
    %518 = vrot.lane.b32.xlu0 %v517, 101
    %v519 = vpop.permute.xlu0 %518
    %v520 = vrot.slane %v519, 7
    %vm521 = vcmask 826368
    %v522 = vsel %vm521, %v520, %v519
    %vm524 = vcmp.ge.s32.totalorder %v57, 101
    %vm525 = vcmp.lt.s32.totalorder %v57, 129
    %vm526 = vmand %vm524, %vm525
    %527 = vst.msk [vmem:[#allocation2 + $0xa] sm:$0x3] %vm526, %v522
    %529 = vrot.lane.b32.xlu0 %v68, 3
    %v530 = vpop.permute.xlu0 %529
    %vm532 = vcmp.ge.s32.totalorder %v57, 3
    %vm533 = vcmp.lt.s32.totalorder %v57, 31
    %vm534 = vmand %vm532, %vm533
    %535 = vst.msk [vmem:[#allocation2 + $0xb] sm:$0x1] %vm534, %v530
    %536 = vst [vmem:[#allocation1] sm:$0xff] %v68
    %s537 = scalar_lea.vmem [#allocation1], 1
    %v538 = vld [vmem:[%s537] ss:$9 sm:$0xff]
    %539 = vrot.lane.b32.xlu0 %v538, 33
    %v540 = vpop.permute.xlu0 %539
    %vm542 = vcmp.ge.s32.totalorder %v57, 33
    %vm543 = vcmp.lt.s32.totalorder %v57, 61
    %vm544 = vmand %vm542, %vm543
    %545 = vst.msk [vmem:[#allocation2 + $0xb] sm:$0x1] %vm544, %v540
    %546 = vst [vmem:[#allocation1] sm:$0xff] %v68
    %s547 = scalar_lea.vmem [#allocation1], 2
    %v548 = vld [vmem:[%s547] ss:$9 sm:$0xff]
    %549 = vrot.lane.b32.xlu0 %v548, 63
    %v550 = vpop.permute.xlu0 %549
    %vm552 = vcmp.ge.s32.totalorder %v57, 63
    %vm553 = vcmp.lt.s32.totalorder %v57, 91
    %vm554 = vmand %vm552, %vm553
    %555 = vst.msk [vmem:[#allocation2 + $0xb] sm:$0x1] %vm554, %v550
    %556 = vst [vmem:[#allocation1] sm:$0xff] %v68
    %s557 = scalar_lea.vmem [#allocation1], 3
    %v558 = vld [vmem:[%s557] ss:$9 sm:$0xff]
    %559 = vrot.lane.b32.xlu0 %v558, 93
    %v560 = vpop.permute.xlu0 %559
    %vm562 = vcmp.ge.s32.totalorder %v57, 93
    %vm563 = vcmp.lt.s32.totalorder %v57, 121
    %vm564 = vmand %vm562, %vm563
    %565 = vst.msk [vmem:[#allocation2 + $0xb] sm:$0x1] %vm564, %v560
    %566 = vst [vmem:[#allocation1] sm:$0xff] %v68
    %s567 = scalar_lea.vmem [#allocation1], 4
    %v568 = vld [vmem:[%s567] ss:$9 sm:$0xff]
    %569 = vrot.lane.b32.xlu0 %v568, 123
    %v570 = vpop.permute.xlu0 %569
    %v571 = vrot.slane %v570, 7
    %vm572 = vcmask 1006592
    %v573 = vsel %vm572, %v571, %v570
    %vm575 = vcmp.ge.s32.totalorder %v57, 123
    %vm576 = vcmp.lt.s32.totalorder %v57, 151
    %vm577 = vmand %vm575, %vm576
    %578 = vst.msk [vmem:[#allocation2 + $0xb] sm:$0x3] %vm577, %v573
    %579 = vst [vmem:[#allocation1] sm:$0xff] %v68
    %s580 = scalar_lea.vmem [#allocation1], 5
    %v581 = vld [vmem:[%s580] ss:$9 sm:$0xff]
    %582 = vrot.lane.b32.xlu0 %v581, 25
    %v583 = vpop.permute.xlu0 %582
    %vm585 = vcmp.ge.s32.totalorder %v57, 25
    %vm586 = vcmp.lt.s32.totalorder %v57, 53
    %vm587 = vmand %vm585, %vm586
    %588 = vst.msk [vmem:[#allocation2 + $0xc] sm:$0x1] %vm587, %v583
    %589 = vst [vmem:[#allocation1] sm:$0xff] %v68
    %s590 = scalar_lea.vmem [#allocation1], 6
    %v591 = vld [vmem:[%s590] ss:$9 sm:$0xff]
    %592 = vrot.lane.b32.xlu0 %v591, 55
    %v593 = vpop.permute.xlu0 %592
    %vm595 = vcmp.ge.s32.totalorder %v57, 55
    %vm596 = vcmp.lt.s32.totalorder %v57, 83
    %vm597 = vmand %vm595, %vm596
    %598 = vst.msk [vmem:[#allocation2 + $0xc] sm:$0x1] %vm597, %v593
    %599 = vst [vmem:[#allocation1] sm:$0xff] %v68
    %s600 = scalar_lea.vmem [#allocation1], 7
    %v601 = vld [vmem:[%s600] ss:$9 sm:$0xff]
    %602 = vrot.lane.b32.xlu0 %v601, 85
    %v603 = vpop.permute.xlu0 %602
    %vm605 = vcmp.ge.s32.totalorder %v57, 85
    %vm606 = vcmp.lt.s32.totalorder %v57, 113
    %vm607 = vmand %vm605, %vm606
    %608 = vst.msk [vmem:[#allocation2 + $0xc] sm:$0x1] %vm607, %v603
    %610 = vrot.lane.b32.xlu0 %v69, 115
    %v611 = vpop.permute.xlu0 %610
    %v612 = vrot.slane %v611, 7
    %vm613 = vcmask 941056
    %v614 = vsel %vm613, %v612, %v611
    %vm616 = vcmp.ge.s32.totalorder %v57, 115
    %vm617 = vcmp.lt.s32.totalorder %v57, 143
    %vm618 = vmand %vm616, %vm617
    %619 = vst.msk [vmem:[#allocation2 + $0xc] sm:$0x3] %vm618, %v614
    %620 = vst [vmem:[#allocation1] sm:$0xff] %v69
    %s621 = scalar_lea.vmem [#allocation1], 1
    %v622 = vld [vmem:[%s621] ss:$9 sm:$0xff]
    %623 = vrot.lane.b32.xlu0 %v622, 17
    %v624 = vpop.permute.xlu0 %623
    %vm626 = vcmp.ge.s32.totalorder %v57, 17
    %vm627 = vcmp.lt.s32.totalorder %v57, 45
    %vm628 = vmand %vm626, %vm627
    %629 = vst.msk [vmem:[#allocation2 + $0xd] sm:$0x1] %vm628, %v624
    %630 = vst [vmem:[#allocation1] sm:$0xff] %v69
    %s631 = scalar_lea.vmem [#allocation1], 2
    %v632 = vld [vmem:[%s631] ss:$9 sm:$0xff]
    %633 = vrot.lane.b32.xlu0 %v632, 47
    %v634 = vpop.permute.xlu0 %633
    %vm636 = vcmp.ge.s32.totalorder %v57, 47
    %vm637 = vcmp.lt.s32.totalorder %v57, 75
    %vm638 = vmand %vm636, %vm637
    %639 = vst.msk [vmem:[#allocation2 + $0xd] sm:$0x1] %vm638, %v634
    %640 = vst [vmem:[#allocation1] sm:$0xff] %v69
    %s641 = scalar_lea.vmem [#allocation1], 3
    %v642 = vld [vmem:[%s641] ss:$9 sm:$0xff]
    %643 = vrot.lane.b32.xlu0 %v642, 77
    %v644 = vpop.permute.xlu0 %643
    %vm646 = vcmp.ge.s32.totalorder %v57, 77
    %vm647 = vcmp.lt.s32.totalorder %v57, 105
    %vm648 = vmand %vm646, %vm647
    %649 = vst.msk [vmem:[#allocation2 + $0xd] sm:$0x1] %vm648, %v644
    %v650 = vld [vmem:[#allocation2] sm:$0xff]
    %v651 = vld [vmem:[#allocation2 + $0x8] sm:$0x7f]
    %v652 = vld [vmem:[%s1] sm:$0xff]
    %654 = vset.pattern.permute.xlu0 0
    %655 = vperm.xlu0 %654, %v652
    %v656 = vpop.permute.xlu0 %655
    %v660 = vperm.slane %v650, 0
    %v661 = vperm.slane %v650, 1
    %v662 = vperm.slane %v650, 2
    %v663 = vperm.slane %v650, 3
    %v664 = vperm.slane %v650, 4
    %v665 = vperm.slane %v650, 5
    %v666 = vperm.slane %v650, 6
    %v667 = vperm.slane %v650, 7
    %v668 = vperm.slane %v651, 0
    %v669 = vperm.slane %v651, 1
    %v670 = vperm.slane %v651, 2
    %v671 = vperm.slane %v651, 3
    %v672 = vperm.slane %v651, 4
    %v673 = vperm.slane %v651, 5
    %v674 = vperm.slane %v651, 6
    %v690 = vmul.f32 %v656, %v660
    %v691 = vmul.f32 %v656, %v661
    %v692 = vmul.f32 %v656, %v662
    %v693 = vmul.f32 %v656, %v663
    %v694 = vmul.f32 %v656, %v664
    %v695 = vmul.f32 %v656, %v665
    %v696 = vmul.f32 %v656, %v666
    %v697 = vmul.f32 %v656, %v667
    %v698 = vmul.f32 %v656, %v668
    %v699 = vmul.f32 %v656, %v669
    %v700 = vmul.f32 %v656, %v670
    %v701 = vmul.f32 %v656, %v671
    %v702 = vmul.f32 %v656, %v672
    %v703 = vmul.f32 %v656, %v673
    %v704 = vmul.f32 %v656, %v674
    %705 = vset.pattern.permute.xlu0 1
    %706 = vperm.xlu0 %705, %v652
    %v707 = vpop.permute.xlu0 %706
    %v709 = vmul.f32 %v707, %v660
    %v710 = vmul.f32 %v707, %v661
    %v711 = vmul.f32 %v707, %v662
    %v712 = vmul.f32 %v707, %v663
    %v713 = vmul.f32 %v707, %v664
    %v714 = vmul.f32 %v707, %v665
    %v715 = vmul.f32 %v707, %v666
    %v716 = vmul.f32 %v707, %v667
    %v717 = vmul.f32 %v707, %v668
    %v718 = vmul.f32 %v707, %v669
    %v719 = vmul.f32 %v707, %v670
    %v720 = vmul.f32 %v707, %v671
    %v721 = vmul.f32 %v707, %v672
    %v722 = vmul.f32 %v707, %v673
    %v723 = vmul.f32 %v707, %v674
    %739 = vrot.lane.b32.xlu0 %v709, 127
    %v740 = vpop.permute.xlu0 %739
    %741 = vrot.lane.b32.xlu0 %v710, 127
    %v742 = vpop.permute.xlu0 %741
    %743 = vrot.lane.b32.xlu0 %v711, 127
    %v744 = vpop.permute.xlu0 %743
    %745 = vrot.lane.b32.xlu0 %v712, 127
    %v746 = vpop.permute.xlu0 %745
    %747 = vrot.lane.b32.xlu0 %v713, 127
    %v748 = vpop.permute.xlu0 %747
    %749 = vrot.lane.b32.xlu0 %v714, 127
    %v750 = vpop.permute.xlu0 %749
    %751 = vrot.lane.b32.xlu0 %v715, 127
    %v752 = vpop.permute.xlu0 %751
    %753 = vrot.lane.b32.xlu0 %v716, 127
    %v754 = vpop.permute.xlu0 %753
    %755 = vrot.lane.b32.xlu0 %v717, 127
    %v756 = vpop.permute.xlu0 %755
    %757 = vrot.lane.b32.xlu0 %v718, 127
    %v758 = vpop.permute.xlu0 %757
    %759 = vrot.lane.b32.xlu0 %v719, 127
    %v760 = vpop.permute.xlu0 %759
    %761 = vrot.lane.b32.xlu0 %v720, 127
    %v762 = vpop.permute.xlu0 %761
    %763 = vrot.lane.b32.xlu0 %v721, 127
    %v764 = vpop.permute.xlu0 %763
    %765 = vrot.lane.b32.xlu0 %v722, 127
    %v766 = vpop.permute.xlu0 %765
    %767 = vrot.lane.b32.xlu0 %v723, 127
    %v768 = vpop.permute.xlu0 %767
    %v769 = vsel %vm239, %v740, %v742
    %v770 = vsel %vm239, %v742, %v744
    %v771 = vsel %vm239, %v744, %v746
    %v772 = vsel %vm239, %v746, %v748
    %v773 = vsel %vm239, %v748, %v750
    %v774 = vsel %vm239, %v750, %v752
    %v775 = vsel %vm239, %v752, %v754
    %v776 = vsel %vm239, %v754, %v756
    %v777 = vsel %vm239, %v756, %v758
    %v778 = vsel %vm239, %v758, %v760
    %v779 = vsel %vm239, %v760, %v762
    %v780 = vsel %vm239, %v762, %v764
    %v781 = vsel %vm239, %v764, %v766
    %v782 = vsel %vm239, %v766, %v768
    %v798 = vadd.f32 %v690, %v769
    %v799 = vadd.f32 %v691, %v770
    %v800 = vadd.f32 %v692, %v771
    %v801 = vadd.f32 %v693, %v772
    %v802 = vadd.f32 %v694, %v773
    %v803 = vadd.f32 %v695, %v774
    %v804 = vadd.f32 %v696, %v775
    %v805 = vadd.f32 %v697, %v776
    %v806 = vadd.f32 %v698, %v777
    %v807 = vadd.f32 %v699, %v778
    %v808 = vadd.f32 %v700, %v779
    %v809 = vadd.f32 %v701, %v780
    %v810 = vadd.f32 %v702, %v781
    %v811 = vadd.f32 %v703, %v782
    %v812 = vadd.f32 %v704, %v768
    %813 = vset.pattern.permute.xlu0 2
    %814 = vperm.xlu0 %813, %v652
    %v815 = vpop.permute.xlu0 %814
    %v817 = vmul.f32 %v815, %v660
    %v818 = vmul.f32 %v815, %v661
    %v819 = vmul.f32 %v815, %v662
    %v820 = vmul.f32 %v815, %v663
    %v821 = vmul.f32 %v815, %v664
    %v822 = vmul.f32 %v815, %v665
    %v823 = vmul.f32 %v815, %v666
    %v824 = vmul.f32 %v815, %v667
    %v825 = vmul.f32 %v815, %v668
    %v826 = vmul.f32 %v815, %v669
    %v827 = vmul.f32 %v815, %v670
    %v828 = vmul.f32 %v815, %v671
    %v829 = vmul.f32 %v815, %v672
    %v830 = vmul.f32 %v815, %v673
    %v831 = vmul.f32 %v815, %v674
    %847 = vrot.lane.b32.xlu0 %v817, 126
    %v848 = vpop.permute.xlu0 %847
    %849 = vrot.lane.b32.xlu0 %v818, 126
    %v850 = vpop.permute.xlu0 %849
    %851 = vrot.lane.b32.xlu0 %v819, 126
    %v852 = vpop.permute.xlu0 %851
    %853 = vrot.lane.b32.xlu0 %v820, 126
    %v854 = vpop.permute.xlu0 %853
    %855 = vrot.lane.b32.xlu0 %v821, 126
    %v856 = vpop.permute.xlu0 %855
    %857 = vrot.lane.b32.xlu0 %v822, 126
    %v858 = vpop.permute.xlu0 %857
    %859 = vrot.lane.b32.xlu0 %v823, 126
    %v860 = vpop.permute.xlu0 %859
    %861 = vrot.lane.b32.xlu0 %v824, 126
    %v862 = vpop.permute.xlu0 %861
    %863 = vrot.lane.b32.xlu0 %v825, 126
    %v864 = vpop.permute.xlu0 %863
    %865 = vrot.lane.b32.xlu0 %v826, 126
    %v866 = vpop.permute.xlu0 %865
    %867 = vrot.lane.b32.xlu0 %v827, 126
    %v868 = vpop.permute.xlu0 %867
    %869 = vrot.lane.b32.xlu0 %v828, 126
    %v870 = vpop.permute.xlu0 %869
    %871 = vrot.lane.b32.xlu0 %v829, 126
    %v872 = vpop.permute.xlu0 %871
    %873 = vrot.lane.b32.xlu0 %v830, 126
    %v874 = vpop.permute.xlu0 %873
    %875 = vrot.lane.b32.xlu0 %v831, 126
    %v876 = vpop.permute.xlu0 %875
    %vm877 = vcmask 1031168
    %v878 = vsel %vm877, %v848, %v850
    %v879 = vsel %vm877, %v850, %v852
    %v880 = vsel %vm877, %v852, %v854
    %v881 = vsel %vm877, %v854, %v856
    %v882 = vsel %vm877, %v856, %v858
    %v883 = vsel %vm877, %v858, %v860
    %v884 = vsel %vm877, %v860, %v862
    %v885 = vsel %vm877, %v862, %v864
    %v886 = vsel %vm877, %v864, %v866
    %v887 = vsel %vm877, %v866, %v868
    %v888 = vsel %vm877, %v868, %v870
    %v889 = vsel %vm877, %v870, %v872
    %v890 = vsel %vm877, %v872, %v874
    %v891 = vsel %vm877, %v874, %v876
    %v907 = vadd.f32 %v798, %v878
    %v908 = vadd.f32 %v799, %v879
    %v909 = vadd.f32 %v800, %v880
    %v910 = vadd.f32 %v801, %v881
    %v911 = vadd.f32 %v802, %v882
    %v912 = vadd.f32 %v803, %v883
    %v913 = vadd.f32 %v804, %v884
    %v914 = vadd.f32 %v805, %v885
    %v915 = vadd.f32 %v806, %v886
    %v916 = vadd.f32 %v807, %v887
    %v917 = vadd.f32 %v808, %v888
    %v918 = vadd.f32 %v809, %v889
    %v919 = vadd.f32 %v810, %v890
    %v920 = vadd.f32 %v811, %v891
    %v921 = vadd.f32 %v812, %v876
    %922 = vset.pattern.permute.xlu0 3
    %923 = vperm.xlu0 %922, %v652
    %v924 = vpop.permute.xlu0 %923
    %v926 = vmul.f32 %v924, %v660
    %v927 = vmul.f32 %v924, %v661
    %v928 = vmul.f32 %v924, %v662
    %v929 = vmul.f32 %v924, %v663
    %v930 = vmul.f32 %v924, %v664
    %v931 = vmul.f32 %v924, %v665
    %v932 = vmul.f32 %v924, %v666
    %v933 = vmul.f32 %v924, %v667
    %v934 = vmul.f32 %v924, %v668
    %v935 = vmul.f32 %v924, %v669
    %v936 = vmul.f32 %v924, %v670
    %v937 = vmul.f32 %v924, %v671
    %v938 = vmul.f32 %v924, %v672
    %v939 = vmul.f32 %v924, %v673
    %v940 = vmul.f32 %v924, %v674
    %956 = vrot.lane.b32.xlu0 %v926, 98
    %v957 = vpop.permute.xlu0 %956
    %958 = vrot.lane.b32.xlu0 %v927, 98
    %v959 = vpop.permute.xlu0 %958
    %960 = vrot.lane.b32.xlu0 %v928, 98
    %v961 = vpop.permute.xlu0 %960
    %962 = vrot.lane.b32.xlu0 %v929, 98
    %v963 = vpop.permute.xlu0 %962
    %964 = vrot.lane.b32.xlu0 %v930, 98
    %v965 = vpop.permute.xlu0 %964
    %966 = vrot.lane.b32.xlu0 %v931, 98
    %v967 = vpop.permute.xlu0 %966
    %968 = vrot.lane.b32.xlu0 %v932, 98
    %v969 = vpop.permute.xlu0 %968
    %970 = vrot.lane.b32.xlu0 %v933, 98
    %v971 = vpop.permute.xlu0 %970
    %972 = vrot.lane.b32.xlu0 %v934, 98
    %v973 = vpop.permute.xlu0 %972
    %974 = vrot.lane.b32.xlu0 %v935, 98
    %v975 = vpop.permute.xlu0 %974
    %976 = vrot.lane.b32.xlu0 %v936, 98
    %v977 = vpop.permute.xlu0 %976
    %978 = vrot.lane.b32.xlu0 %v937, 98
    %v979 = vpop.permute.xlu0 %978
    %980 = vrot.lane.b32.xlu0 %v938, 98
    %v981 = vpop.permute.xlu0 %980
    %982 = vrot.lane.b32.xlu0 %v939, 98
    %v983 = vpop.permute.xlu0 %982
    %984 = vrot.lane.b32.xlu0 %v940, 98
    %v985 = vpop.permute.xlu0 %984
    %vm986 = vcmask 801792
    %v987 = vsel %vm986, %v957, %v959
    %v988 = vsel %vm986, %v959, %v961
    %v989 = vsel %vm986, %v961, %v963
    %v990 = vsel %vm986, %v963, %v965
    %v991 = vsel %vm986, %v965, %v967
    %v992 = vsel %vm986, %v967, %v969
    %v993 = vsel %vm986, %v969, %v971
    %v994 = vsel %vm986, %v971, %v973
    %v995 = vsel %vm986, %v973, %v975
    %v996 = vsel %vm986, %v975, %v977
    %v997 = vsel %vm986, %v977, %v979
    %v998 = vsel %vm986, %v979, %v981
    %v999 = vsel %vm986, %v981, %v983
    %v1000 = vsel %vm986, %v983, %v985
    %v1016 = vadd.f32 %v907, %v987
    %v1017 = vadd.f32 %v908, %v988
    %v1018 = vadd.f32 %v909, %v989
    %v1019 = vadd.f32 %v910, %v990
    %v1020 = vadd.f32 %v911, %v991
    %v1021 = vadd.f32 %v912, %v992
    %v1022 = vadd.f32 %v913, %v993
    %v1023 = vadd.f32 %v914, %v994
    %v1024 = vadd.f32 %v915, %v995
    %v1025 = vadd.f32 %v916, %v996
    %v1026 = vadd.f32 %v917, %v997
    %v1027 = vadd.f32 %v918, %v998
    %v1028 = vadd.f32 %v919, %v999
    %v1029 = vadd.f32 %v920, %v1000
    %v1030 = vadd.f32 %v921, %v985
    %1031 = vset.pattern.permute.xlu0 4
    %1032 = vperm.xlu0 %1031, %v652
    %v1033 = vpop.permute.xlu0 %1032
    %v1035 = vmul.f32 %v1033, %v660
    %v1036 = vmul.f32 %v1033, %v661
    %v1037 = vmul.f32 %v1033, %v662
    %v1038 = vmul.f32 %v1033, %v663
    %v1039 = vmul.f32 %v1033, %v664
    %v1040 = vmul.f32 %v1033, %v665
    %v1041 = vmul.f32 %v1033, %v666
    %v1042 = vmul.f32 %v1033, %v667
    %v1043 = vmul.f32 %v1033, %v668
    %v1044 = vmul.f32 %v1033, %v669
    %v1045 = vmul.f32 %v1033, %v670
    %v1046 = vmul.f32 %v1033, %v671
    %v1047 = vmul.f32 %v1033, %v672
    %v1048 = vmul.f32 %v1033, %v673
    %v1049 = vmul.f32 %v1033, %v674
    %1065 = vrot.lane.b32.xlu0 %v1035, 97
    %v1066 = vpop.permute.xlu0 %1065
    %1067 = vrot.lane.b32.xlu0 %v1036, 97
    %v1068 = vpop.permute.xlu0 %1067
    %1069 = vrot.lane.b32.xlu0 %v1037, 97
    %v1070 = vpop.permute.xlu0 %1069
    %1071 = vrot.lane.b32.xlu0 %v1038, 97
    %v1072 = vpop.permute.xlu0 %1071
    %1073 = vrot.lane.b32.xlu0 %v1039, 97
    %v1074 = vpop.permute.xlu0 %1073
    %1075 = vrot.lane.b32.xlu0 %v1040, 97
    %v1076 = vpop.permute.xlu0 %1075
    %1077 = vrot.lane.b32.xlu0 %v1041, 97
    %v1078 = vpop.permute.xlu0 %1077
    %1079 = vrot.lane.b32.xlu0 %v1042, 97
    %v1080 = vpop.permute.xlu0 %1079
    %1081 = vrot.lane.b32.xlu0 %v1043, 97
    %v1082 = vpop.permute.xlu0 %1081
    %1083 = vrot.lane.b32.xlu0 %v1044, 97
    %v1084 = vpop.permute.xlu0 %1083
    %1085 = vrot.lane.b32.xlu0 %v1045, 97
    %v1086 = vpop.permute.xlu0 %1085
    %1087 = vrot.lane.b32.xlu0 %v1046, 97
    %v1088 = vpop.permute.xlu0 %1087
    %1089 = vrot.lane.b32.xlu0 %v1047, 97
    %v1090 = vpop.permute.xlu0 %1089
    %1091 = vrot.lane.b32.xlu0 %v1048, 97
    %v1092 = vpop.permute.xlu0 %1091
    %1093 = vrot.lane.b32.xlu0 %v1049, 97
    %v1094 = vpop.permute.xlu0 %1093
    %vm1095 = vcmask 793600
    %v1096 = vsel %vm1095, %v1066, %v1068
    %v1097 = vsel %vm1095, %v1068, %v1070
    %v1098 = vsel %vm1095, %v1070, %v1072
    %v1099 = vsel %vm1095, %v1072, %v1074
    %v1100 = vsel %vm1095, %v1074, %v1076
    %v1101 = vsel %vm1095, %v1076, %v1078
    %v1102 = vsel %vm1095, %v1078, %v1080
    %v1103 = vsel %vm1095, %v1080, %v1082
    %v1104 = vsel %vm1095, %v1082, %v1084
    %v1105 = vsel %vm1095, %v1084, %v1086
    %v1106 = vsel %vm1095, %v1086, %v1088
    %v1107 = vsel %vm1095, %v1088, %v1090
    %v1108 = vsel %vm1095, %v1090, %v1092
    %v1109 = vsel %vm1095, %v1092, %v1094
    %v1125 = vadd.f32 %v1016, %v1096
    %v1126 = vadd.f32 %v1017, %v1097
    %v1127 = vadd.f32 %v1018, %v1098
    %v1128 = vadd.f32 %v1019, %v1099
    %v1129 = vadd.f32 %v1020, %v1100
    %v1130 = vadd.f32 %v1021, %v1101
    %v1131 = vadd.f32 %v1022, %v1102
    %v1132 = vadd.f32 %v1023, %v1103
    %v1133 = vadd.f32 %v1024, %v1104
    %v1134 = vadd.f32 %v1025, %v1105
    %v1135 = vadd.f32 %v1026, %v1106
    %v1136 = vadd.f32 %v1027, %v1107
    %v1137 = vadd.f32 %v1028, %v1108
    %v1138 = vadd.f32 %v1029, %v1109
    %v1139 = vadd.f32 %v1030, %v1094
    %1140 = vset.pattern.permute.xlu0 5
    %1141 = vperm.xlu0 %1140, %v652
    %v1142 = vpop.permute.xlu0 %1141
    %v1144 = vmul.f32 %v1142, %v660
    %v1145 = vmul.f32 %v1142, %v661
    %v1146 = vmul.f32 %v1142, %v662
    %v1147 = vmul.f32 %v1142, %v663
    %v1148 = vmul.f32 %v1142, %v664
    %v1149 = vmul.f32 %v1142, %v665
    %v1150 = vmul.f32 %v1142, %v666
    %v1151 = vmul.f32 %v1142, %v667
    %v1152 = vmul.f32 %v1142, %v668
    %v1153 = vmul.f32 %v1142, %v669
    %v1154 = vmul.f32 %v1142, %v670
    %v1155 = vmul.f32 %v1142, %v671
    %v1156 = vmul.f32 %v1142, %v672
    %v1157 = vmul.f32 %v1142, %v673
    %v1158 = vmul.f32 %v1142, %v674
    %1174 = vrot.lane.b32.xlu0 %v1144, 96
    %v1175 = vpop.permute.xlu0 %1174
    %1176 = vrot.lane.b32.xlu0 %v1145, 96
    %v1177 = vpop.permute.xlu0 %1176
    %1178 = vrot.lane.b32.xlu0 %v1146, 96
    %v1179 = vpop.permute.xlu0 %1178
    %1180 = vrot.lane.b32.xlu0 %v1147, 96
    %v1181 = vpop.permute.xlu0 %1180
    %1182 = vrot.lane.b32.xlu0 %v1148, 96
    %v1183 = vpop.permute.xlu0 %1182
    %1184 = vrot.lane.b32.xlu0 %v1149, 96
    %v1185 = vpop.permute.xlu0 %1184
    %1186 = vrot.lane.b32.xlu0 %v1150, 96
    %v1187 = vpop.permute.xlu0 %1186
    %1188 = vrot.lane.b32.xlu0 %v1151, 96
    %v1189 = vpop.permute.xlu0 %1188
    %1190 = vrot.lane.b32.xlu0 %v1152, 96
    %v1191 = vpop.permute.xlu0 %1190
    %1192 = vrot.lane.b32.xlu0 %v1153, 96
    %v1193 = vpop.permute.xlu0 %1192
    %1194 = vrot.lane.b32.xlu0 %v1154, 96
    %v1195 = vpop.permute.xlu0 %1194
    %1196 = vrot.lane.b32.xlu0 %v1155, 96
    %v1197 = vpop.permute.xlu0 %1196
    %1198 = vrot.lane.b32.xlu0 %v1156, 96
    %v1199 = vpop.permute.xlu0 %1198
    %1200 = vrot.lane.b32.xlu0 %v1157, 96
    %v1201 = vpop.permute.xlu0 %1200
    %1202 = vrot.lane.b32.xlu0 %v1158, 96
    %v1203 = vpop.permute.xlu0 %1202
    %vm1204 = vcmask 785408
    %v1205 = vsel %vm1204, %v1175, %v1177
    %v1206 = vsel %vm1204, %v1177, %v1179
    %v1207 = vsel %vm1204, %v1179, %v1181
    %v1208 = vsel %vm1204, %v1181, %v1183
    %v1209 = vsel %vm1204, %v1183, %v1185
    %v1210 = vsel %vm1204, %v1185, %v1187
    %v1211 = vsel %vm1204, %v1187, %v1189
    %v1212 = vsel %vm1204, %v1189, %v1191
    %v1213 = vsel %vm1204, %v1191, %v1193
    %v1214 = vsel %vm1204, %v1193, %v1195
    %v1215 = vsel %vm1204, %v1195, %v1197
    %v1216 = vsel %vm1204, %v1197, %v1199
    %v1217 = vsel %vm1204, %v1199, %v1201
    %v1218 = vsel %vm1204, %v1201, %v1203
    %v1234 = vadd.f32 %v1125, %v1205
    %v1235 = vadd.f32 %v1126, %v1206
    %v1236 = vadd.f32 %v1127, %v1207
    %v1237 = vadd.f32 %v1128, %v1208
    %v1238 = vadd.f32 %v1129, %v1209
    %v1239 = vadd.f32 %v1130, %v1210
    %v1240 = vadd.f32 %v1131, %v1211
    %v1241 = vadd.f32 %v1132, %v1212
    %v1242 = vadd.f32 %v1133, %v1213
    %v1243 = vadd.f32 %v1134, %v1214
    %v1244 = vadd.f32 %v1135, %v1215
    %v1245 = vadd.f32 %v1136, %v1216
    %v1246 = vadd.f32 %v1137, %v1217
    %v1247 = vadd.f32 %v1138, %v1218
    %v1248 = vadd.f32 %v1139, %v1203
    %1249 = vset.pattern.permute.xlu0 6
    %1250 = vperm.xlu0 %1249, %v652
    %v1251 = vpop.permute.xlu0 %1250
    %v1253 = vmul.f32 %v1251, %v660
    %v1254 = vmul.f32 %v1251, %v661
    %v1255 = vmul.f32 %v1251, %v662
    %v1256 = vmul.f32 %v1251, %v663
    %v1257 = vmul.f32 %v1251, %v664
    %v1258 = vmul.f32 %v1251, %v665
    %v1259 = vmul.f32 %v1251, %v666
    %v1260 = vmul.f32 %v1251, %v667
    %v1261 = vmul.f32 %v1251, %v668
    %v1262 = vmul.f32 %v1251, %v669
    %v1263 = vmul.f32 %v1251, %v670
    %v1264 = vmul.f32 %v1251, %v671
    %v1265 = vmul.f32 %v1251, %v672
    %v1266 = vmul.f32 %v1251, %v673
    %v1267 = vmul.f32 %v1251, %v674
    %1283 = vrot.lane.b32.xlu0 %v1253, 68
    %v1284 = vpop.permute.xlu0 %1283
    %1285 = vrot.lane.b32.xlu0 %v1254, 68
    %v1286 = vpop.permute.xlu0 %1285
    %1287 = vrot.lane.b32.xlu0 %v1255, 68
    %v1288 = vpop.permute.xlu0 %1287
    %1289 = vrot.lane.b32.xlu0 %v1256, 68
    %v1290 = vpop.permute.xlu0 %1289
    %1291 = vrot.lane.b32.xlu0 %v1257, 68
    %v1292 = vpop.permute.xlu0 %1291
    %1293 = vrot.lane.b32.xlu0 %v1258, 68
    %v1294 = vpop.permute.xlu0 %1293
    %1295 = vrot.lane.b32.xlu0 %v1259, 68
    %v1296 = vpop.permute.xlu0 %1295
    %1297 = vrot.lane.b32.xlu0 %v1260, 68
    %v1298 = vpop.permute.xlu0 %1297
    %1299 = vrot.lane.b32.xlu0 %v1261, 68
    %v1300 = vpop.permute.xlu0 %1299
    %1301 = vrot.lane.b32.xlu0 %v1262, 68
    %v1302 = vpop.permute.xlu0 %1301
    %1303 = vrot.lane.b32.xlu0 %v1263, 68
    %v1304 = vpop.permute.xlu0 %1303
    %1305 = vrot.lane.b32.xlu0 %v1264, 68
    %v1306 = vpop.permute.xlu0 %1305
    %1307 = vrot.lane.b32.xlu0 %v1265, 68
    %v1308 = vpop.permute.xlu0 %1307
    %1309 = vrot.lane.b32.xlu0 %v1266, 68
    %v1310 = vpop.permute.xlu0 %1309
    %1311 = vrot.lane.b32.xlu0 %v1267, 68
    %v1312 = vpop.permute.xlu0 %1311
    %vm1313 = vcmask 556032
    %v1314 = vsel %vm1313, %v1284, %v1286
    %v1315 = vsel %vm1313, %v1286, %v1288
    %v1316 = vsel %vm1313, %v1288, %v1290
    %v1317 = vsel %vm1313, %v1290, %v1292
    %v1318 = vsel %vm1313, %v1292, %v1294
    %v1319 = vsel %vm1313, %v1294, %v1296
    %v1320 = vsel %vm1313, %v1296, %v1298
    %v1321 = vsel %vm1313, %v1298, %v1300
    %v1322 = vsel %vm1313, %v1300, %v1302
    %v1323 = vsel %vm1313, %v1302, %v1304
    %v1324 = vsel %vm1313, %v1304, %v1306
    %v1325 = vsel %vm1313, %v1306, %v1308
    %v1326 = vsel %vm1313, %v1308, %v1310
    %v1327 = vsel %vm1313, %v1310, %v1312
    %v1343 = vadd.f32 %v1234, %v1314
    %v1344 = vadd.f32 %v1235, %v1315
    %v1345 = vadd.f32 %v1236, %v1316
    %v1346 = vadd.f32 %v1237, %v1317
    %v1347 = vadd.f32 %v1238, %v1318
    %v1348 = vadd.f32 %v1239, %v1319
    %v1349 = vadd.f32 %v1240, %v1320
    %v1350 = vadd.f32 %v1241, %v1321
    %v1351 = vadd.f32 %v1242, %v1322
    %v1352 = vadd.f32 %v1243, %v1323
    %v1353 = vadd.f32 %v1244, %v1324
    %v1354 = vadd.f32 %v1245, %v1325
    %v1355 = vadd.f32 %v1246, %v1326
    %v1356 = vadd.f32 %v1247, %v1327
    %v1357 = vadd.f32 %v1248, %v1312
    %1358 = vset.pattern.permute.xlu0 7
    %1359 = vperm.xlu0 %1358, %v652
    %v1360 = vpop.permute.xlu0 %1359
    %v1362 = vmul.f32 %v1360, %v660
    %v1363 = vmul.f32 %v1360, %v661
    %v1364 = vmul.f32 %v1360, %v662
    %v1365 = vmul.f32 %v1360, %v663
    %v1366 = vmul.f32 %v1360, %v664
    %v1367 = vmul.f32 %v1360, %v665
    %v1368 = vmul.f32 %v1360, %v666
    %v1369 = vmul.f32 %v1360, %v667
    %v1370 = vmul.f32 %v1360, %v668
    %v1371 = vmul.f32 %v1360, %v669
    %v1372 = vmul.f32 %v1360, %v670
    %v1373 = vmul.f32 %v1360, %v671
    %v1374 = vmul.f32 %v1360, %v672
    %v1375 = vmul.f32 %v1360, %v673
    %v1376 = vmul.f32 %v1360, %v674
    %1392 = vrot.lane.b32.xlu0 %v1362, 67
    %v1393 = vpop.permute.xlu0 %1392
    %1394 = vrot.lane.b32.xlu0 %v1363, 67
    %v1395 = vpop.permute.xlu0 %1394
    %1396 = vrot.lane.b32.xlu0 %v1364, 67
    %v1397 = vpop.permute.xlu0 %1396
    %1398 = vrot.lane.b32.xlu0 %v1365, 67
    %v1399 = vpop.permute.xlu0 %1398
    %1400 = vrot.lane.b32.xlu0 %v1366, 67
    %v1401 = vpop.permute.xlu0 %1400
    %1402 = vrot.lane.b32.xlu0 %v1367, 67
    %v1403 = vpop.permute.xlu0 %1402
    %1404 = vrot.lane.b32.xlu0 %v1368, 67
    %v1405 = vpop.permute.xlu0 %1404
    %1406 = vrot.lane.b32.xlu0 %v1369, 67
    %v1407 = vpop.permute.xlu0 %1406
    %1408 = vrot.lane.b32.xlu0 %v1370, 67
    %v1409 = vpop.permute.xlu0 %1408
    %1410 = vrot.lane.b32.xlu0 %v1371, 67
    %v1411 = vpop.permute.xlu0 %1410
    %1412 = vrot.lane.b32.xlu0 %v1372, 67
    %v1413 = vpop.permute.xlu0 %1412
    %1414 = vrot.lane.b32.xlu0 %v1373, 67
    %v1415 = vpop.permute.xlu0 %1414
    %1416 = vrot.lane.b32.xlu0 %v1374, 67
    %v1417 = vpop.permute.xlu0 %1416
    %1418 = vrot.lane.b32.xlu0 %v1375, 67
    %v1419 = vpop.permute.xlu0 %1418
    %1420 = vrot.lane.b32.xlu0 %v1376, 67
    %v1421 = vpop.permute.xlu0 %1420
    %vm1422 = vcmask 547840
    %v1423 = vsel %vm1422, %v1393, %v1395
    %v1424 = vsel %vm1422, %v1395, %v1397
    %v1425 = vsel %vm1422, %v1397, %v1399
    %v1426 = vsel %vm1422, %v1399, %v1401
    %v1427 = vsel %vm1422, %v1401, %v1403
    %v1428 = vsel %vm1422, %v1403, %v1405
    %v1429 = vsel %vm1422, %v1405, %v1407
    %v1430 = vsel %vm1422, %v1407, %v1409
    %v1431 = vsel %vm1422, %v1409, %v1411
    %v1432 = vsel %vm1422, %v1411, %v1413
    %v1433 = vsel %vm1422, %v1413, %v1415
    %v1434 = vsel %vm1422, %v1415, %v1417
    %v1435 = vsel %vm1422, %v1417, %v1419
    %v1436 = vsel %vm1422, %v1419, %v1421
    %v1452 = vadd.f32 %v1343, %v1423
    %v1453 = vadd.f32 %v1344, %v1424
    %v1454 = vadd.f32 %v1345, %v1425
    %v1455 = vadd.f32 %v1346, %v1426
    %v1456 = vadd.f32 %v1347, %v1427
    %v1457 = vadd.f32 %v1348, %v1428
    %v1458 = vadd.f32 %v1349, %v1429
    %v1459 = vadd.f32 %v1350, %v1430
    %v1460 = vadd.f32 %v1351, %v1431
    %v1461 = vadd.f32 %v1352, %v1432
    %v1462 = vadd.f32 %v1353, %v1433
    %v1463 = vadd.f32 %v1354, %v1434
    %v1464 = vadd.f32 %v1355, %v1435
    %v1465 = vadd.f32 %v1356, %v1436
    %v1466 = vadd.f32 %v1357, %v1421
    %1467 = vset.pattern.permute.xlu0 8
    %1468 = vperm.xlu0 %1467, %v652
    %v1469 = vpop.permute.xlu0 %1468
    %v1471 = vmul.f32 %v1469, %v660
    %v1472 = vmul.f32 %v1469, %v661
    %v1473 = vmul.f32 %v1469, %v662
    %v1474 = vmul.f32 %v1469, %v663
    %v1475 = vmul.f32 %v1469, %v664
    %v1476 = vmul.f32 %v1469, %v665
    %v1477 = vmul.f32 %v1469, %v666
    %v1478 = vmul.f32 %v1469, %v667
    %v1479 = vmul.f32 %v1469, %v668
    %v1480 = vmul.f32 %v1469, %v669
    %v1481 = vmul.f32 %v1469, %v670
    %v1482 = vmul.f32 %v1469, %v671
    %v1483 = vmul.f32 %v1469, %v672
    %v1484 = vmul.f32 %v1469, %v673
    %v1485 = vmul.f32 %v1469, %v674
    %1501 = vrot.lane.b32.xlu0 %v1471, 66
    %v1502 = vpop.permute.xlu0 %1501
    %1503 = vrot.lane.b32.xlu0 %v1472, 66
    %v1504 = vpop.permute.xlu0 %1503
    %1505 = vrot.lane.b32.xlu0 %v1473, 66
    %v1506 = vpop.permute.xlu0 %1505
    %1507 = vrot.lane.b32.xlu0 %v1474, 66
    %v1508 = vpop.permute.xlu0 %1507
    %1509 = vrot.lane.b32.xlu0 %v1475, 66
    %v1510 = vpop.permute.xlu0 %1509
    %1511 = vrot.lane.b32.xlu0 %v1476, 66
    %v1512 = vpop.permute.xlu0 %1511
    %1513 = vrot.lane.b32.xlu0 %v1477, 66
    %v1514 = vpop.permute.xlu0 %1513
    %1515 = vrot.lane.b32.xlu0 %v1478, 66
    %v1516 = vpop.permute.xlu0 %1515
    %1517 = vrot.lane.b32.xlu0 %v1479, 66
    %v1518 = vpop.permute.xlu0 %1517
    %1519 = vrot.lane.b32.xlu0 %v1480, 66
    %v1520 = vpop.permute.xlu0 %1519
    %1521 = vrot.lane.b32.xlu0 %v1481, 66
    %v1522 = vpop.permute.xlu0 %1521
    %1523 = vrot.lane.b32.xlu0 %v1482, 66
    %v1524 = vpop.permute.xlu0 %1523
    %1525 = vrot.lane.b32.xlu0 %v1483, 66
    %v1526 = vpop.permute.xlu0 %1525
    %1527 = vrot.lane.b32.xlu0 %v1484, 66
    %v1528 = vpop.permute.xlu0 %1527
    %1529 = vrot.lane.b32.xlu0 %v1485, 66
    %v1530 = vpop.permute.xlu0 %1529
    %vm1531 = vcmask 539648
    %v1532 = vsel %vm1531, %v1502, %v1504
    %v1533 = vsel %vm1531, %v1504, %v1506
    %v1534 = vsel %vm1531, %v1506, %v1508
    %v1535 = vsel %vm1531, %v1508, %v1510
    %v1536 = vsel %vm1531, %v1510, %v1512
    %v1537 = vsel %vm1531, %v1512, %v1514
    %v1538 = vsel %vm1531, %v1514, %v1516
    %v1539 = vsel %vm1531, %v1516, %v1518
    %v1540 = vsel %vm1531, %v1518, %v1520
    %v1541 = vsel %vm1531, %v1520, %v1522
    %v1542 = vsel %vm1531, %v1522, %v1524
    %v1543 = vsel %vm1531, %v1524, %v1526
    %v1544 = vsel %vm1531, %v1526, %v1528
    %v1545 = vsel %vm1531, %v1528, %v1530
    %v1561 = vadd.f32 %v1452, %v1532
    %v1562 = vadd.f32 %v1453, %v1533
    %v1563 = vadd.f32 %v1454, %v1534
    %v1564 = vadd.f32 %v1455, %v1535
    %v1565 = vadd.f32 %v1456, %v1536
    %v1566 = vadd.f32 %v1457, %v1537
    %v1567 = vadd.f32 %v1458, %v1538
    %v1568 = vadd.f32 %v1459, %v1539
    %v1569 = vadd.f32 %v1460, %v1540
    %v1570 = vadd.f32 %v1461, %v1541
    %v1571 = vadd.f32 %v1462, %v1542
    %v1572 = vadd.f32 %v1463, %v1543
    %v1573 = vadd.f32 %v1464, %v1544
    %v1574 = vadd.f32 %v1465, %v1545
    %v1575 = vadd.f32 %v1466, %v1530
    %1591 = vrot.lane.b32.xlu0 %v1561, 127
    %v1592 = vpop.permute.xlu0 %1591
    %1593 = vrot.lane.b32.xlu0 %v1562, 127
    %v1594 = vpop.permute.xlu0 %1593
    %1595 = vrot.lane.b32.xlu0 %v1563, 127
    %v1596 = vpop.permute.xlu0 %1595
    %1597 = vrot.lane.b32.xlu0 %v1564, 127
    %v1598 = vpop.permute.xlu0 %1597
    %1599 = vrot.lane.b32.xlu0 %v1565, 127
    %v1600 = vpop.permute.xlu0 %1599
    %1601 = vrot.lane.b32.xlu0 %v1566, 127
    %v1602 = vpop.permute.xlu0 %1601
    %1603 = vrot.lane.b32.xlu0 %v1567, 127
    %v1604 = vpop.permute.xlu0 %1603
    %1605 = vrot.lane.b32.xlu0 %v1568, 127
    %v1606 = vpop.permute.xlu0 %1605
    %1607 = vrot.lane.b32.xlu0 %v1569, 127
    %v1608 = vpop.permute.xlu0 %1607
    %1609 = vrot.lane.b32.xlu0 %v1570, 127
    %v1610 = vpop.permute.xlu0 %1609
    %1611 = vrot.lane.b32.xlu0 %v1571, 127
    %v1612 = vpop.permute.xlu0 %1611
    %1613 = vrot.lane.b32.xlu0 %v1572, 127
    %v1614 = vpop.permute.xlu0 %1613
    %1615 = vrot.lane.b32.xlu0 %v1573, 127
    %v1616 = vpop.permute.xlu0 %1615
    %1617 = vrot.lane.b32.xlu0 %v1574, 127
    %v1618 = vpop.permute.xlu0 %1617
    %1619 = vrot.lane.b32.xlu0 %v1575, 127
    %v1620 = vpop.permute.xlu0 %1619
    %v1621 = vsel %vm239, %v1592, %v1594
    %v1622 = vsel %vm239, %v1594, %v1596
    %v1623 = vsel %vm239, %v1596, %v1598
    %v1624 = vsel %vm239, %v1598, %v1600
    %v1625 = vsel %vm239, %v1600, %v1602
    %v1626 = vsel %vm239, %v1602, %v1604
    %v1627 = vsel %vm239, %v1604, %v1606
    %v1628 = vsel %vm239, %v1606, %v1608
    %v1629 = vsel %vm239, %v1608, %v1610
    %v1630 = vsel %vm239, %v1610, %v1612
    %v1631 = vsel %vm239, %v1612, %v1614
    %v1632 = vsel %vm239, %v1614, %v1616
    %v1633 = vsel %vm239, %v1616, %v1618
    %v1634 = vsel %vm239, %v1618, %v1620
    %v1650 = vmax.f32 %v1561, %v1621
    %v1651 = vmax.f32 %v1562, %v1622
    %v1652 = vmax.f32 %v1563, %v1623
    %v1653 = vmax.f32 %v1564, %v1624
    %v1654 = vmax.f32 %v1565, %v1625
    %v1655 = vmax.f32 %v1566, %v1626
    %v1656 = vmax.f32 %v1567, %v1627
    %v1657 = vmax.f32 %v1568, %v1628
    %v1658 = vmax.f32 %v1569, %v1629
    %v1659 = vmax.f32 %v1570, %v1630
    %v1660 = vmax.f32 %v1571, %v1631
    %v1661 = vmax.f32 %v1572, %v1632
    %v1662 = vmax.f32 %v1573, %v1633
    %v1663 = vmax.f32 %v1574, %v1634
    %v1664 = vmax.f32 %v1575, %v1620
    %1665 = vrot.lane.b32.xlu0 %v1561, 98
    %v1666 = vpop.permute.xlu0 %1665
    %1667 = vrot.lane.b32.xlu0 %v1562, 98
    %v1668 = vpop.permute.xlu0 %1667
    %1669 = vrot.lane.b32.xlu0 %v1563, 98
    %v1670 = vpop.permute.xlu0 %1669
    %1671 = vrot.lane.b32.xlu0 %v1564, 98
    %v1672 = vpop.permute.xlu0 %1671
    %1673 = vrot.lane.b32.xlu0 %v1565, 98
    %v1674 = vpop.permute.xlu0 %1673
    %1675 = vrot.lane.b32.xlu0 %v1566, 98
    %v1676 = vpop.permute.xlu0 %1675
    %1677 = vrot.lane.b32.xlu0 %v1567, 98
    %v1678 = vpop.permute.xlu0 %1677
    %1679 = vrot.lane.b32.xlu0 %v1568, 98
    %v1680 = vpop.permute.xlu0 %1679
    %1681 = vrot.lane.b32.xlu0 %v1569, 98
    %v1682 = vpop.permute.xlu0 %1681
    %1683 = vrot.lane.b32.xlu0 %v1570, 98
    %v1684 = vpop.permute.xlu0 %1683
    %1685 = vrot.lane.b32.xlu0 %v1571, 98
    %v1686 = vpop.permute.xlu0 %1685
    %1687 = vrot.lane.b32.xlu0 %v1572, 98
    %v1688 = vpop.permute.xlu0 %1687
    %1689 = vrot.lane.b32.xlu0 %v1573, 98
    %v1690 = vpop.permute.xlu0 %1689
    %1691 = vrot.lane.b32.xlu0 %v1574, 98
    %v1692 = vpop.permute.xlu0 %1691
    %1693 = vrot.lane.b32.xlu0 %v1575, 98
    %v1694 = vpop.permute.xlu0 %1693
    %v1695 = vsel %vm986, %v1666, %v1668
    %v1696 = vsel %vm986, %v1668, %v1670
    %v1697 = vsel %vm986, %v1670, %v1672
    %v1698 = vsel %vm986, %v1672, %v1674
    %v1699 = vsel %vm986, %v1674, %v1676
    %v1700 = vsel %vm986, %v1676, %v1678
    %v1701 = vsel %vm986, %v1678, %v1680
    %v1702 = vsel %vm986, %v1680, %v1682
    %v1703 = vsel %vm986, %v1682, %v1684
    %v1704 = vsel %vm986, %v1684, %v1686
    %v1705 = vsel %vm986, %v1686, %v1688
    %v1706 = vsel %vm986, %v1688, %v1690
    %v1707 = vsel %vm986, %v1690, %v1692
    %v1708 = vsel %vm986, %v1692, %v1694
    %v1724 = vmax.f32 %v1650, %v1695
    %v1725 = vmax.f32 %v1651, %v1696
    %v1726 = vmax.f32 %v1652, %v1697
    %v1727 = vmax.f32 %v1653, %v1698
    %v1728 = vmax.f32 %v1654, %v1699
    %v1729 = vmax.f32 %v1655, %v1700
    %v1730 = vmax.f32 %v1656, %v1701
    %v1731 = vmax.f32 %v1657, %v1702
    %v1732 = vmax.f32 %v1658, %v1703
    %v1733 = vmax.f32 %v1659, %v1704
    %v1734 = vmax.f32 %v1660, %v1705
    %v1735 = vmax.f32 %v1661, %v1706
    %v1736 = vmax.f32 %v1662, %v1707
    %v1737 = vmax.f32 %v1663, %v1708
    %v1738 = vmax.f32 %v1664, %v1694
    %1739 = vrot.lane.b32.xlu0 %v1561, 97
    %v1740 = vpop.permute.xlu0 %1739
    %1741 = vrot.lane.b32.xlu0 %v1562, 97
    %v1742 = vpop.permute.xlu0 %1741
    %1743 = vrot.lane.b32.xlu0 %v1563, 97
    %v1744 = vpop.permute.xlu0 %1743
    %1745 = vrot.lane.b32.xlu0 %v1564, 97
    %v1746 = vpop.permute.xlu0 %1745
    %1747 = vrot.lane.b32.xlu0 %v1565, 97
    %v1748 = vpop.permute.xlu0 %1747
    %1749 = vrot.lane.b32.xlu0 %v1566, 97
    %v1750 = vpop.permute.xlu0 %1749
    %1751 = vrot.lane.b32.xlu0 %v1567, 97
    %v1752 = vpop.permute.xlu0 %1751
    %1753 = vrot.lane.b32.xlu0 %v1568, 97
    %v1754 = vpop.permute.xlu0 %1753
    %1755 = vrot.lane.b32.xlu0 %v1569, 97
    %v1756 = vpop.permute.xlu0 %1755
    %1757 = vrot.lane.b32.xlu0 %v1570, 97
    %v1758 = vpop.permute.xlu0 %1757
    %1759 = vrot.lane.b32.xlu0 %v1571, 97
    %v1760 = vpop.permute.xlu0 %1759
    %1761 = vrot.lane.b32.xlu0 %v1572, 97
    %v1762 = vpop.permute.xlu0 %1761
    %1763 = vrot.lane.b32.xlu0 %v1573, 97
    %v1764 = vpop.permute.xlu0 %1763
    %1765 = vrot.lane.b32.xlu0 %v1574, 97
    %v1766 = vpop.permute.xlu0 %1765
    %1767 = vrot.lane.b32.xlu0 %v1575, 97
    %v1768 = vpop.permute.xlu0 %1767
    %v1769 = vsel %vm1095, %v1740, %v1742
    %v1770 = vsel %vm1095, %v1742, %v1744
    %v1771 = vsel %vm1095, %v1744, %v1746
    %v1772 = vsel %vm1095, %v1746, %v1748
    %v1773 = vsel %vm1095, %v1748, %v1750
    %v1774 = vsel %vm1095, %v1750, %v1752
    %v1775 = vsel %vm1095, %v1752, %v1754
    %v1776 = vsel %vm1095, %v1754, %v1756
    %v1777 = vsel %vm1095, %v1756, %v1758
    %v1778 = vsel %vm1095, %v1758, %v1760
    %v1779 = vsel %vm1095, %v1760, %v1762
    %v1780 = vsel %vm1095, %v1762, %v1764
    %v1781 = vsel %vm1095, %v1764, %v1766
    %v1782 = vsel %vm1095, %v1766, %v1768
    %v1798 = vmax.f32 %v1724, %v1769
    %v1799 = vmax.f32 %v1725, %v1770
    %v1800 = vmax.f32 %v1726, %v1771
    %v1801 = vmax.f32 %v1727, %v1772
    %v1802 = vmax.f32 %v1728, %v1773
    %v1803 = vmax.f32 %v1729, %v1774
    %v1804 = vmax.f32 %v1730, %v1775
    %v1805 = vmax.f32 %v1731, %v1776
    %v1806 = vmax.f32 %v1732, %v1777
    %v1807 = vmax.f32 %v1733, %v1778
    %v1808 = vmax.f32 %v1734, %v1779
    %v1809 = vmax.f32 %v1735, %v1780
    %v1810 = vmax.f32 %v1736, %v1781
    %v1811 = vmax.f32 %v1737, %v1782
    %v1812 = vmax.f32 %v1738, %v1768
    %v1813 = vld [vmem:[%s2] sm:$0xff]
    %1815 = vset.pattern.permute.xlu0 0
    %1816 = vperm.xlu0 %1815, %v1813
    %v1817 = vpop.permute.xlu0 %1816
    %v1819 = vadd.f32 %v1798, %v1817
    %v1820 = vadd.f32 %v1799, %v1817
    %v1821 = vadd.f32 %v1800, %v1817
    %v1822 = vadd.f32 %v1801, %v1817
    %v1823 = vadd.f32 %v1802, %v1817
    %v1824 = vadd.f32 %v1803, %v1817
    %v1825 = vadd.f32 %v1804, %v1817
    %v1826 = vadd.f32 %v1805, %v1817
    %v1827 = vadd.f32 %v1806, %v1817
    %v1828 = vadd.f32 %v1807, %v1817
    %v1829 = vadd.f32 %v1808, %v1817
    %v1830 = vadd.f32 %v1809, %v1817
    %v1831 = vadd.f32 %v1810, %v1817
    %v1832 = vadd.f32 %v1811, %v1817
    %v1833 = vadd.f32 %v1812, %v1817
    %v1834 = vmax.f32 %v1819, 0.0
    %v1835 = vmax.f32 %v1820, 0.0
    %v1836 = vmax.f32 %v1821, 0.0
    %v1837 = vmax.f32 %v1822, 0.0
    %v1838 = vmax.f32 %v1823, 0.0
    %v1839 = vmax.f32 %v1824, 0.0
    %v1840 = vmax.f32 %v1825, 0.0
    %v1841 = vmax.f32 %v1826, 0.0
    %v1842 = vmax.f32 %v1827, 0.0
    %v1843 = vmax.f32 %v1828, 0.0
    %v1844 = vmax.f32 %v1829, 0.0
    %v1845 = vmax.f32 %v1830, 0.0
    %v1846 = vmax.f32 %v1831, 0.0
    %v1847 = vmax.f32 %v1832, 0.0
    %v1848 = vmax.f32 %v1833, 0.0
    %v1849 = vpack.c.bf16 %v1835, %v1834
    %v1850 = vpack.c.bf16 %v1837, %v1836
    %v1851 = vpack.c.bf16 %v1839, %v1838
    %v1852 = vpack.c.bf16 %v1841, %v1840
    %v1853 = vpack.c.bf16 %v1843, %v1842
    %v1854 = vpack.c.bf16 %v1845, %v1844
    %v1855 = vpack.c.bf16 %v1847, %v1846
    %v1856 = vpack.c.bf16 %v1848, %v1848
    %v1857 = vld [vmem:[#allocation3] sm:$0xff]
    %v1858 = vld [vmem:[#allocation3 + $0x8] sm:$0xff]
    %v1859 = vld [vmem:[#allocation3 + $0x10] sm:$0xff]
    %v1860 = vld [vmem:[#allocation3 + $0x18] sm:$0xff]
    %v1861 = vld [vmem:[#allocation3 + $0x20] sm:$0xff]
    %v1862 = vld [vmem:[#allocation3 + $0x28] sm:$0xff]
    %v1863 = vld [vmem:[#allocation3 + $0x30] sm:$0xff]
    %v1864 = vld [vmem:[#allocation3 + $0x38] sm:$0xff]
    %v1865 = vld [vmem:[#allocation3 + $0x40] sm:$0xff]
    %v1866 = vld [vmem:[#allocation3 + $0x48] sm:$0xff]
    %v1867 = vld [vmem:[#allocation3 + $0x50] sm:$0xff]
    %v1868 = vld [vmem:[#allocation3 + $0x58] sm:$0xff]
    %v1869 = vld [vmem:[#allocation3 + $0x60] sm:$0xff]
    %v1870 = vld [vmem:[#allocation3 + $0x68] sm:$0xff]
    %v1871 = vld [vmem:[#allocation3 + $0x70] sm:$0xff]
    %v1872 = vld [vmem:[#allocation3 + $0x78] sm:$0xff]
    %v1873 = vld [vmem:[#allocation3 + $0x80] sm:$0xff]
    %v1874 = vld [vmem:[#allocation3 + $0x88] sm:$0xff]
    %v1875 = vld [vmem:[#allocation3 + $0x90] sm:$0xff]
    %v1876 = vld [vmem:[#allocation3 + $0x98] sm:$0xff]
    %v1877 = vld [vmem:[#allocation3 + $0xa0] sm:$0xff]
    %v1878 = vld [vmem:[#allocation3 + $0xa8] sm:$0xff]
    %v1879 = vld [vmem:[#allocation3 + $0xb0] sm:$0xff]
    %v1880 = vld [vmem:[#allocation3 + $0xb8] sm:$0xff]
    %v1881 = vld [vmem:[#allocation3 + $0xc0] sm:$0xff]
    %v1882 = vld [vmem:[#allocation3 + $0xc8] sm:$0xff]
    %v1883 = vld [vmem:[#allocation3 + $0xd0] sm:$0xff]
    %v1884 = vld [vmem:[#allocation3 + $0xd8] sm:$0xff]
    %v1885 = vld [vmem:[#allocation3 + $0xe0] sm:$0xff]
    %v1886 = vld [vmem:[#allocation3 + $0xe8] sm:$0xff]
    %v1887 = vld [vmem:[#allocation3 + $0xf0] sm:$0xff]
    %v1888 = vld [vmem:[#allocation3 + $0xf8] sm:$0xff]
    %v1889 = vld [vmem:[#allocation3 + $0x100] sm:$0xff]
    %v1890 = vld [vmem:[#allocation3 + $0x108] sm:$0xff]
    %v1891 = vld [vmem:[#allocation3 + $0x110] sm:$0xff]
    %v1892 = vld [vmem:[#allocation3 + $0x118] sm:$0xff]
    %v1893 = vld [vmem:[#allocation3 + $0x120] sm:$0xff]
    %v1894 = vld [vmem:[#allocation3 + $0x128] sm:$0xff]
    %v1895 = vld [vmem:[#allocation3 + $0x130] sm:$0xff]
    %v1896 = vld [vmem:[#allocation3 + $0x138] sm:$0xff]
    %v1897 = vld [vmem:[#allocation3 + $0x140] sm:$0xff]
    %v1898 = vld [vmem:[#allocation3 + $0x148] sm:$0xff]
    %v1899 = vld [vmem:[#allocation3 + $0x150] sm:$0xff]
    %v1900 = vld [vmem:[#allocation3 + $0x158] sm:$0xff]
    %v1901 = vld [vmem:[#allocation3 + $0x160] sm:$0xff]
    %v1902 = vld [vmem:[#allocation3 + $0x168] sm:$0xff]
    %v1903 = vld [vmem:[#allocation3 + $0x170] sm:$0xff]
    %v1904 = vld [vmem:[#allocation3 + $0x178] sm:$0xff]
    %v1905 = vld [vmem:[#allocation3 + $0x180] sm:$0xff]
    %v1906 = vld [vmem:[#allocation3 + $0x188] sm:$0xff]
    %v1907 = vld [vmem:[#allocation3 + $0x190] sm:$0xff]
    %v1908 = vld [vmem:[#allocation3 + $0x198] sm:$0xff]
    %v1909 = vld [vmem:[#allocation3 + $0x1a0] sm:$0xff]
    %v1910 = vld [vmem:[#allocation3 + $0x1a8] sm:$0xff]
    %v1911 = vld [vmem:[#allocation3 + $0x1b0] sm:$0xff]
    %v1912 = vld [vmem:[#allocation3 + $0x1b8] sm:$0xff]
    %v1913 = vld [vmem:[#allocation3 + $0x1c0] sm:$0xff]
    %v1914 = vld [vmem:[#allocation3 + $0x1c8] sm:$0xff]
    %v1915 = vld [vmem:[#allocation3 + $0x1d0] sm:$0xff]
    %v1916 = vld [vmem:[#allocation3 + $0x1d8] sm:$0xff]
    %v1917 = vld [vmem:[#allocation3 + $0x1e0] sm:$0xff]
    %v1918 = vld [vmem:[#allocation3 + $0x1e8] sm:$0xff]
    %v1919 = vld [vmem:[#allocation3 + $0x1f0] sm:$0xff]
    %v1920 = vld [vmem:[#allocation3 + $0x1f8] sm:$0xff]
    %v1921 = vld [vmem:[#allocation3 + $0x200] sm:$0xff]
    %v1922 = vld [vmem:[#allocation3 + $0x208] sm:$0xff]
    %v1923 = vld [vmem:[#allocation3 + $0x210] sm:$0xff]
    %v1924 = vld [vmem:[#allocation3 + $0x218] sm:$0xff]
    %v1925 = vld [vmem:[#allocation3 + $0x220] sm:$0xff]
    %v1926 = vld [vmem:[#allocation3 + $0x228] sm:$0xff]
    %v1927 = vld [vmem:[#allocation3 + $0x230] sm:$0xff]
    %v1928 = vld [vmem:[#allocation3 + $0x238] sm:$0xff]
    %v1929 = vld [vmem:[#allocation3 + $0x240] sm:$0xff]
    %v1930 = vld [vmem:[#allocation3 + $0x248] sm:$0xff]
    %v1931 = vld [vmem:[#allocation3 + $0x250] sm:$0xff]
    %v1932 = vld [vmem:[#allocation3 + $0x258] sm:$0xff]
    %v1933 = vld [vmem:[#allocation3 + $0x260] sm:$0xff]
    %v1934 = vld [vmem:[#allocation3 + $0x268] sm:$0xff]
    %v1935 = vld [vmem:[#allocation3 + $0x270] sm:$0xff]
    %v1936 = vld [vmem:[#allocation3 + $0x278] sm:$0xff]
    %v1937 = vld [vmem:[#allocation3 + $0x280] sm:$0xff]
    %v1938 = vld [vmem:[#allocation3 + $0x288] sm:$0xff]
    %v1939 = vld [vmem:[#allocation3 + $0x290] sm:$0xff]
    %v1940 = vld [vmem:[#allocation3 + $0x298] sm:$0xff]
    %v1941 = vld [vmem:[#allocation3 + $0x2a0] sm:$0xff]
    %v1942 = vld [vmem:[#allocation3 + $0x2a8] sm:$0xff]
    %v1943 = vld [vmem:[#allocation3 + $0x2b0] sm:$0xff]
    %v1944 = vld [vmem:[#allocation3 + $0x2b8] sm:$0xff]
    %v1945 = vld [vmem:[#allocation3 + $0x2c0] sm:$0xff]
    %v1946 = vld [vmem:[#allocation3 + $0x2c8] sm:$0xff]
    %v1947 = vld [vmem:[#allocation3 + $0x2d0] sm:$0xff]
    %v1948 = vld [vmem:[#allocation3 + $0x2d8] sm:$0xff]
    %v1949 = vld [vmem:[#allocation3 + $0x2e0] sm:$0xff]
    %v1950 = vld [vmem:[#allocation3 + $0x2e8] sm:$0xff]
    %v1951 = vld [vmem:[#allocation3 + $0x2f0] sm:$0xff]
    %v1952 = vld [vmem:[#allocation3 + $0x2f8] sm:$0xff]
    %v1953 = vld [vmem:[#allocation3 + $0x300] sm:$0xff]
    %v1954 = vld [vmem:[#allocation3 + $0x308] sm:$0xff]
    %v1955 = vld [vmem:[#allocation3 + $0x310] sm:$0xff]
    %v1956 = vld [vmem:[#allocation3 + $0x318] sm:$0xff]
    %v1957 = vld [vmem:[#allocation3 + $0x320] sm:$0xff]
    %v1958 = vld [vmem:[#allocation3 + $0x328] sm:$0xff]
    %v1959 = vld [vmem:[#allocation3 + $0x330] sm:$0xff]
    %v1960 = vld [vmem:[#allocation3 + $0x338] sm:$0xff]
    %v1961 = vld [vmem:[#allocation3 + $0x340] sm:$0xff]
    %v1962 = vld [vmem:[#allocation3 + $0x348] sm:$0xff]
    %v1963 = vld [vmem:[#allocation3 + $0x350] sm:$0xff]
    %v1964 = vld [vmem:[#allocation3 + $0x358] sm:$0xff]
    %v1965 = vld [vmem:[#allocation3 + $0x360] sm:$0xff]
    %v1966 = vld [vmem:[#allocation3 + $0x368] sm:$0xff]
    %v1967 = vld [vmem:[#allocation3 + $0x370] sm:$0xff]
    %v1968 = vld [vmem:[#allocation3 + $0x378] sm:$0xff]
    %v1969 = vld [vmem:[#allocation3 + $0x380] sm:$0x33]
    %v1974 = vunpack.c.l.b16 %v1849
    %v1975 = vunpack.c.h.b16 %v1849
    %v1976 = vunpack.c.l.b16 %v1850
    %v1977 = vunpack.c.h.b16 %v1850
    %v1978 = vunpack.c.l.b16 %v1851
    %v1979 = vunpack.c.h.b16 %v1851
    %v1980 = vunpack.c.l.b16 %v1852
    %v1981 = vunpack.c.h.b16 %v1852
    %v1982 = vpack.c.b16 %v1974, %v1974
    %v1983 = vpack.c.b16 %v1975, %v1975
    %v1984 = vpack.c.b16 %v1976, %v1976
    %v1985 = vpack.c.b16 %v1977, %v1977
    %v1986 = vpack.c.b16 %v1978, %v1978
    %v1987 = vpack.c.b16 %v1979, %v1979
    %v1988 = vpack.c.b16 %v1980, %v1980
    %v1989 = vpack.c.b16 %v1981, %v1981
    %v2110 = vunpack.c.l.b16 %v1857
    %v2111 = vunpack.c.h.b16 %v1857
    %v2112 = vunpack.c.l.b16 %v1858
    %v2113 = vunpack.c.h.b16 %v1858
    %v2114 = vunpack.c.l.b16 %v1859
    %v2115 = vunpack.c.h.b16 %v1859
    %v2116 = vunpack.c.l.b16 %v1860
    %v2117 = vunpack.c.h.b16 %v1860
    %v2118 = vunpack.c.l.b16 %v1861
    %v2119 = vunpack.c.h.b16 %v1861
    %v2120 = vunpack.c.l.b16 %v1862
    %v2121 = vunpack.c.h.b16 %v1862
    %v2122 = vunpack.c.l.b16 %v1863
    %v2123 = vunpack.c.h.b16 %v1863
    %v2124 = vunpack.c.l.b16 %v1864
    %v2125 = vunpack.c.h.b16 %v1864
    %v2126 = vunpack.c.l.b16 %v1865
    %v2127 = vunpack.c.h.b16 %v1865
    %v2128 = vunpack.c.l.b16 %v1866
    %v2129 = vunpack.c.h.b16 %v1866
    %v2130 = vunpack.c.l.b16 %v1867
    %v2131 = vunpack.c.h.b16 %v1867
    %v2132 = vunpack.c.l.b16 %v1868
    %v2133 = vunpack.c.h.b16 %v1868
    %v2134 = vunpack.c.l.b16 %v1869
    %v2135 = vunpack.c.h.b16 %v1869
    %v2136 = vunpack.c.l.b16 %v1870
    %v2137 = vunpack.c.h.b16 %v1870
    %v2138 = vunpack.c.l.b16 %v1871
    %v2139 = vunpack.c.h.b16 %v1871
    %v2140 = vunpack.c.l.b16 %v1872
    %v2141 = vunpack.c.h.b16 %v1872
    %v2142 = vunpack.c.l.b16 %v1873
    %v2143 = vunpack.c.h.b16 %v1873
    %v2144 = vunpack.c.l.b16 %v1874
    %v2145 = vunpack.c.h.b16 %v1874
    %v2146 = vunpack.c.l.b16 %v1875
    %v2147 = vunpack.c.h.b16 %v1875
    %v2148 = vunpack.c.l.b16 %v1876
    %v2149 = vunpack.c.h.b16 %v1876
    %v2150 = vunpack.c.l.b16 %v1877
    %v2151 = vunpack.c.h.b16 %v1877
    %v2152 = vunpack.c.l.b16 %v1878
    %v2153 = vunpack.c.h.b16 %v1878
    %v2154 = vunpack.c.l.b16 %v1879
    %v2155 = vunpack.c.h.b16 %v1879
    %v2156 = vunpack.c.l.b16 %v1880
    %v2157 = vunpack.c.h.b16 %v1880
    %v2158 = vunpack.c.l.b16 %v1881
    %v2159 = vunpack.c.h.b16 %v1881
    %v2160 = vunpack.c.l.b16 %v1882
    %v2161 = vunpack.c.h.b16 %v1882
    %v2162 = vunpack.c.l.b16 %v1883
    %v2163 = vunpack.c.h.b16 %v1883
    %v2164 = vunpack.c.l.b16 %v1884
    %v2165 = vunpack.c.h.b16 %v1884
    %v2166 = vunpack.c.l.b16 %v1885
    %v2167 = vunpack.c.h.b16 %v1885
    %v2168 = vunpack.c.l.b16 %v1886
    %v2169 = vunpack.c.h.b16 %v1886
    %v2170 = vunpack.c.l.b16 %v1887
    %v2171 = vunpack.c.h.b16 %v1887
    %v2172 = vunpack.c.l.b16 %v1888
    %v2173 = vunpack.c.h.b16 %v1888
    %v2174 = vunpack.c.l.b16 %v1889
    %v2175 = vunpack.c.h.b16 %v1889
    %v2176 = vunpack.c.l.b16 %v1890
    %v2177 = vunpack.c.h.b16 %v1890
    %v2178 = vunpack.c.l.b16 %v1891
    %v2179 = vunpack.c.h.b16 %v1891
    %v2180 = vunpack.c.l.b16 %v1892
    %v2181 = vunpack.c.h.b16 %v1892
    %v2182 = vunpack.c.l.b16 %v1893
    %v2183 = vunpack.c.h.b16 %v1893
    %v2184 = vunpack.c.l.b16 %v1894
    %v2185 = vunpack.c.h.b16 %v1894
    %v2186 = vunpack.c.l.b16 %v1895
    %v2187 = vunpack.c.h.b16 %v1895
    %v2188 = vunpack.c.l.b16 %v1896
    %v2189 = vunpack.c.h.b16 %v1896
    %v2190 = vunpack.c.l.b16 %v1897
    %v2191 = vunpack.c.h.b16 %v1897
    %v2192 = vunpack.c.l.b16 %v1898
    %v2193 = vunpack.c.h.b16 %v1898
    %v2194 = vunpack.c.l.b16 %v1899
    %v2195 = vunpack.c.h.b16 %v1899
    %v2196 = vunpack.c.l.b16 %v1900
    %v2197 = vunpack.c.h.b16 %v1900
    %v2198 = vunpack.c.l.b16 %v1901
    %v2199 = vunpack.c.h.b16 %v1901
    %v2200 = vunpack.c.l.b16 %v1902
    %v2201 = vunpack.c.h.b16 %v1902
    %v2202 = vunpack.c.l.b16 %v1903
    %v2203 = vunpack.c.h.b16 %v1903
    %v2204 = vunpack.c.l.b16 %v1904
    %v2205 = vunpack.c.h.b16 %v1904
    %v2206 = vunpack.c.l.b16 %v1905
    %v2207 = vunpack.c.h.b16 %v1905
    %v2208 = vunpack.c.l.b16 %v1906
    %v2209 = vunpack.c.h.b16 %v1906
    %v2210 = vunpack.c.l.b16 %v1907
    %v2211 = vunpack.c.h.b16 %v1907
    %v2212 = vunpack.c.l.b16 %v1908
    %v2213 = vunpack.c.h.b16 %v1908
    %v2214 = vunpack.c.l.b16 %v1909
    %v2215 = vunpack.c.h.b16 %v1909
    %v2216 = vunpack.c.l.b16 %v1910
    %v2217 = vunpack.c.h.b16 %v1910
    %v2218 = vunpack.c.l.b16 %v1911
    %v2219 = vunpack.c.h.b16 %v1911
    %v2220 = vunpack.c.l.b16 %v1912
    %v2221 = vunpack.c.h.b16 %v1912
    %v2222 = vunpack.c.l.b16 %v1913
    %v2223 = vunpack.c.h.b16 %v1913
    %v2224 = vunpack.c.l.b16 %v1914
    %v2225 = vunpack.c.h.b16 %v1914
    %v2226 = vunpack.c.l.b16 %v1915
    %v2227 = vunpack.c.h.b16 %v1915
    %v2228 = vunpack.c.l.b16 %v1916
    %v2229 = vunpack.c.h.b16 %v1916
    %v2230 = vunpack.c.l.b16 %v1917
    %v2231 = vunpack.c.h.b16 %v1917
    %v2232 = vunpack.c.l.b16 %v1918
    %v2233 = vunpack.c.h.b16 %v1918
    %v2234 = vunpack.c.l.b16 %v1919
    %v2235 = vunpack.c.h.b16 %v1919
    %v2236 = vunpack.c.l.b16 %v1920
    %v2237 = vunpack.c.h.b16 %v1920
    %v2238 = vunpack.c.l.b16 %v1921
    %v2239 = vunpack.c.h.b16 %v1921
    %v2240 = vunpack.c.l.b16 %v1922
    %v2241 = vunpack.c.h.b16 %v1922
    %v2242 = vunpack.c.l.b16 %v1923
    %v2243 = vunpack.c.h.b16 %v1923
    %v2244 = vunpack.c.l.b16 %v1924
    %v2245 = vunpack.c.h.b16 %v1924
    %v2246 = vunpack.c.l.b16 %v1925
    %v2247 = vunpack.c.h.b16 %v1925
    %v2248 = vunpack.c.l.b16 %v1926
    %v2249 = vunpack.c.h.b16 %v1926
    %v2250 = vunpack.c.l.b16 %v1927
    %v2251 = vunpack.c.h.b16 %v1927
    %v2252 = vunpack.c.l.b16 %v1928
    %v2253 = vunpack.c.h.b16 %v1928
    %v2254 = vunpack.c.l.b16 %v1929
    %v2255 = vunpack.c.h.b16 %v1929
    %v2256 = vunpack.c.l.b16 %v1930
    %v2257 = vunpack.c.h.b16 %v1930
    %v2258 = vunpack.c.l.b16 %v1931
    %v2259 = vunpack.c.h.b16 %v1931
    %v2260 = vunpack.c.l.b16 %v1932
    %v2261 = vunpack.c.h.b16 %v1932
    %v2262 = vunpack.c.l.b16 %v1933
    %v2263 = vunpack.c.h.b16 %v1933
    %v2264 = vunpack.c.l.b16 %v1934
    %v2265 = vunpack.c.h.b16 %v1934
    %v2266 = vunpack.c.l.b16 %v1935
    %v2267 = vunpack.c.h.b16 %v1935
    %v2268 = vunpack.c.l.b16 %v1936
    %v2269 = vunpack.c.h.b16 %v1936
    %v2270 = vunpack.c.l.b16 %v1937
    %v2271 = vunpack.c.h.b16 %v1937
    %v2272 = vunpack.c.l.b16 %v1938
    %v2273 = vunpack.c.h.b16 %v1938
    %v2274 = vunpack.c.l.b16 %v1939
    %v2275 = vunpack.c.h.b16 %v1939
    %v2276 = vunpack.c.l.b16 %v1940
    %v2277 = vunpack.c.h.b16 %v1940
    %v2278 = vunpack.c.l.b16 %v1941
    %v2279 = vunpack.c.h.b16 %v1941
    %v2280 = vunpack.c.l.b16 %v1942
    %v2281 = vunpack.c.h.b16 %v1942
    %v2282 = vunpack.c.l.b16 %v1943
    %v2283 = vunpack.c.h.b16 %v1943
    %v2284 = vunpack.c.l.b16 %v1944
    %v2285 = vunpack.c.h.b16 %v1944
    %v2286 = vunpack.c.l.b16 %v1945
    %v2287 = vunpack.c.h.b16 %v1945
    %v2288 = vunpack.c.l.b16 %v1946
    %v2289 = vunpack.c.h.b16 %v1946
    %v2290 = vunpack.c.l.b16 %v1947
    %v2291 = vunpack.c.h.b16 %v1947
    %v2292 = vunpack.c.l.b16 %v1948
    %v2293 = vunpack.c.h.b16 %v1948
    %v2294 = vunpack.c.l.b16 %v1949
    %v2295 = vunpack.c.h.b16 %v1949
    %v2296 = vunpack.c.l.b16 %v1950
    %v2297 = vunpack.c.h.b16 %v1950
    %v2298 = vunpack.c.l.b16 %v1951
    %v2299 = vunpack.c.h.b16 %v1951
    %v2300 = vunpack.c.l.b16 %v1952
    %v2301 = vunpack.c.h.b16 %v1952
    %v2302 = vunpack.c.l.b16 %v1953
    %v2303 = vunpack.c.h.b16 %v1953
    %v2304 = vunpack.c.l.b16 %v1954
    %v2305 = vunpack.c.h.b16 %v1954
    %v2306 = vunpack.c.l.b16 %v1955
    %v2307 = vunpack.c.h.b16 %v1955
    %v2308 = vunpack.c.l.b16 %v1956
    %v2309 = vunpack.c.h.b16 %v1956
    %v2310 = vunpack.c.l.b16 %v1957
    %v2311 = vunpack.c.h.b16 %v1957
    %v2312 = vunpack.c.l.b16 %v1958
    %v2313 = vunpack.c.h.b16 %v1958
    %v2314 = vunpack.c.l.b16 %v1959
    %v2315 = vunpack.c.h.b16 %v1959
    %v2316 = vunpack.c.l.b16 %v1960
    %v2317 = vunpack.c.h.b16 %v1960
    %v2318 = vunpack.c.l.b16 %v1961
    %v2319 = vunpack.c.h.b16 %v1961
    %v2320 = vunpack.c.l.b16 %v1962
    %v2321 = vunpack.c.h.b16 %v1962
    %v2322 = vunpack.c.l.b16 %v1963
    %v2323 = vunpack.c.h.b16 %v1963
    %v2324 = vunpack.c.l.b16 %v1964
    %v2325 = vunpack.c.h.b16 %v1964
    %v2326 = vunpack.c.l.b16 %v1965
    %v2327 = vunpack.c.h.b16 %v1965
    %v2328 = vunpack.c.l.b16 %v1966
    %v2329 = vunpack.c.h.b16 %v1966
    %v2330 = vunpack.c.l.b16 %v1967
    %v2331 = vunpack.c.h.b16 %v1967
    %v2332 = vunpack.c.l.b16 %v1968
    %v2333 = vunpack.c.h.b16 %v1968
    %v2334 = vunpack.c.l.b16 %v1969
    %v2335 = vunpack.c.h.b16 %v1969
    %v2336 = vpack.c.b16 %v2112, %v2110
    %v2337 = vpack.c.b16 %v2113, %v2111
    %v2338 = vpack.c.b16 %v2116, %v2114
    %v2339 = vpack.c.b16 %v2117, %v2115
    %v2340 = vpack.c.b16 %v2120, %v2118
    %v2341 = vpack.c.b16 %v2121, %v2119
    %v2342 = vpack.c.b16 %v2124, %v2122
    %v2343 = vpack.c.b16 %v2125, %v2123
    %v2344 = vpack.c.b16 %v2128, %v2126
    %v2345 = vpack.c.b16 %v2129, %v2127
    %v2346 = vpack.c.b16 %v2132, %v2130
    %v2347 = vpack.c.b16 %v2133, %v2131
    %v2348 = vpack.c.b16 %v2136, %v2134
    %v2349 = vpack.c.b16 %v2137, %v2135
    %v2350 = vpack.c.b16 %v2140, %v2138
    %v2351 = vpack.c.b16 %v2141, %v2139
    %v2352 = vpack.c.b16 %v2144, %v2142
    %v2353 = vpack.c.b16 %v2145, %v2143
    %v2354 = vpack.c.b16 %v2148, %v2146
    %v2355 = vpack.c.b16 %v2149, %v2147
    %v2356 = vpack.c.b16 %v2152, %v2150
    %v2357 = vpack.c.b16 %v2153, %v2151
    %v2358 = vpack.c.b16 %v2156, %v2154
    %v2359 = vpack.c.b16 %v2157, %v2155
    %v2360 = vpack.c.b16 %v2160, %v2158
    %v2361 = vpack.c.b16 %v2161, %v2159
    %v2362 = vpack.c.b16 %v2164, %v2162
    %v2363 = vpack.c.b16 %v2165, %v2163
    %v2364 = vpack.c.b16 %v2168, %v2166
    %v2365 = vpack.c.b16 %v2169, %v2167
    %v2366 = vpack.c.b16 %v2172, %v2170
    %v2367 = vpack.c.b16 %v2173, %v2171
    %v2368 = vpack.c.b16 %v2176, %v2174
    %v2369 = vpack.c.b16 %v2177, %v2175
    %v2370 = vpack.c.b16 %v2180, %v2178
    %v2371 = vpack.c.b16 %v2181, %v2179
    %v2372 = vpack.c.b16 %v2184, %v2182
    %v2373 = vpack.c.b16 %v2185, %v2183
    %v2374 = vpack.c.b16 %v2188, %v2186
    %v2375 = vpack.c.b16 %v2189, %v2187
    %v2376 = vpack.c.b16 %v2192, %v2190
    %v2377 = vpack.c.b16 %v2193, %v2191
    %v2378 = vpack.c.b16 %v2196, %v2194
    %v2379 = vpack.c.b16 %v2197, %v2195
    %v2380 = vpack.c.b16 %v2200, %v2198
    %v2381 = vpack.c.b16 %v2201, %v2199
    %v2382 = vpack.c.b16 %v2204, %v2202
    %v2383 = vpack.c.b16 %v2205, %v2203
    %v2384 = vpack.c.b16 %v2208, %v2206
    %v2385 = vpack.c.b16 %v2209, %v2207
    %v2386 = vpack.c.b16 %v2212, %v2210
    %v2387 = vpack.c.b16 %v2213, %v2211
    %v2388 = vpack.c.b16 %v2216, %v2214
    %v2389 = vpack.c.b16 %v2217, %v2215
    %v2390 = vpack.c.b16 %v2220, %v2218
    %v2391 = vpack.c.b16 %v2221, %v2219
    %v2392 = vpack.c.b16 %v2224, %v2222
    %v2393 = vpack.c.b16 %v2225, %v2223
    %v2394 = vpack.c.b16 %v2228, %v2226
    %v2395 = vpack.c.b16 %v2229, %v2227
    %v2396 = vpack.c.b16 %v2232, %v2230
    %v2397 = vpack.c.b16 %v2233, %v2231
    %v2398 = vpack.c.b16 %v2236, %v2234
    %v2399 = vpack.c.b16 %v2237, %v2235
    %v2400 = vpack.c.b16 %v2240, %v2238
    %v2401 = vpack.c.b16 %v2241, %v2239
    %v2402 = vpack.c.b16 %v2244, %v2242
    %v2403 = vpack.c.b16 %v2245, %v2243
    %v2404 = vpack.c.b16 %v2248, %v2246
    %v2405 = vpack.c.b16 %v2249, %v2247
    %v2406 = vpack.c.b16 %v2252, %v2250
    %v2407 = vpack.c.b16 %v2253, %v2251
    %v2408 = vpack.c.b16 %v2256, %v2254
    %v2409 = vpack.c.b16 %v2257, %v2255
    %v2410 = vpack.c.b16 %v2260, %v2258
    %v2411 = vpack.c.b16 %v2261, %v2259
    %v2412 = vpack.c.b16 %v2264, %v2262
    %v2413 = vpack.c.b16 %v2265, %v2263
    %v2414 = vpack.c.b16 %v2268, %v2266
    %v2415 = vpack.c.b16 %v2269, %v2267
    %v2416 = vpack.c.b16 %v2272, %v2270
    %v2417 = vpack.c.b16 %v2273, %v2271
    %v2418 = vpack.c.b16 %v2276, %v2274
    %v2419 = vpack.c.b16 %v2277, %v2275
    %v2420 = vpack.c.b16 %v2280, %v2278
    %v2421 = vpack.c.b16 %v2281, %v2279
    %v2422 = vpack.c.b16 %v2284, %v2282
    %v2423 = vpack.c.b16 %v2285, %v2283
    %v2424 = vpack.c.b16 %v2288, %v2286
    %v2425 = vpack.c.b16 %v2289, %v2287
    %v2426 = vpack.c.b16 %v2292, %v2290
    %v2427 = vpack.c.b16 %v2293, %v2291
    %v2428 = vpack.c.b16 %v2296, %v2294
    %v2429 = vpack.c.b16 %v2297, %v2295
    %v2430 = vpack.c.b16 %v2300, %v2298
    %v2431 = vpack.c.b16 %v2301, %v2299
    %v2432 = vpack.c.b16 %v2304, %v2302
    %v2433 = vpack.c.b16 %v2305, %v2303
    %v2434 = vpack.c.b16 %v2308, %v2306
    %v2435 = vpack.c.b16 %v2309, %v2307
    %v2436 = vpack.c.b16 %v2312, %v2310
    %v2437 = vpack.c.b16 %v2313, %v2311
    %v2438 = vpack.c.b16 %v2316, %v2314
    %v2439 = vpack.c.b16 %v2317, %v2315
    %v2440 = vpack.c.b16 %v2320, %v2318
    %v2441 = vpack.c.b16 %v2321, %v2319
    %v2442 = vpack.c.b16 %v2324, %v2322
    %v2443 = vpack.c.b16 %v2325, %v2323
    %v2444 = vpack.c.b16 %v2328, %v2326
    %v2445 = vpack.c.b16 %v2329, %v2327
    %v2446 = vpack.c.b16 %v2332, %v2330
    %v2447 = vpack.c.b16 %v2333, %v2331
    %v2448 = vpack.c.b16 %v2334, %v2334
    %v2449 = vpack.c.b16 %v2335, %v2335
    %vm2562 = vcmask 31744
    %v2564 = vsel %vm2562, %v1989, 0
    %vm2566 = vcmask 1041408
    %v2568 = vsel %vm2566, %v2448, 0
    %v2571 = vsel %vm2566, %v2449, 0
    %2573 = vmatpush.bf16.msra.mxu0 %v2350
    %2574 = vmatpush.bf16.msra.mxu0 %v2348
    %2575 = vmatpush.bf16.msra.mxu0 %v2346
    %2576 = vmatpush.bf16.msra.mxu0 %v2344
    %2577 = vmatpush.bf16.msra.mxu0 %v2342
    %2578 = vmatpush.bf16.msra.mxu0 %v2340
    %2579 = vmatpush.bf16.msra.mxu0 %v2338
    %2580 = vmatpush.bf16.msra.mxu0 %v2336
    %2581 = vmatmul.bf16.gmra.mxu0 %v1982
    %v2582 = vpop.f32.mrf.mxu0
    %v2583 = vadd.f32 0.0, %v2582
    %v2584 = vpop.f32.mrf.mxu0
    %2585 = vdwg.mxu0
    %2586 = vmatpush.bf16.msra.mxu0 %v2366
    %2587 = vmatpush.bf16.msra.mxu0 %v2364
    %2588 = vmatpush.bf16.msra.mxu0 %v2362
    %2589 = vmatpush.bf16.msra.mxu0 %v2360
    %2590 = vmatpush.bf16.msra.mxu0 %v2358
    %2591 = vmatpush.bf16.msra.mxu0 %v2356
    %2592 = vmatpush.bf16.msra.mxu0 %v2354
    %2593 = vmatpush.bf16.msra.mxu0 %v2352
    %2594 = vmatmul.bf16.gmra.mxu0 %v1983
    %v2595 = vpop.f32.mrf.mxu0
    %v2596 = vadd.f32 %v2583, %v2595
    %v2597 = vpop.f32.mrf.mxu0
    %2598 = vdwg.mxu0
    %2599 = vmatpush.bf16.msra.mxu0 %v2382
    %2600 = vmatpush.bf16.msra.mxu0 %v2380
    %2601 = vmatpush.bf16.msra.mxu0 %v2378
    %2602 = vmatpush.bf16.msra.mxu0 %v2376
    %2603 = vmatpush.bf16.msra.mxu0 %v2374
    %2604 = vmatpush.bf16.msra.mxu0 %v2372
    %2605 = vmatpush.bf16.msra.mxu0 %v2370
    %2606 = vmatpush.bf16.msra.mxu0 %v2368
    %2607 = vmatmul.bf16.gmra.mxu0 %v1984
    %v2608 = vpop.f32.mrf.mxu0
    %v2609 = vadd.f32 %v2596, %v2608
    %v2610 = vpop.f32.mrf.mxu0
    %2611 = vdwg.mxu0
    %2612 = vmatpush.bf16.msra.mxu0 %v2398
    %2613 = vmatpush.bf16.msra.mxu0 %v2396
    %2614 = vmatpush.bf16.msra.mxu0 %v2394
    %2615 = vmatpush.bf16.msra.mxu0 %v2392
    %2616 = vmatpush.bf16.msra.mxu0 %v2390
    %2617 = vmatpush.bf16.msra.mxu0 %v2388
    %2618 = vmatpush.bf16.msra.mxu0 %v2386
    %2619 = vmatpush.bf16.msra.mxu0 %v2384
    %2620 = vmatmul.bf16.gmra.mxu0 %v1985
    %v2621 = vpop.f32.mrf.mxu0
    %v2622 = vadd.f32 %v2609, %v2621
    %v2623 = vpop.f32.mrf.mxu0
    %2624 = vdwg.mxu0
    %2625 = vmatpush.bf16.msra.mxu0 %v2414
    %2626 = vmatpush.bf16.msra.mxu0 %v2412
    %2627 = vmatpush.bf16.msra.mxu0 %v2410
    %2628 = vmatpush.bf16.msra.mxu0 %v2408
    %2629 = vmatpush.bf16.msra.mxu0 %v2406
    %2630 = vmatpush.bf16.msra.mxu0 %v2404
    %2631 = vmatpush.bf16.msra.mxu0 %v2402
    %2632 = vmatpush.bf16.msra.mxu0 %v2400
    %2633 = vmatmul.bf16.gmra.mxu0 %v1986
    %v2634 = vpop.f32.mrf.mxu0
    %v2635 = vadd.f32 %v2622, %v2634
    %v2636 = vpop.f32.mrf.mxu0
    %2637 = vdwg.mxu0
    %2638 = vmatpush.bf16.msra.mxu0 %v2430
    %2639 = vmatpush.bf16.msra.mxu0 %v2428
    %2640 = vmatpush.bf16.msra.mxu0 %v2426
    %2641 = vmatpush.bf16.msra.mxu0 %v2424
    %2642 = vmatpush.bf16.msra.mxu0 %v2422
    %2643 = vmatpush.bf16.msra.mxu0 %v2420
    %2644 = vmatpush.bf16.msra.mxu0 %v2418
    %2645 = vmatpush.bf16.msra.mxu0 %v2416
    %2646 = vmatmul.bf16.gmra.mxu0 %v1987
    %v2647 = vpop.f32.mrf.mxu0
    %v2648 = vadd.f32 %v2635, %v2647
    %v2649 = vpop.f32.mrf.mxu0
    %2650 = vdwg.mxu0
    %2651 = vmatpush.bf16.msra.mxu0 %v2446
    %2652 = vmatpush.bf16.msra.mxu0 %v2444
    %2653 = vmatpush.bf16.msra.mxu0 %v2442
    %2654 = vmatpush.bf16.msra.mxu0 %v2440
    %2655 = vmatpush.bf16.msra.mxu0 %v2438
    %2656 = vmatpush.bf16.msra.mxu0 %v2436
    %2657 = vmatpush.bf16.msra.mxu0 %v2434
    %2658 = vmatpush.bf16.msra.mxu0 %v2432
    %2659 = vmatmul.bf16.gmra.mxu0 %v1988
    %v2660 = vpop.f32.mrf.mxu0
    %v2661 = vadd.f32 %v2648, %v2660
    %v2662 = vpop.f32.mrf.mxu0
    %2663 = vdwg.mxu0
    %2664 = vmatpush.bf16.msra.mxu0 0
    %2665 = vmatpush.bf16.msra.mxu0 0
    %2666 = vmatpush.bf16.msra.mxu0 0
    %2667 = vmatpush.bf16.msra.mxu0 0
    %2668 = vmatpush.bf16.msra.mxu0 0
    %2669 = vmatpush.bf16.msra.mxu0 0
    %2670 = vmatpush.bf16.msra.mxu0 0
    %2671 = vmatpush.bf16.msra.mxu0 %v2568
    %2672 = vmatmul.bf16.gmra.mxu0 %v2564
    %v2673 = vpop.f32.mrf.mxu0
    %v2674 = vadd.f32 %v2661, %v2673
    %v2675 = vpop.f32.mrf.mxu0
    %2676 = vdwg.mxu0
    %2677 = vmatpush.bf16.msra.mxu0 %v2351
    %2678 = vmatpush.bf16.msra.mxu0 %v2349
    %2679 = vmatpush.bf16.msra.mxu0 %v2347
    %2680 = vmatpush.bf16.msra.mxu0 %v2345
    %2681 = vmatpush.bf16.msra.mxu0 %v2343
    %2682 = vmatpush.bf16.msra.mxu0 %v2341
    %2683 = vmatpush.bf16.msra.mxu0 %v2339
    %2684 = vmatpush.bf16.msra.mxu0 %v2337
    %2685 = vmatmul.bf16.gmra.mxu0 %v1982
    %v2686 = vpop.f32.mrf.mxu0
    %v2687 = vadd.f32 0.0, %v2686
    %v2688 = vpop.f32.mrf.mxu0
    %2689 = vdwg.mxu0
    %2690 = vmatpush.bf16.msra.mxu0 %v2367
    %2691 = vmatpush.bf16.msra.mxu0 %v2365
    %2692 = vmatpush.bf16.msra.mxu0 %v2363
    %2693 = vmatpush.bf16.msra.mxu0 %v2361
    %2694 = vmatpush.bf16.msra.mxu0 %v2359
    %2695 = vmatpush.bf16.msra.mxu0 %v2357
    %2696 = vmatpush.bf16.msra.mxu0 %v2355
    %2697 = vmatpush.bf16.msra.mxu0 %v2353
    %2698 = vmatmul.bf16.gmra.mxu0 %v1983
    %v2699 = vpop.f32.mrf.mxu0
    %v2700 = vadd.f32 %v2687, %v2699
    %v2701 = vpop.f32.mrf.mxu0
    %2702 = vdwg.mxu0
    %2703 = vmatpush.bf16.msra.mxu0 %v2383
    %2704 = vmatpush.bf16.msra.mxu0 %v2381
    %2705 = vmatpush.bf16.msra.mxu0 %v2379
    %2706 = vmatpush.bf16.msra.mxu0 %v2377
    %2707 = vmatpush.bf16.msra.mxu0 %v2375
    %2708 = vmatpush.bf16.msra.mxu0 %v2373
    %2709 = vmatpush.bf16.msra.mxu0 %v2371
    %2710 = vmatpush.bf16.msra.mxu0 %v2369
    %2711 = vmatmul.bf16.gmra.mxu0 %v1984
    %v2712 = vpop.f32.mrf.mxu0
    %v2713 = vadd.f32 %v2700, %v2712
    %v2714 = vpop.f32.mrf.mxu0
    %2715 = vdwg.mxu0
    %2716 = vmatpush.bf16.msra.mxu0 %v2399
    %2717 = vmatpush.bf16.msra.mxu0 %v2397
    %2718 = vmatpush.bf16.msra.mxu0 %v2395
    %2719 = vmatpush.bf16.msra.mxu0 %v2393
    %2720 = vmatpush.bf16.msra.mxu0 %v2391
    %2721 = vmatpush.bf16.msra.mxu0 %v2389
    %2722 = vmatpush.bf16.msra.mxu0 %v2387
    %2723 = vmatpush.bf16.msra.mxu0 %v2385
    %2724 = vmatmul.bf16.gmra.mxu0 %v1985
    %v2725 = vpop.f32.mrf.mxu0
    %v2726 = vadd.f32 %v2713, %v2725
    %v2727 = vpop.f32.mrf.mxu0
    %2728 = vdwg.mxu0
    %2729 = vmatpush.bf16.msra.mxu0 %v2415
    %2730 = vmatpush.bf16.msra.mxu0 %v2413
    %2731 = vmatpush.bf16.msra.mxu0 %v2411
    %2732 = vmatpush.bf16.msra.mxu0 %v2409
    %2733 = vmatpush.bf16.msra.mxu0 %v2407
    %2734 = vmatpush.bf16.msra.mxu0 %v2405
    %2735 = vmatpush.bf16.msra.mxu0 %v2403
    %2736 = vmatpush.bf16.msra.mxu0 %v2401
    %2737 = vmatmul.bf16.gmra.mxu0 %v1986
    %v2738 = vpop.f32.mrf.mxu0
    %v2739 = vadd.f32 %v2726, %v2738
    %v2740 = vpop.f32.mrf.mxu0
    %2741 = vdwg.mxu0
    %2742 = vmatpush.bf16.msra.mxu0 %v2431
    %2743 = vmatpush.bf16.msra.mxu0 %v2429
    %2744 = vmatpush.bf16.msra.mxu0 %v2427
    %2745 = vmatpush.bf16.msra.mxu0 %v2425
    %2746 = vmatpush.bf16.msra.mxu0 %v2423
    %2747 = vmatpush.bf16.msra.mxu0 %v2421
    %2748 = vmatpush.bf16.msra.mxu0 %v2419
    %2749 = vmatpush.bf16.msra.mxu0 %v2417
    %2750 = vmatmul.bf16.gmra.mxu0 %v1987
    %v2751 = vpop.f32.mrf.mxu0
    %v2752 = vadd.f32 %v2739, %v2751
    %v2753 = vpop.f32.mrf.mxu0
    %2754 = vdwg.mxu0
    %2755 = vmatpush.bf16.msra.mxu0 %v2447
    %2756 = vmatpush.bf16.msra.mxu0 %v2445
    %2757 = vmatpush.bf16.msra.mxu0 %v2443
    %2758 = vmatpush.bf16.msra.mxu0 %v2441
    %2759 = vmatpush.bf16.msra.mxu0 %v2439
    %2760 = vmatpush.bf16.msra.mxu0 %v2437
    %2761 = vmatpush.bf16.msra.mxu0 %v2435
    %2762 = vmatpush.bf16.msra.mxu0 %v2433
    %2763 = vmatmul.bf16.gmra.mxu0 %v1988
    %v2764 = vpop.f32.mrf.mxu0
    %v2765 = vadd.f32 %v2752, %v2764
    %v2766 = vpop.f32.mrf.mxu0
    %2767 = vdwg.mxu0
    %2768 = vmatpush.bf16.msra.mxu0 0
    %2769 = vmatpush.bf16.msra.mxu0 0
    %2770 = vmatpush.bf16.msra.mxu0 0
    %2771 = vmatpush.bf16.msra.mxu0 0
    %2772 = vmatpush.bf16.msra.mxu0 0
    %2773 = vmatpush.bf16.msra.mxu0 0
    %2774 = vmatpush.bf16.msra.mxu0 0
    %2775 = vmatpush.bf16.msra.mxu0 %v2571
    %2776 = vmatmul.bf16.gmra.mxu0 %v2564
    %v2777 = vpop.f32.mrf.mxu0
    %v2778 = vadd.f32 %v2765, %v2777
    %v2779 = vpop.f32.mrf.mxu0
    %2780 = vdwg.mxu0
    %v2785 = vunpack.c.l.b16 %v1853
    %v2786 = vunpack.c.h.b16 %v1853
    %v2787 = vunpack.c.l.b16 %v1854
    %v2788 = vunpack.c.h.b16 %v1854
    %v2789 = vunpack.c.l.b16 %v1855
    %v2790 = vunpack.c.h.b16 %v1855
    %v2791 = vunpack.c.l.b16 %v1856
    %v2792 = vpack.c.b16 %v2785, %v2785
    %v2793 = vpack.c.b16 %v2786, %v2786
    %v2794 = vpack.c.b16 %v2787, %v2787
    %v2795 = vpack.c.b16 %v2788, %v2788
    %v2796 = vpack.c.b16 %v2789, %v2789
    %v2797 = vpack.c.b16 %v2790, %v2790
    %v2798 = vpack.c.b16 %v2791, %v2791
    %2799 = vrot.lane.b32.xlu0 %v1989, 124
    %v2800 = vpop.permute.xlu0 %2799
    %2801 = vrot.lane.b32.xlu0 %v2792, 124
    %v2802 = vpop.permute.xlu0 %2801
    %2803 = vrot.lane.b32.xlu0 %v2793, 124
    %v2804 = vpop.permute.xlu0 %2803
    %2805 = vrot.lane.b32.xlu0 %v2794, 124
    %v2806 = vpop.permute.xlu0 %2805
    %2807 = vrot.lane.b32.xlu0 %v2795, 124
    %v2808 = vpop.permute.xlu0 %2807
    %2809 = vrot.lane.b32.xlu0 %v2796, 124
    %v2810 = vpop.permute.xlu0 %2809
    %2811 = vrot.lane.b32.xlu0 %v2797, 124
    %v2812 = vpop.permute.xlu0 %2811
    %2813 = vrot.lane.b32.xlu0 %v2798, 124
    %v2814 = vpop.permute.xlu0 %2813
    %vm2815 = vcmask 1014784
    %v2816 = vsel %vm2815, %v2800, %v2802
    %v2817 = vsel %vm2815, %v2802, %v2804
    %v2818 = vsel %vm2815, %v2804, %v2806
    %v2819 = vsel %vm2815, %v2806, %v2808
    %v2820 = vsel %vm2815, %v2808, %v2810
    %v2821 = vsel %vm2815, %v2810, %v2812
    %v2822 = vsel %vm2815, %v2812, %v2814
    %v2831 = vsel %vm2562, %v2814, 0
    %2833 = vmatpush.bf16.msra.mxu0 %v2350
    %2834 = vmatpush.bf16.msra.mxu0 %v2348
    %2835 = vmatpush.bf16.msra.mxu0 %v2346
    %2836 = vmatpush.bf16.msra.mxu0 %v2344
    %2837 = vmatpush.bf16.msra.mxu0 %v2342
    %2838 = vmatpush.bf16.msra.mxu0 %v2340
    %2839 = vmatpush.bf16.msra.mxu0 %v2338
    %2840 = vmatpush.bf16.msra.mxu0 %v2336
    %2841 = vmatmul.bf16.gmra.mxu0 %v2816
    %v2842 = vpop.f32.mrf.mxu0
    %v2843 = vadd.f32 0.0, %v2842
    %v2844 = vpop.f32.mrf.mxu0
    %2845 = vdwg.mxu0
    %2846 = vmatpush.bf16.msra.mxu0 %v2366
    %2847 = vmatpush.bf16.msra.mxu0 %v2364
    %2848 = vmatpush.bf16.msra.mxu0 %v2362
    %2849 = vmatpush.bf16.msra.mxu0 %v2360
    %2850 = vmatpush.bf16.msra.mxu0 %v2358
    %2851 = vmatpush.bf16.msra.mxu0 %v2356
    %2852 = vmatpush.bf16.msra.mxu0 %v2354
    %2853 = vmatpush.bf16.msra.mxu0 %v2352
    %2854 = vmatmul.bf16.gmra.mxu0 %v2817
    %v2855 = vpop.f32.mrf.mxu0
    %v2856 = vadd.f32 %v2843, %v2855
    %v2857 = vpop.f32.mrf.mxu0
    %2858 = vdwg.mxu0
    %2859 = vmatpush.bf16.msra.mxu0 %v2382
    %2860 = vmatpush.bf16.msra.mxu0 %v2380
    %2861 = vmatpush.bf16.msra.mxu0 %v2378
    %2862 = vmatpush.bf16.msra.mxu0 %v2376
    %2863 = vmatpush.bf16.msra.mxu0 %v2374
    %2864 = vmatpush.bf16.msra.mxu0 %v2372
    %2865 = vmatpush.bf16.msra.mxu0 %v2370
    %2866 = vmatpush.bf16.msra.mxu0 %v2368
    %2867 = vmatmul.bf16.gmra.mxu0 %v2818
    %v2868 = vpop.f32.mrf.mxu0
    %v2869 = vadd.f32 %v2856, %v2868
    %v2870 = vpop.f32.mrf.mxu0
    %2871 = vdwg.mxu0
    %2872 = vmatpush.bf16.msra.mxu0 %v2398
    %2873 = vmatpush.bf16.msra.mxu0 %v2396
    %2874 = vmatpush.bf16.msra.mxu0 %v2394
    %2875 = vmatpush.bf16.msra.mxu0 %v2392
    %2876 = vmatpush.bf16.msra.mxu0 %v2390
    %2877 = vmatpush.bf16.msra.mxu0 %v2388
    %2878 = vmatpush.bf16.msra.mxu0 %v2386
    %2879 = vmatpush.bf16.msra.mxu0 %v2384
    %2880 = vmatmul.bf16.gmra.mxu0 %v2819
    %v2881 = vpop.f32.mrf.mxu0
    %v2882 = vadd.f32 %v2869, %v2881
    %v2883 = vpop.f32.mrf.mxu0
    %2884 = vdwg.mxu0
    %2885 = vmatpush.bf16.msra.mxu0 %v2414
    %2886 = vmatpush.bf16.msra.mxu0 %v2412
    %2887 = vmatpush.bf16.msra.mxu0 %v2410
    %2888 = vmatpush.bf16.msra.mxu0 %v2408
    %2889 = vmatpush.bf16.msra.mxu0 %v2406
    %2890 = vmatpush.bf16.msra.mxu0 %v2404
    %2891 = vmatpush.bf16.msra.mxu0 %v2402
    %2892 = vmatpush.bf16.msra.mxu0 %v2400
    %2893 = vmatmul.bf16.gmra.mxu0 %v2820
    %v2894 = vpop.f32.mrf.mxu0
    %v2895 = vadd.f32 %v2882, %v2894
    %v2896 = vpop.f32.mrf.mxu0
    %2897 = vdwg.mxu0
    %2898 = vmatpush.bf16.msra.mxu0 %v2430
    %2899 = vmatpush.bf16.msra.mxu0 %v2428
    %2900 = vmatpush.bf16.msra.mxu0 %v2426
    %2901 = vmatpush.bf16.msra.mxu0 %v2424
    %2902 = vmatpush.bf16.msra.mxu0 %v2422
    %2903 = vmatpush.bf16.msra.mxu0 %v2420
    %2904 = vmatpush.bf16.msra.mxu0 %v2418
    %2905 = vmatpush.bf16.msra.mxu0 %v2416
    %2906 = vmatmul.bf16.gmra.mxu0 %v2821
    %v2907 = vpop.f32.mrf.mxu0
    %v2908 = vadd.f32 %v2895, %v2907
    %v2909 = vpop.f32.mrf.mxu0
    %2910 = vdwg.mxu0
    %2911 = vmatpush.bf16.msra.mxu0 %v2446
    %2912 = vmatpush.bf16.msra.mxu0 %v2444
    %2913 = vmatpush.bf16.msra.mxu0 %v2442
    %2914 = vmatpush.bf16.msra.mxu0 %v2440
    %2915 = vmatpush.bf16.msra.mxu0 %v2438
    %2916 = vmatpush.bf16.msra.mxu0 %v2436
    %2917 = vmatpush.bf16.msra.mxu0 %v2434
    %2918 = vmatpush.bf16.msra.mxu0 %v2432
    %2919 = vmatmul.bf16.gmra.mxu0 %v2822
    %v2920 = vpop.f32.mrf.mxu0
    %v2921 = vadd.f32 %v2908, %v2920
    %v2922 = vpop.f32.mrf.mxu0
    %2923 = vdwg.mxu0
    %2924 = vmatpush.bf16.msra.mxu0 0
    %2925 = vmatpush.bf16.msra.mxu0 0
    %2926 = vmatpush.bf16.msra.mxu0 0
    %2927 = vmatpush.bf16.msra.mxu0 0
    %2928 = vmatpush.bf16.msra.mxu0 0
    %2929 = vmatpush.bf16.msra.mxu0 0
    %2930 = vmatpush.bf16.msra.mxu0 0
    %2931 = vmatpush.bf16.msra.mxu0 %v2568
    %2932 = vmatmul.bf16.gmra.mxu0 %v2831
    %v2933 = vpop.f32.mrf.mxu0
    %v2934 = vadd.f32 %v2921, %v2933
    %v2935 = vpop.f32.mrf.mxu0
    %2936 = vdwg.mxu0
    %2937 = vmatpush.bf16.msra.mxu0 %v2351
    %2938 = vmatpush.bf16.msra.mxu0 %v2349
    %2939 = vmatpush.bf16.msra.mxu0 %v2347
    %2940 = vmatpush.bf16.msra.mxu0 %v2345
    %2941 = vmatpush.bf16.msra.mxu0 %v2343
    %2942 = vmatpush.bf16.msra.mxu0 %v2341
    %2943 = vmatpush.bf16.msra.mxu0 %v2339
    %2944 = vmatpush.bf16.msra.mxu0 %v2337
    %2945 = vmatmul.bf16.gmra.mxu0 %v2816
    %v2946 = vpop.f32.mrf.mxu0
    %v2947 = vadd.f32 0.0, %v2946
    %v2948 = vpop.f32.mrf.mxu0
    %2949 = vdwg.mxu0
    %2950 = vmatpush.bf16.msra.mxu0 %v2367
    %2951 = vmatpush.bf16.msra.mxu0 %v2365
    %2952 = vmatpush.bf16.msra.mxu0 %v2363
    %2953 = vmatpush.bf16.msra.mxu0 %v2361
    %2954 = vmatpush.bf16.msra.mxu0 %v2359
    %2955 = vmatpush.bf16.msra.mxu0 %v2357
    %2956 = vmatpush.bf16.msra.mxu0 %v2355
    %2957 = vmatpush.bf16.msra.mxu0 %v2353
    %2958 = vmatmul.bf16.gmra.mxu0 %v2817
    %v2959 = vpop.f32.mrf.mxu0
    %v2960 = vadd.f32 %v2947, %v2959
    %v2961 = vpop.f32.mrf.mxu0
    %2962 = vdwg.mxu0
    %2963 = vmatpush.bf16.msra.mxu0 %v2383
    %2964 = vmatpush.bf16.msra.mxu0 %v2381
    %2965 = vmatpush.bf16.msra.mxu0 %v2379
    %2966 = vmatpush.bf16.msra.mxu0 %v2377
    %2967 = vmatpush.bf16.msra.mxu0 %v2375
    %2968 = vmatpush.bf16.msra.mxu0 %v2373
    %2969 = vmatpush.bf16.msra.mxu0 %v2371
    %2970 = vmatpush.bf16.msra.mxu0 %v2369
    %2971 = vmatmul.bf16.gmra.mxu0 %v2818
    %v2972 = vpop.f32.mrf.mxu0
    %v2973 = vadd.f32 %v2960, %v2972
    %v2974 = vpop.f32.mrf.mxu0
    %2975 = vdwg.mxu0
    %2976 = vmatpush.bf16.msra.mxu0 %v2399
    %2977 = vmatpush.bf16.msra.mxu0 %v2397
    %2978 = vmatpush.bf16.msra.mxu0 %v2395
    %2979 = vmatpush.bf16.msra.mxu0 %v2393
    %2980 = vmatpush.bf16.msra.mxu0 %v2391
    %2981 = vmatpush.bf16.msra.mxu0 %v2389
    %2982 = vmatpush.bf16.msra.mxu0 %v2387
    %2983 = vmatpush.bf16.msra.mxu0 %v2385
    %2984 = vmatmul.bf16.gmra.mxu0 %v2819
    %v2985 = vpop.f32.mrf.mxu0
    %v2986 = vadd.f32 %v2973, %v2985
    %v2987 = vpop.f32.mrf.mxu0
    %2988 = vdwg.mxu0
    %2989 = vmatpush.bf16.msra.mxu0 %v2415
    %2990 = vmatpush.bf16.msra.mxu0 %v2413
    %2991 = vmatpush.bf16.msra.mxu0 %v2411
    %2992 = vmatpush.bf16.msra.mxu0 %v2409
    %2993 = vmatpush.bf16.msra.mxu0 %v2407
    %2994 = vmatpush.bf16.msra.mxu0 %v2405
    %2995 = vmatpush.bf16.msra.mxu0 %v2403
    %2996 = vmatpush.bf16.msra.mxu0 %v2401
    %2997 = vmatmul.bf16.gmra.mxu0 %v2820
    %v2998 = vpop.f32.mrf.mxu0
    %v2999 = vadd.f32 %v2986, %v2998
    %v3000 = vpop.f32.mrf.mxu0
    %3001 = vdwg.mxu0
    %3002 = vmatpush.bf16.msra.mxu0 %v2431
    %3003 = vmatpush.bf16.msra.mxu0 %v2429
    %3004 = vmatpush.bf16.msra.mxu0 %v2427
    %3005 = vmatpush.bf16.msra.mxu0 %v2425
    %3006 = vmatpush.bf16.msra.mxu0 %v2423
    %3007 = vmatpush.bf16.msra.mxu0 %v2421
    %3008 = vmatpush.bf16.msra.mxu0 %v2419
    %3009 = vmatpush.bf16.msra.mxu0 %v2417
    %3010 = vmatmul.bf16.gmra.mxu0 %v2821
    %v3011 = vpop.f32.mrf.mxu0
    %v3012 = vadd.f32 %v2999, %v3011
    %v3013 = vpop.f32.mrf.mxu0
    %3014 = vdwg.mxu0
    %3015 = vmatpush.bf16.msra.mxu0 %v2447
    %3016 = vmatpush.bf16.msra.mxu0 %v2445
    %3017 = vmatpush.bf16.msra.mxu0 %v2443
    %3018 = vmatpush.bf16.msra.mxu0 %v2441
    %3019 = vmatpush.bf16.msra.mxu0 %v2439
    %3020 = vmatpush.bf16.msra.mxu0 %v2437
    %3021 = vmatpush.bf16.msra.mxu0 %v2435
    %3022 = vmatpush.bf16.msra.mxu0 %v2433
    %3023 = vmatmul.bf16.gmra.mxu0 %v2822
    %v3024 = vpop.f32.mrf.mxu0
    %v3025 = vadd.f32 %v3012, %v3024
    %v3026 = vpop.f32.mrf.mxu0
    %3027 = vdwg.mxu0
    %3028 = vmatpush.bf16.msra.mxu0 0
    %3029 = vmatpush.bf16.msra.mxu0 0
    %3030 = vmatpush.bf16.msra.mxu0 0
    %3031 = vmatpush.bf16.msra.mxu0 0
    %3032 = vmatpush.bf16.msra.mxu0 0
    %3033 = vmatpush.bf16.msra.mxu0 0
    %3034 = vmatpush.bf16.msra.mxu0 0
    %3035 = vmatpush.bf16.msra.mxu0 %v2571
    %3036 = vmatmul.bf16.gmra.mxu0 %v2831
    %v3037 = vpop.f32.mrf.mxu0
    %v3038 = vadd.f32 %v3025, %v3037
    %v3039 = vpop.f32.mrf.mxu0
    %3040 = vdwg.mxu0
    %v3041 = vpack.c.bf16 %v2778, %v2674
    %v3042 = vpack.c.bf16 %v3038, %v2934
    %v3043 = vpack.c.bf16 0.0, 0.0
    %v3047 = vunpack.c.l.b16 %v3041
    %v3048 = vunpack.c.h.b16 %v3041
    %v3049 = vunpack.c.l.b16 %v3042
    %v3050 = vunpack.c.h.b16 %v3042
    %v3051 = vunpack.c.l.b16 %v3043
    %v3052 = vpack.c.b16 %v3047, %v3047
    %v3053 = vpack.c.b16 %v3048, %v3048
    %v3054 = vpack.c.b16 %v3049, %v3049
    %v3055 = vpack.c.b16 %v3050, %v3050
    %v3056 = vpack.c.b16 %v3051, %v3051
    %3057 = vrot.lane.b32.xlu0 %v3052, 127
    %v3058 = vpop.permute.xlu0 %3057
    %3059 = vrot.lane.b32.xlu0 %v3053, 127
    %v3060 = vpop.permute.xlu0 %3059
    %3061 = vrot.lane.b32.xlu0 %v3054, 127
    %v3062 = vpop.permute.xlu0 %3061
    %3063 = vrot.lane.b32.xlu0 %v3055, 127
    %v3064 = vpop.permute.xlu0 %3063
    %3065 = vrot.lane.b32.xlu0 %v3056, 127
    %v3066 = vpop.permute.xlu0 %3065
    %vm3067 = vcmask 1039360
    %v3068 = vsel %vm3067, %v3058, %v3060
    %v3069 = vsel %vm3067, %v3060, %v3062
    %v3070 = vsel %vm3067, %v3062, %v3064
    %v3071 = vsel %vm3067, %v3064, %v3066
    %3072 = vrot.lane.b32.xlu0 %v3052, 126
    %v3073 = vpop.permute.xlu0 %3072
    %3074 = vrot.lane.b32.xlu0 %v3053, 126
    %v3075 = vpop.permute.xlu0 %3074
    %3076 = vrot.lane.b32.xlu0 %v3054, 126
    %v3077 = vpop.permute.xlu0 %3076
    %3078 = vrot.lane.b32.xlu0 %v3055, 126
    %v3079 = vpop.permute.xlu0 %3078
    %3080 = vrot.lane.b32.xlu0 %v3056, 126
    %v3081 = vpop.permute.xlu0 %3080
    %vm3082 = vcmask 1031168
    %v3083 = vsel %vm3082, %v3073, %v3075
    %v3084 = vsel %vm3082, %v3075, %v3077
    %v3085 = vsel %vm3082, %v3077, %v3079
    %v3086 = vsel %vm3082, %v3079, %v3081
    %3087 = vrot.lane.b32.xlu0 %v3052, 112
    %v3088 = vpop.permute.xlu0 %3087
    %3089 = vrot.lane.b32.xlu0 %v3053, 112
    %v3090 = vpop.permute.xlu0 %3089
    %3091 = vrot.lane.b32.xlu0 %v3054, 112
    %v3092 = vpop.permute.xlu0 %3091
    %3093 = vrot.lane.b32.xlu0 %v3055, 112
    %v3094 = vpop.permute.xlu0 %3093
    %3095 = vrot.lane.b32.xlu0 %v3056, 112
    %v3096 = vpop.permute.xlu0 %3095
    %vm3097 = vcmask 916480
    %v3098 = vsel %vm3097, %v3088, %v3090
    %v3099 = vsel %vm3097, %v3090, %v3092
    %v3100 = vsel %vm3097, %v3092, %v3094
    %v3101 = vsel %vm3097, %v3094, %v3096
    %3102 = vrot.lane.b32.xlu0 %v3052, 111
    %v3103 = vpop.permute.xlu0 %3102
    %3104 = vrot.lane.b32.xlu0 %v3053, 111
    %v3105 = vpop.permute.xlu0 %3104
    %3106 = vrot.lane.b32.xlu0 %v3054, 111
    %v3107 = vpop.permute.xlu0 %3106
    %3108 = vrot.lane.b32.xlu0 %v3055, 111
    %v3109 = vpop.permute.xlu0 %3108
    %3110 = vrot.lane.b32.xlu0 %v3056, 111
    %v3111 = vpop.permute.xlu0 %3110
    %vm3112 = vcmask 908288
    %v3113 = vsel %vm3112, %v3103, %v3105
    %v3114 = vsel %vm3112, %v3105, %v3107
    %v3115 = vsel %vm3112, %v3107, %v3109
    %v3116 = vsel %vm3112, %v3109, %v3111
    %3117 = vrot.lane.b32.xlu0 %v3052, 110
    %v3118 = vpop.permute.xlu0 %3117
    %3119 = vrot.lane.b32.xlu0 %v3053, 110
    %v3120 = vpop.permute.xlu0 %3119
    %3121 = vrot.lane.b32.xlu0 %v3054, 110
    %v3122 = vpop.permute.xlu0 %3121
    %3123 = vrot.lane.b32.xlu0 %v3055, 110
    %v3124 = vpop.permute.xlu0 %3123
    %3125 = vrot.lane.b32.xlu0 %v3056, 110
    %v3126 = vpop.permute.xlu0 %3125
    %vm3127 = vcmask 900096
    %v3128 = vsel %vm3127, %v3118, %v3120
    %v3129 = vsel %vm3127, %v3120, %v3122
    %v3130 = vsel %vm3127, %v3122, %v3124
    %v3131 = vsel %vm3127, %v3124, %v3126
    %3132 = vrot.lane.b32.xlu0 %v3052, 96
    %v3133 = vpop.permute.xlu0 %3132
    %3134 = vrot.lane.b32.xlu0 %v3053, 96
    %v3135 = vpop.permute.xlu0 %3134
    %3136 = vrot.lane.b32.xlu0 %v3054, 96
    %v3137 = vpop.permute.xlu0 %3136
    %3138 = vrot.lane.b32.xlu0 %v3055, 96
    %v3139 = vpop.permute.xlu0 %3138
    %3140 = vrot.lane.b32.xlu0 %v3056, 96
    %v3141 = vpop.permute.xlu0 %3140
    %vm3142 = vcmask 785408
    %v3143 = vsel %vm3142, %v3133, %v3135
    %v3144 = vsel %vm3142, %v3135, %v3137
    %v3145 = vsel %vm3142, %v3137, %v3139
    %v3146 = vsel %vm3142, %v3139, %v3141
    %3147 = vrot.lane.b32.xlu0 %v3052, 95
    %v3148 = vpop.permute.xlu0 %3147
    %3149 = vrot.lane.b32.xlu0 %v3053, 95
    %v3150 = vpop.permute.xlu0 %3149
    %3151 = vrot.lane.b32.xlu0 %v3054, 95
    %v3152 = vpop.permute.xlu0 %3151
    %3153 = vrot.lane.b32.xlu0 %v3055, 95
    %v3154 = vpop.permute.xlu0 %3153
    %3155 = vrot.lane.b32.xlu0 %v3056, 95
    %v3156 = vpop.permute.xlu0 %3155
    %vm3157 = vcmask 777216
    %v3158 = vsel %vm3157, %v3148, %v3150
    %v3159 = vsel %vm3157, %v3150, %v3152
    %v3160 = vsel %vm3157, %v3152, %v3154
    %v3161 = vsel %vm3157, %v3154, %v3156
    %3162 = vrot.lane.b32.xlu0 %v3052, 94
    %v3163 = vpop.permute.xlu0 %3162
    %3164 = vrot.lane.b32.xlu0 %v3053, 94
    %v3165 = vpop.permute.xlu0 %3164
    %3166 = vrot.lane.b32.xlu0 %v3054, 94
    %v3167 = vpop.permute.xlu0 %3166
    %3168 = vrot.lane.b32.xlu0 %v3055, 94
    %v3169 = vpop.permute.xlu0 %3168
    %3170 = vrot.lane.b32.xlu0 %v3056, 94
    %v3171 = vpop.permute.xlu0 %3170
    %vm3172 = vcmask 769024
    %v3173 = vsel %vm3172, %v3163, %v3165
    %v3174 = vsel %vm3172, %v3165, %v3167
    %v3175 = vsel %vm3172, %v3167, %v3169
    %v3176 = vsel %vm3172, %v3169, %v3171
    %vm3177 = vcmask 1043456
    %v3180 = vsel %vm3177, %v3052, %v3068
    %v3184 = vsel %vm3177, %v3053, %v3069
    %v3188 = vsel %vm3177, %v3054, %v3070
    %v3192 = vsel %vm3177, %v3055, %v3071
    %v3196 = vsel %vm3177, %v3056, %v3066
    %v3200 = vsel %vm3177, %v3083, %v3098
    %v3204 = vsel %vm3177, %v3084, %v3099
    %v3208 = vsel %vm3177, %v3085, %v3100
    %v3212 = vsel %vm3177, %v3086, %v3101
    %v3216 = vsel %vm3177, %v3081, %v3096
    %v3220 = vsel %vm3177, %v3113, %v3128
    %v3224 = vsel %vm3177, %v3114, %v3129
    %v3228 = vsel %vm3177, %v3115, %v3130
    %v3232 = vsel %vm3177, %v3116, %v3131
    %v3236 = vsel %vm3177, %v3111, %v3126
    %v3240 = vsel %vm3177, %v3143, %v3158
    %v3244 = vsel %vm3177, %v3144, %v3159
    %v3248 = vsel %vm3177, %v3145, %v3160
    %v3252 = vsel %vm3177, %v3146, %v3161
    %v3256 = vsel %vm3177, %v3141, %v3156
    %v3258 = vld [vmem:[%s4] sm:$0xf]
    %v3259 = vld [vmem:[%s4 + $0x4] sm:$0xf]
    %v3262 = vunpack.c.l.b16 %v3258
    %v3263 = vunpack.c.l.b16 %v3259
    %v3264 = vpack.c.b16 %v3263, %v3262
    %vm3265 = vcmask 588800
    %v3267 = vsel %vm3265, %v3264, 0
    %v3270 = vsel %vm3177, %v3173, 0
    %v3273 = vsel %vm3177, %v3174, 0
    %v3276 = vsel %vm3177, %v3175, 0
    %v3279 = vsel %vm3177, %v3176, 0
    %v3282 = vsel %vm3177, %v3171, 0
    %3284 = vmatpush.bf16.msra.mxu0 0
    %3285 = vmatpush.bf16.msra.mxu0 0
    %3286 = vmatpush.bf16.msra.mxu0 0
    %3287 = vmatpush.bf16.msra.mxu0 %v3270
    %3288 = vmatpush.bf16.msra.mxu0 %v3240
    %3289 = vmatpush.bf16.msra.mxu0 %v3220
    %3290 = vmatpush.bf16.msra.mxu0 %v3200
    %3291 = vmatpush.bf16.msra.mxu0 %v3180
    %3292 = vmatmul.bf16.gmra.mxu0 %v3267
    %v3293 = vpop.f32.mrf.mxu0
    %v3294 = vadd.f32 0.0, %v3293
    %v3295 = vpop.f32.mrf.mxu0
    %v3296 = vadd.f32 0.0, %v3295
    %3297 = vdwg.mxu0
    %3298 = vmatpush.bf16.msra.mxu0 0
    %3299 = vmatpush.bf16.msra.mxu0 0
    %3300 = vmatpush.bf16.msra.mxu0 0
    %3301 = vmatpush.bf16.msra.mxu0 %v3273
    %3302 = vmatpush.bf16.msra.mxu0 %v3244
    %3303 = vmatpush.bf16.msra.mxu0 %v3224
    %3304 = vmatpush.bf16.msra.mxu0 %v3204
    %3305 = vmatpush.bf16.msra.mxu0 %v3184
    %3306 = vmatmul.bf16.gmra.mxu0 %v3267
    %v3307 = vpop.f32.mrf.mxu0
    %v3308 = vadd.f32 0.0, %v3307
    %v3309 = vpop.f32.mrf.mxu0
    %v3310 = vadd.f32 0.0, %v3309
    %3311 = vdwg.mxu0
    %3312 = vmatpush.bf16.msra.mxu0 0
    %3313 = vmatpush.bf16.msra.mxu0 0
    %3314 = vmatpush.bf16.msra.mxu0 0
    %3315 = vmatpush.bf16.msra.mxu0 %v3276
    %3316 = vmatpush.bf16.msra.mxu0 %v3248
    %3317 = vmatpush.bf16.msra.mxu0 %v3228
    %3318 = vmatpush.bf16.msra.mxu0 %v3208
    %3319 = vmatpush.bf16.msra.mxu0 %v3188
    %3320 = vmatmul.bf16.gmra.mxu0 %v3267
    %v3321 = vpop.f32.mrf.mxu0
    %v3322 = vadd.f32 0.0, %v3321
    %v3323 = vpop.f32.mrf.mxu0
    %v3324 = vadd.f32 0.0, %v3323
    %3325 = vdwg.mxu0
    %3326 = vmatpush.bf16.msra.mxu0 0
    %3327 = vmatpush.bf16.msra.mxu0 0
    %3328 = vmatpush.bf16.msra.mxu0 0
    %3329 = vmatpush.bf16.msra.mxu0 %v3279
    %3330 = vmatpush.bf16.msra.mxu0 %v3252
    %3331 = vmatpush.bf16.msra.mxu0 %v3232
    %3332 = vmatpush.bf16.msra.mxu0 %v3212
    %3333 = vmatpush.bf16.msra.mxu0 %v3192
    %3334 = vmatmul.bf16.gmra.mxu0 %v3267
    %v3335 = vpop.f32.mrf.mxu0
    %v3336 = vadd.f32 0.0, %v3335
    %v3337 = vpop.f32.mrf.mxu0
    %v3338 = vadd.f32 0.0, %v3337
    %3339 = vdwg.mxu0
    %3340 = vmatpush.bf16.msra.mxu0 0
    %3341 = vmatpush.bf16.msra.mxu0 0
    %3342 = vmatpush.bf16.msra.mxu0 0
    %3343 = vmatpush.bf16.msra.mxu0 %v3282
    %3344 = vmatpush.bf16.msra.mxu0 %v3256
    %3345 = vmatpush.bf16.msra.mxu0 %v3236
    %3346 = vmatpush.bf16.msra.mxu0 %v3216
    %3347 = vmatpush.bf16.msra.mxu0 %v3196
    %3348 = vmatmul.bf16.gmra.mxu0 %v3267
    %v3349 = vpop.f32.mrf.mxu0
    %v3350 = vadd.f32 0.0, %v3349
    %v3351 = vpop.f32.mrf.mxu0
    %v3352 = vadd.f32 0.0, %v3351
    %3353 = vdwg.mxu0
    %3364 = vrot.lane.b32.xlu0 %v3294, 127
    %v3365 = vpop.permute.xlu0 %3364
    %3366 = vrot.lane.b32.xlu0 %v3308, 127
    %v3367 = vpop.permute.xlu0 %3366
    %3368 = vrot.lane.b32.xlu0 %v3322, 127
    %v3369 = vpop.permute.xlu0 %3368
    %3370 = vrot.lane.b32.xlu0 %v3336, 127
    %v3371 = vpop.permute.xlu0 %3370
    %3372 = vrot.lane.b32.xlu0 %v3350, 127
    %v3373 = vpop.permute.xlu0 %3372
    %3374 = vrot.lane.b32.xlu0 %v3296, 127
    %v3375 = vpop.permute.xlu0 %3374
    %3376 = vrot.lane.b32.xlu0 %v3310, 127
    %v3377 = vpop.permute.xlu0 %3376
    %3378 = vrot.lane.b32.xlu0 %v3324, 127
    %v3379 = vpop.permute.xlu0 %3378
    %3380 = vrot.lane.b32.xlu0 %v3338, 127
    %v3381 = vpop.permute.xlu0 %3380
    %3382 = vrot.lane.b32.xlu0 %v3352, 127
    %v3383 = vpop.permute.xlu0 %3382
    %v3384 = vsel %vm239, %v3365, %v3367
    %v3385 = vsel %vm239, %v3367, %v3369
    %v3386 = vsel %vm239, %v3369, %v3371
    %v3387 = vsel %vm239, %v3371, %v3373
    %v3388 = vsel %vm239, %v3375, %v3377
    %v3389 = vsel %vm239, %v3377, %v3379
    %v3390 = vsel %vm239, %v3379, %v3381
    %v3391 = vsel %vm239, %v3381, %v3383
    %v3400 = vmax.f32 %v3294, %v3384
    %v3401 = vmax.f32 %v3308, %v3385
    %v3402 = vmax.f32 %v3322, %v3386
    %v3403 = vmax.f32 %v3336, %v3387
    %v3404 = vmax.f32 %v3296, %v3388
    %v3405 = vmax.f32 %v3310, %v3389
    %v3406 = vmax.f32 %v3324, %v3390
    %v3407 = vmax.f32 %v3338, %v3391
    %3408 = vrot.lane.b32.xlu0 %v3294, 112
    %v3409 = vpop.permute.xlu0 %3408
    %3410 = vrot.lane.b32.xlu0 %v3308, 112
    %v3411 = vpop.permute.xlu0 %3410
    %3412 = vrot.lane.b32.xlu0 %v3322, 112
    %v3413 = vpop.permute.xlu0 %3412
    %3414 = vrot.lane.b32.xlu0 %v3336, 112
    %v3415 = vpop.permute.xlu0 %3414
    %3416 = vrot.lane.b32.xlu0 %v3350, 112
    %v3417 = vpop.permute.xlu0 %3416
    %3418 = vrot.lane.b32.xlu0 %v3296, 112
    %v3419 = vpop.permute.xlu0 %3418
    %3420 = vrot.lane.b32.xlu0 %v3310, 112
    %v3421 = vpop.permute.xlu0 %3420
    %3422 = vrot.lane.b32.xlu0 %v3324, 112
    %v3423 = vpop.permute.xlu0 %3422
    %3424 = vrot.lane.b32.xlu0 %v3338, 112
    %v3425 = vpop.permute.xlu0 %3424
    %3426 = vrot.lane.b32.xlu0 %v3352, 112
    %v3427 = vpop.permute.xlu0 %3426
    %vm3428 = vcmask 916480
    %v3429 = vsel %vm3428, %v3409, %v3411
    %v3430 = vsel %vm3428, %v3411, %v3413
    %v3431 = vsel %vm3428, %v3413, %v3415
    %v3432 = vsel %vm3428, %v3415, %v3417
    %v3433 = vsel %vm3428, %v3419, %v3421
    %v3434 = vsel %vm3428, %v3421, %v3423
    %v3435 = vsel %vm3428, %v3423, %v3425
    %v3436 = vsel %vm3428, %v3425, %v3427
    %v3445 = vmax.f32 %v3400, %v3429
    %v3446 = vmax.f32 %v3401, %v3430
    %v3447 = vmax.f32 %v3402, %v3431
    %v3448 = vmax.f32 %v3403, %v3432
    %v3449 = vmax.f32 %v3404, %v3433
    %v3450 = vmax.f32 %v3405, %v3434
    %v3451 = vmax.f32 %v3406, %v3435
    %v3452 = vmax.f32 %v3407, %v3436
    %3453 = vrot.lane.b32.xlu0 %v3294, 111
    %v3454 = vpop.permute.xlu0 %3453
    %3455 = vrot.lane.b32.xlu0 %v3308, 111
    %v3456 = vpop.permute.xlu0 %3455
    %3457 = vrot.lane.b32.xlu0 %v3322, 111
    %v3458 = vpop.permute.xlu0 %3457
    %3459 = vrot.lane.b32.xlu0 %v3336, 111
    %v3460 = vpop.permute.xlu0 %3459
    %3461 = vrot.lane.b32.xlu0 %v3350, 111
    %v3462 = vpop.permute.xlu0 %3461
    %3463 = vrot.lane.b32.xlu0 %v3296, 111
    %v3464 = vpop.permute.xlu0 %3463
    %3465 = vrot.lane.b32.xlu0 %v3310, 111
    %v3466 = vpop.permute.xlu0 %3465
    %3467 = vrot.lane.b32.xlu0 %v3324, 111
    %v3468 = vpop.permute.xlu0 %3467
    %3469 = vrot.lane.b32.xlu0 %v3338, 111
    %v3470 = vpop.permute.xlu0 %3469
    %3471 = vrot.lane.b32.xlu0 %v3352, 111
    %v3472 = vpop.permute.xlu0 %3471
    %v3473 = vsel %vm323, %v3454, %v3456
    %v3474 = vsel %vm323, %v3456, %v3458
    %v3475 = vsel %vm323, %v3458, %v3460
    %v3476 = vsel %vm323, %v3460, %v3462
    %v3477 = vsel %vm323, %v3464, %v3466
    %v3478 = vsel %vm323, %v3466, %v3468
    %v3479 = vsel %vm323, %v3468, %v3470
    %v3480 = vsel %vm323, %v3470, %v3472
    %v3489 = vmax.f32 %v3445, %v3473
    %v3490 = vmax.f32 %v3446, %v3474
    %v3491 = vmax.f32 %v3447, %v3475
    %v3492 = vmax.f32 %v3448, %v3476
    %v3493 = vmax.f32 %v3449, %v3477
    %v3494 = vmax.f32 %v3450, %v3478
    %v3495 = vmax.f32 %v3451, %v3479
    %v3496 = vmax.f32 %v3452, %v3480
    %v3497 = vld [vmem:[%s5] sm:$0xff]
    %v3498 = vld [vmem:[%s5 + $0x8] sm:$0xff]
    %3500 = vset.pattern.permute.xlu0 0
    %3501 = vperm.xlu0 %3500, %v3497
    %v3502 = vpop.permute.xlu0 %3501
    %3505 = vset.pattern.permute.xlu0 0
    %3506 = vperm.xlu0 %3505, %v3498
    %v3507 = vpop.permute.xlu0 %3506
    %v3509 = vadd.f32 %v3489, %v3502
    %v3510 = vadd.f32 %v3490, %v3502
    %v3511 = vadd.f32 %v3491, %v3502
    %v3512 = vadd.f32 %v3492, %v3502
    %v3513 = vadd.f32 %v3493, %v3507
    %v3514 = vadd.f32 %v3494, %v3507
    %v3515 = vadd.f32 %v3495, %v3507
    %v3516 = vadd.f32 %v3496, %v3507
    %v3517 = vmax.f32 %v3509, 0.0
    %v3518 = vmax.f32 %v3510, 0.0
    %v3519 = vmax.f32 %v3511, 0.0
    %v3520 = vmax.f32 %v3512, 0.0
    %v3521 = vmax.f32 %v3513, 0.0
    %v3522 = vmax.f32 %v3514, 0.0
    %v3523 = vmax.f32 %v3515, 0.0
    %v3524 = vmax.f32 %v3516, 0.0
    %v3525 = vpack.c.bf16 %v3518, %v3517
    %v3526 = vpack.c.bf16 %v3520, %v3519
    %v3527 = vpack.c.bf16 %v3522, %v3521
    %v3528 = vpack.c.bf16 %v3524, %v3523
    %v3529 = vld [vmem:[%s6] sm:$0xf]
    %v3530 = vld [vmem:[%s6 + $0x4] sm:$0xf]
    %v3531 = vld [vmem:[%s6 + $0x8] sm:$0xf]
    %v3532 = vld [vmem:[%s6 + $0xc] sm:$0xf]
    %v3533 = vld [vmem:[%s6 + $0x10] sm:$0xf]
    %v3534 = vld [vmem:[%s6 + $0x14] sm:$0xf]
    %v3535 = vld [vmem:[%s6 + $0x18] sm:$0xf]
    %v3536 = vld [vmem:[%s6 + $0x1c] sm:$0xf]
    %v3537 = vld [vmem:[%s6 + $0x20] sm:$0xf]
    %v3538 = vld [vmem:[%s6 + $0x24] sm:$0xf]
    %v3539 = vld [vmem:[%s6 + $0x28] sm:$0xf]
    %v3540 = vld [vmem:[%s6 + $0x2c] sm:$0xf]
    %v3541 = vld [vmem:[%s6 + $0x30] sm:$0xf]
    %v3542 = vld [vmem:[%s6 + $0x34] sm:$0xf]
    %v3543 = vld [vmem:[%s6 + $0x38] sm:$0xf]
    %v3544 = vld [vmem:[%s6 + $0x3c] sm:$0xf]
    %v3545 = vld [vmem:[%s6 + $0x40] sm:$0xf]
    %v3546 = vld [vmem:[%s6 + $0x44] sm:$0xf]
    %v3547 = vld [vmem:[%s6 + $0x48] sm:$0xf]
    %v3548 = vld [vmem:[%s6 + $0x4c] sm:$0xf]
    %v3549 = vld [vmem:[%s6 + $0x50] sm:$0xf]
    %v3550 = vld [vmem:[%s6 + $0x54] sm:$0xf]
    %v3551 = vld [vmem:[%s6 + $0x58] sm:$0xf]
    %v3552 = vld [vmem:[%s6 + $0x5c] sm:$0xf]
    %v3553 = vld [vmem:[%s6 + $0x60] sm:$0xf]
    %v3554 = vld [vmem:[%s6 + $0x64] sm:$0xf]
    %v3555 = vld [vmem:[%s6 + $0x68] sm:$0xf]
    %v3556 = vld [vmem:[%s6 + $0x6c] sm:$0xf]
    %v3557 = vld [vmem:[%s6 + $0x70] sm:$0xf]
    %v3558 = vld [vmem:[%s6 + $0x74] sm:$0xf]
    %v3559 = vld [vmem:[%s6 + $0x78] sm:$0xf]
    %v3560 = vld [vmem:[%s6 + $0x7c] sm:$0xf]
    %v3563 = vunpack.c.l.b16 %v3525
    %v3564 = vunpack.c.h.b16 %v3525
    %v3565 = vunpack.c.l.b16 %v3527
    %v3566 = vunpack.c.h.b16 %v3527
    %v3567 = vpack.c.b16 %v3565, %v3563
    %v3568 = vpack.c.b16 %v3566, %v3564
    %v3603 = vunpack.c.l.b16 %v3529
    %v3604 = vunpack.c.l.b16 %v3530
    %v3605 = vunpack.c.l.b16 %v3531
    %v3606 = vunpack.c.l.b16 %v3532
    %v3607 = vunpack.c.l.b16 %v3533
    %v3608 = vunpack.c.l.b16 %v3534
    %v3609 = vunpack.c.l.b16 %v3535
    %v3610 = vunpack.c.l.b16 %v3536
    %v3611 = vunpack.c.l.b16 %v3537
    %v3612 = vunpack.c.l.b16 %v3538
    %v3613 = vunpack.c.l.b16 %v3539
    %v3614 = vunpack.c.l.b16 %v3540
    %v3615 = vunpack.c.l.b16 %v3541
    %v3616 = vunpack.c.l.b16 %v3542
    %v3617 = vunpack.c.l.b16 %v3543
    %v3618 = vunpack.c.l.b16 %v3544
    %v3619 = vunpack.c.l.b16 %v3545
    %v3620 = vunpack.c.l.b16 %v3546
    %v3621 = vunpack.c.l.b16 %v3547
    %v3622 = vunpack.c.l.b16 %v3548
    %v3623 = vunpack.c.l.b16 %v3549
    %v3624 = vunpack.c.l.b16 %v3550
    %v3625 = vunpack.c.l.b16 %v3551
    %v3626 = vunpack.c.l.b16 %v3552
    %v3627 = vunpack.c.l.b16 %v3553
    %v3628 = vunpack.c.l.b16 %v3554
    %v3629 = vunpack.c.l.b16 %v3555
    %v3630 = vunpack.c.l.b16 %v3556
    %v3631 = vunpack.c.l.b16 %v3557
    %v3632 = vunpack.c.l.b16 %v3558
    %v3633 = vunpack.c.l.b16 %v3559
    %v3634 = vunpack.c.l.b16 %v3560
    %v3635 = vpack.c.b16 %v3604, %v3603
    %v3636 = vpack.c.b16 %v3606, %v3605
    %v3637 = vpack.c.b16 %v3608, %v3607
    %v3638 = vpack.c.b16 %v3610, %v3609
    %v3639 = vpack.c.b16 %v3612, %v3611
    %v3640 = vpack.c.b16 %v3614, %v3613
    %v3641 = vpack.c.b16 %v3616, %v3615
    %v3642 = vpack.c.b16 %v3618, %v3617
    %v3643 = vpack.c.b16 %v3620, %v3619
    %v3644 = vpack.c.b16 %v3622, %v3621
    %v3645 = vpack.c.b16 %v3624, %v3623
    %v3646 = vpack.c.b16 %v3626, %v3625
    %v3647 = vpack.c.b16 %v3628, %v3627
    %v3648 = vpack.c.b16 %v3630, %v3629
    %v3649 = vpack.c.b16 %v3632, %v3631
    %v3650 = vpack.c.b16 %v3634, %v3633
    %3667 = vmatpush.bf16.msra.mxu0 %v3642
    %3668 = vmatpush.bf16.msra.mxu0 %v3641
    %3669 = vmatpush.bf16.msra.mxu0 %v3640
    %3670 = vmatpush.bf16.msra.mxu0 %v3639
    %3671 = vmatpush.bf16.msra.mxu0 %v3638
    %3672 = vmatpush.bf16.msra.mxu0 %v3637
    %3673 = vmatpush.bf16.msra.mxu0 %v3636
    %3674 = vmatpush.bf16.msra.mxu0 %v3635
    %3675 = vmatmul.bf16.gmra.mxu0 %v3567
    %v3676 = vpop.f32.mrf.mxu0
    %v3677 = vadd.f32 0.0, %v3676
    %v3678 = vpop.f32.mrf.mxu0
    %v3679 = vadd.f32 0.0, %v3678
    %3680 = vdwg.mxu0
    %3681 = vmatpush.bf16.msra.mxu0 %v3650
    %3682 = vmatpush.bf16.msra.mxu0 %v3649
    %3683 = vmatpush.bf16.msra.mxu0 %v3648
    %3684 = vmatpush.bf16.msra.mxu0 %v3647
    %3685 = vmatpush.bf16.msra.mxu0 %v3646
    %3686 = vmatpush.bf16.msra.mxu0 %v3645
    %3687 = vmatpush.bf16.msra.mxu0 %v3644
    %3688 = vmatpush.bf16.msra.mxu0 %v3643
    %3689 = vmatmul.bf16.gmra.mxu0 %v3568
    %v3690 = vpop.f32.mrf.mxu0
    %v3691 = vadd.f32 %v3677, %v3690
    %v3692 = vpop.f32.mrf.mxu0
    %v3693 = vadd.f32 %v3679, %v3692
    %3694 = vdwg.mxu0
    %v3697 = vunpack.c.l.b16 %v3526
    %v3698 = vunpack.c.h.b16 %v3526
    %v3699 = vunpack.c.l.b16 %v3528
    %v3700 = vunpack.c.h.b16 %v3528
    %v3701 = vpack.c.b16 %v3699, %v3697
    %v3702 = vpack.c.b16 %v3700, %v3698
    %3705 = vmatpush.bf16.msra.mxu0 %v3642
    %3706 = vmatpush.bf16.msra.mxu0 %v3641
    %3707 = vmatpush.bf16.msra.mxu0 %v3640
    %3708 = vmatpush.bf16.msra.mxu0 %v3639
    %3709 = vmatpush.bf16.msra.mxu0 %v3638
    %3710 = vmatpush.bf16.msra.mxu0 %v3637
    %3711 = vmatpush.bf16.msra.mxu0 %v3636
    %3712 = vmatpush.bf16.msra.mxu0 %v3635
    %3713 = vmatmul.bf16.gmra.mxu0 %v3701
    %v3714 = vpop.f32.mrf.mxu0
    %v3715 = vadd.f32 0.0, %v3714
    %v3716 = vpop.f32.mrf.mxu0
    %v3717 = vadd.f32 0.0, %v3716
    %3718 = vdwg.mxu0
    %3719 = vmatpush.bf16.msra.mxu0 %v3650
    %3720 = vmatpush.bf16.msra.mxu0 %v3649
    %3721 = vmatpush.bf16.msra.mxu0 %v3648
    %3722 = vmatpush.bf16.msra.mxu0 %v3647
    %3723 = vmatpush.bf16.msra.mxu0 %v3646
    %3724 = vmatpush.bf16.msra.mxu0 %v3645
    %3725 = vmatpush.bf16.msra.mxu0 %v3644
    %3726 = vmatpush.bf16.msra.mxu0 %v3643
    %3727 = vmatmul.bf16.gmra.mxu0 %v3702
    %v3728 = vpop.f32.mrf.mxu0
    %v3729 = vadd.f32 %v3715, %v3728
    %v3730 = vpop.f32.mrf.mxu0
    %v3731 = vadd.f32 %v3717, %v3730
    %3732 = vdwg.mxu0
    %v3734 = vrot.slane %v3691, 1
    %3735 = vrot.lane.b32.xlu0 %v3734, 49
    %v3736 = vpop.permute.xlu0 %3735
    %v3738 = vrot.slane %v3691, 2
    %3739 = vrot.lane.b32.xlu0 %v3738, 98
    %v3740 = vpop.permute.xlu0 %3739
    %v3742 = vrot.slane %v3691, 3
    %3743 = vrot.lane.b32.xlu0 %v3742, 19
    %v3744 = vpop.permute.xlu0 %3743
    %v3746 = vrot.slane %v3691, 4
    %3747 = vrot.lane.b32.xlu0 %v3746, 68
    %v3748 = vpop.permute.xlu0 %3747
    %v3750 = vrot.slane %v3691, 5
    %3751 = vrot.lane.b32.xlu0 %v3750, 117
    %v3752 = vpop.permute.xlu0 %3751
    %v3754 = vrot.slane %v3691, 6
    %3755 = vrot.lane.b32.xlu0 %v3754, 38
    %v3756 = vpop.permute.xlu0 %3755
    %v3758 = vrot.slane %v3691, 7
    %3759 = vrot.lane.b32.xlu0 %v3758, 87
    %v3760 = vpop.permute.xlu0 %3759
    %3763 = vrot.lane.b32.xlu0 %v3693, 8
    %v3764 = vpop.permute.xlu0 %3763
    %v3766 = vrot.slane %v3693, 1
    %3767 = vrot.lane.b32.xlu0 %v3766, 57
    %v3768 = vpop.permute.xlu0 %3767
    %v3770 = vrot.slane %v3693, 2
    %3771 = vrot.lane.b32.xlu0 %v3770, 106
    %v3772 = vpop.permute.xlu0 %3771
    %v3774 = vrot.slane %v3693, 3
    %3775 = vrot.lane.b32.xlu0 %v3774, 27
    %v3776 = vpop.permute.xlu0 %3775
    %v3778 = vrot.slane %v3693, 4
    %3779 = vrot.lane.b32.xlu0 %v3778, 76
    %v3780 = vpop.permute.xlu0 %3779
    %v3782 = vrot.slane %v3693, 5
    %3783 = vrot.lane.b32.xlu0 %v3782, 125
    %v3784 = vpop.permute.xlu0 %3783
    %v3786 = vrot.slane %v3693, 6
    %3787 = vrot.lane.b32.xlu0 %v3786, 46
    %v3788 = vpop.permute.xlu0 %3787
    %v3790 = vrot.slane %v3693, 7
    %3791 = vrot.lane.b32.xlu0 %v3790, 95
    %v3792 = vpop.permute.xlu0 %3791
    %vm3794 = vcmask 400384
    %v3795 = vsel %vm3794, %v3691, %v3736
    %v3796 = vsel %vm986, %v3795, %v3740
    %vm3797 = vcmask 154624
    %v3798 = vsel %vm3797, %v3740, %v3744
    %v3799 = vsel %vm1313, %v3798, %v3748
    %v3800 = vsel %vm437, %v3799, %v3752
    %vm3801 = vcmask 310272
    %v3802 = vsel %vm3801, %v3752, %v3756
    %vm3803 = vcmask 711680
    %v3804 = vsel %vm3803, %v3802, %v3760
    %vm3805 = vcmask 64512
    %v3806 = vsel %vm3805, %v3760, %v3764
    %vm3807 = vcmask 465920
    %v3808 = vsel %vm3807, %v3806, %v3768
    %vm3809 = vcmask 867328
    %v3810 = vsel %vm3809, %v3808, %v3772
    %vm3811 = vcmask 220160
    %v3812 = vsel %vm3811, %v3772, %v3776
    %vm3813 = vcmask 621568
    %v3814 = vsel %vm3813, %v3812, %v3780
    %v3815 = vsel %vm394, %v3814, %v3784
    %vm3816 = vcmask 375808
    %v3817 = vsel %vm3816, %v3784, %v3788
    %vm3818 = vcmask 777216
    %v3819 = vsel %vm3818, %v3817, %v3792
    %v3821 = vrot.slane %v3729, 1
    %3822 = vrot.lane.b32.xlu0 %v3821, 49
    %v3823 = vpop.permute.xlu0 %3822
    %v3825 = vrot.slane %v3729, 2
    %3826 = vrot.lane.b32.xlu0 %v3825, 98
    %v3827 = vpop.permute.xlu0 %3826
    %v3829 = vrot.slane %v3729, 3
    %3830 = vrot.lane.b32.xlu0 %v3829, 19
    %v3831 = vpop.permute.xlu0 %3830
    %v3833 = vrot.slane %v3729, 4
    %3834 = vrot.lane.b32.xlu0 %v3833, 68
    %v3835 = vpop.permute.xlu0 %3834
    %v3837 = vrot.slane %v3729, 5
    %3838 = vrot.lane.b32.xlu0 %v3837, 117
    %v3839 = vpop.permute.xlu0 %3838
    %v3841 = vrot.slane %v3729, 6
    %3842 = vrot.lane.b32.xlu0 %v3841, 38
    %v3843 = vpop.permute.xlu0 %3842
    %v3845 = vrot.slane %v3729, 7
    %3846 = vrot.lane.b32.xlu0 %v3845, 87
    %v3847 = vpop.permute.xlu0 %3846
    %3850 = vrot.lane.b32.xlu0 %v3731, 8
    %v3851 = vpop.permute.xlu0 %3850
    %v3853 = vrot.slane %v3731, 1
    %3854 = vrot.lane.b32.xlu0 %v3853, 57
    %v3855 = vpop.permute.xlu0 %3854
    %v3857 = vrot.slane %v3731, 2
    %3858 = vrot.lane.b32.xlu0 %v3857, 106
    %v3859 = vpop.permute.xlu0 %3858
    %v3861 = vrot.slane %v3731, 3
    %3862 = vrot.lane.b32.xlu0 %v3861, 27
    %v3863 = vpop.permute.xlu0 %3862
    %v3865 = vrot.slane %v3731, 4
    %3866 = vrot.lane.b32.xlu0 %v3865, 76
    %v3867 = vpop.permute.xlu0 %3866
    %v3869 = vrot.slane %v3731, 5
    %3870 = vrot.lane.b32.xlu0 %v3869, 125
    %v3871 = vpop.permute.xlu0 %3870
    %v3873 = vrot.slane %v3731, 6
    %3874 = vrot.lane.b32.xlu0 %v3873, 46
    %v3875 = vpop.permute.xlu0 %3874
    %v3877 = vrot.slane %v3731, 7
    %3878 = vrot.lane.b32.xlu0 %v3877, 95
    %v3879 = vpop.permute.xlu0 %3878
    %v3881 = vsel %vm3794, %v3729, %v3823
    %v3882 = vsel %vm986, %v3881, %v3827
    %v3883 = vsel %vm3797, %v3827, %v3831
    %v3884 = vsel %vm1313, %v3883, %v3835
    %v3885 = vsel %vm437, %v3884, %v3839
    %v3886 = vsel %vm3801, %v3839, %v3843
    %v3887 = vsel %vm3803, %v3886, %v3847
    %v3888 = vsel %vm3805, %v3847, %v3851
    %v3889 = vsel %vm3807, %v3888, %v3855
    %v3890 = vsel %vm3809, %v3889, %v3859
    %v3891 = vsel %vm3811, %v3859, %v3863
    %v3892 = vsel %vm3813, %v3891, %v3867
    %v3893 = vsel %vm394, %v3892, %v3871
    %v3894 = vsel %vm3816, %v3871, %v3875
    %v3895 = vsel %vm3818, %v3894, %v3879
    %v3902 = vrot.slane %v3882, 7
    %v3903 = vrot.slane %v3885, 7
    %v3904 = vrot.slane %v3887, 7
    %v3905 = vrot.slane %v3890, 7
    %v3906 = vrot.slane %v3893, 7
    %v3907 = vrot.slane %v3895, 7
    %v3908 = vrot.slane %v3879, 7
    %vm3916 = vcmask 1040384
    %v3917 = vsel %vm3916, %v3796, %v3902
    %v3918 = vsel %vm3916, %v3800, %v3903
    %v3919 = vsel %vm3916, %v3804, %v3904
    %v3920 = vsel %vm3916, %v3810, %v3905
    %v3921 = vsel %vm3916, %v3815, %v3906
    %v3922 = vsel %vm3916, %v3819, %v3907
    %v3923 = vsel %vm3916, %v3792, %v3908
    %v3924 = vpack.c.bf16 %v3917, %v3917
    %v3925 = vpack.c.bf16 %v3918, %v3918
    %v3926 = vpack.c.bf16 %v3919, %v3919
    %v3927 = vpack.c.bf16 %v3920, %v3920
    %v3928 = vpack.c.bf16 %v3921, %v3921
    %v3929 = vpack.c.bf16 %v3922, %v3922
    %v3930 = vpack.c.bf16 %v3923, %v3923
    %v3931 = vld [vmem:[%s7] sm:$0xf]
    %v3932 = vld [vmem:[%s7 + $0x4] sm:$0xf]
    %v3933 = vld [vmem:[%s7 + $0x8] sm:$0xf]
    %v3934 = vld [vmem:[%s7 + $0xc] sm:$0xf]
    %v3935 = vld [vmem:[%s7 + $0x10] sm:$0xf]
    %v3936 = vld [vmem:[%s7 + $0x14] sm:$0xf]
    %v3937 = vld [vmem:[%s7 + $0x18] sm:$0xf]
    %v3938 = vld [vmem:[%s7 + $0x1c] sm:$0xf]
    %v3939 = vld [vmem:[%s7 + $0x20] sm:$0xf]
    %v3940 = vld [vmem:[%s7 + $0x24] sm:$0xf]
    %v3941 = vld [vmem:[%s7 + $0x28] sm:$0xf]
    %v3942 = vld [vmem:[%s7 + $0x2c] sm:$0xf]
    %v3943 = vld [vmem:[%s7 + $0x30] sm:$0xf]
    %v3944 = vld [vmem:[%s7 + $0x34] sm:$0xf]
    %v3945 = vld [vmem:[%s7 + $0x38] sm:$0xf]
    %v3946 = vld [vmem:[%s7 + $0x3c] sm:$0xf]
    %v3947 = vld [vmem:[%s7 + $0x40] sm:$0xf]
    %v3948 = vld [vmem:[%s7 + $0x44] sm:$0xf]
    %v3949 = vld [vmem:[%s7 + $0x48] sm:$0xf]
    %v3950 = vld [vmem:[%s7 + $0x4c] sm:$0xf]
    %v3951 = vld [vmem:[%s7 + $0x50] sm:$0xf]
    %v3952 = vld [vmem:[%s7 + $0x54] sm:$0xf]
    %v3953 = vld [vmem:[%s7 + $0x58] sm:$0xf]
    %v3954 = vld [vmem:[%s7 + $0x5c] sm:$0xf]
    %v3955 = vld [vmem:[%s7 + $0x60] sm:$0xf]
    %v3956 = vld [vmem:[%s7 + $0x64] sm:$0xf]
    %v3957 = vld [vmem:[%s7 + $0x68] sm:$0xf]
    %v3958 = vld [vmem:[%s7 + $0x6c] sm:$0xf]
    %v3959 = vld [vmem:[%s7 + $0x70] sm:$0xf]
    %v3960 = vld [vmem:[%s7 + $0x74] sm:$0xf]
    %v3961 = vld [vmem:[%s7 + $0x78] sm:$0xf]
    %v3962 = vld [vmem:[%s7 + $0x7c] sm:$0xf]
    %v3963 = vld [vmem:[%s7 + $0x80] sm:$0xf]
    %v3964 = vld [vmem:[%s7 + $0x84] sm:$0xf]
    %v3965 = vld [vmem:[%s7 + $0x88] sm:$0xf]
    %v3966 = vld [vmem:[%s7 + $0x8c] sm:$0xf]
    %v3967 = vld [vmem:[%s7 + $0x90] sm:$0xf]
    %v3968 = vld [vmem:[%s7 + $0x94] sm:$0xf]
    %v3969 = vld [vmem:[%s7 + $0x98] sm:$0xf]
    %v3970 = vld [vmem:[%s7 + $0x9c] sm:$0xf]
    %v3971 = vld [vmem:[%s7 + $0xa0] sm:$0xf]
    %v3972 = vld [vmem:[%s7 + $0xa4] sm:$0xf]
    %v3973 = vld [vmem:[%s7 + $0xa8] sm:$0xf]
    %v3974 = vld [vmem:[%s7 + $0xac] sm:$0xf]
    %v3975 = vld [vmem:[%s7 + $0xb0] sm:$0xf]
    %v3976 = vld [vmem:[%s7 + $0xb4] sm:$0xf]
    %v3977 = vld [vmem:[%s7 + $0xb8] sm:$0xf]
    %v3978 = vld [vmem:[%s7 + $0xbc] sm:$0xf]
    %v3979 = vld [vmem:[%s7 + $0xc0] sm:$0xf]
    %v3980 = vld [vmem:[%s7 + $0xc4] sm:$0xf]
    %v3981 = vld [vmem:[%s7 + $0xc8] sm:$0xf]
    %v3982 = vld [vmem:[%s7 + $0xcc] sm:$0xf]
    %v3983 = vld [vmem:[%s7 + $0xd0] sm:$0xf]
    %v3984 = vld [vmem:[%s7 + $0xd4] sm:$0xf]
    %v3985 = vld [vmem:[%s7 + $0xd8] sm:$0xf]
    %v3986 = vld [vmem:[%s7 + $0xdc] sm:$0xf]
    %v3987 = vld [vmem:[%s7 + $0xe0] sm:$0xf]
    %v3988 = vld [vmem:[%s7 + $0xe4] sm:$0xf]
    %v3989 = vld [vmem:[%s7 + $0xe8] sm:$0xf]
    %v3990 = vld [vmem:[%s7 + $0xec] sm:$0xf]
    %v3991 = vld [vmem:[%s7 + $0xf0] sm:$0xf]
    %v3992 = vld [vmem:[%s7 + $0xf4] sm:$0xf]
    %v3993 = vld [vmem:[%s7 + $0xf8] sm:$0xf]
    %v3994 = vld [vmem:[%s7 + $0xfc] sm:$0xf]
    %v3995 = vld [vmem:[%s7 + $0x100] sm:$0xf]
    %v3996 = vld [vmem:[%s7 + $0x104] sm:$0xf]
    %v3997 = vld [vmem:[%s7 + $0x108] sm:$0xf]
    %v3998 = vld [vmem:[%s7 + $0x10c] sm:$0xf]
    %v3999 = vld [vmem:[%s7 + $0x110] sm:$0xf]
    %v4000 = vld [vmem:[%s7 + $0x114] sm:$0xf]
    %v4001 = vld [vmem:[%s7 + $0x118] sm:$0xf]
    %v4002 = vld [vmem:[%s7 + $0x11c] sm:$0xf]
    %v4003 = vld [vmem:[%s7 + $0x120] sm:$0xf]
    %v4004 = vld [vmem:[%s7 + $0x124] sm:$0xf]
    %v4005 = vld [vmem:[%s7 + $0x128] sm:$0xf]
    %v4006 = vld [vmem:[%s7 + $0x12c] sm:$0xf]
    %v4007 = vld [vmem:[%s7 + $0x130] sm:$0xf]
    %v4008 = vld [vmem:[%s7 + $0x134] sm:$0xf]
    %v4009 = vld [vmem:[%s7 + $0x138] sm:$0xf]
    %v4010 = vld [vmem:[%s7 + $0x13c] sm:$0xf]
    %v4011 = vld [vmem:[%s7 + $0x140] sm:$0xf]
    %v4012 = vld [vmem:[%s7 + $0x144] sm:$0xf]
    %v4013 = vld [vmem:[%s7 + $0x148] sm:$0xf]
    %v4014 = vld [vmem:[%s7 + $0x14c] sm:$0xf]
    %v4015 = vld [vmem:[%s7 + $0x150] sm:$0xf]
    %v4016 = vld [vmem:[%s7 + $0x154] sm:$0xf]
    %v4017 = vld [vmem:[%s7 + $0x158] sm:$0xf]
    %v4018 = vld [vmem:[%s7 + $0x15c] sm:$0xf]
    %v4019 = vld [vmem:[%s7 + $0x160] sm:$0xf]
    %v4020 = vld [vmem:[%s7 + $0x164] sm:$0xf]
    %v4021 = vld [vmem:[%s7 + $0x168] sm:$0xf]
    %v4022 = vld [vmem:[%s7 + $0x16c] sm:$0xf]
    %v4023 = vld [vmem:[%s7 + $0x170] sm:$0xf]
    %v4024 = vld [vmem:[%s7 + $0x174] sm:$0xf]
    %v4025 = vld [vmem:[%s7 + $0x178] sm:$0xf]
    %v4026 = vld [vmem:[%s7 + $0x17c] sm:$0xf]
    %v4027 = vld [vmem:[%s7 + $0x180] sm:$0xf]
    %v4028 = vld [vmem:[%s7 + $0x184] sm:$0xf]
    %v4029 = vld [vmem:[%s8] sm:$0x1]
    %v4031 = vperm.slane %v4029, 0
    %v4131 = vunpack.c.l.b16 %v3931
    %v4132 = vunpack.c.l.b16 %v3932
    %v4133 = vunpack.c.l.b16 %v3933
    %v4134 = vunpack.c.l.b16 %v3934
    %v4135 = vunpack.c.l.b16 %v3935
    %v4136 = vunpack.c.l.b16 %v3936
    %v4137 = vunpack.c.l.b16 %v3937
    %v4138 = vunpack.c.l.b16 %v3938
    %v4139 = vunpack.c.l.b16 %v3939
    %v4140 = vunpack.c.l.b16 %v3940
    %v4141 = vunpack.c.l.b16 %v3941
    %v4142 = vunpack.c.l.b16 %v3942
    %v4143 = vunpack.c.l.b16 %v3943
    %v4144 = vunpack.c.l.b16 %v3944
    %v4145 = vunpack.c.l.b16 %v3945
    %v4146 = vunpack.c.l.b16 %v3946
    %v4147 = vunpack.c.l.b16 %v3947
    %v4148 = vunpack.c.l.b16 %v3948
    %v4149 = vunpack.c.l.b16 %v3949
    %v4150 = vunpack.c.l.b16 %v3950
    %v4151 = vunpack.c.l.b16 %v3951
    %v4152 = vunpack.c.l.b16 %v3952
    %v4153 = vunpack.c.l.b16 %v3953
    %v4154 = vunpack.c.l.b16 %v3954
    %v4155 = vunpack.c.l.b16 %v3955
    %v4156 = vunpack.c.l.b16 %v3956
    %v4157 = vunpack.c.l.b16 %v3957
    %v4158 = vunpack.c.l.b16 %v3958
    %v4159 = vunpack.c.l.b16 %v3959
    %v4160 = vunpack.c.l.b16 %v3960
    %v4161 = vunpack.c.l.b16 %v3961
    %v4162 = vunpack.c.l.b16 %v3962
    %v4163 = vunpack.c.l.b16 %v3963
    %v4164 = vunpack.c.l.b16 %v3964
    %v4165 = vunpack.c.l.b16 %v3965
    %v4166 = vunpack.c.l.b16 %v3966
    %v4167 = vunpack.c.l.b16 %v3967
    %v4168 = vunpack.c.l.b16 %v3968
    %v4169 = vunpack.c.l.b16 %v3969
    %v4170 = vunpack.c.l.b16 %v3970
    %v4171 = vunpack.c.l.b16 %v3971
    %v4172 = vunpack.c.l.b16 %v3972
    %v4173 = vunpack.c.l.b16 %v3973
    %v4174 = vunpack.c.l.b16 %v3974
    %v4175 = vunpack.c.l.b16 %v3975
    %v4176 = vunpack.c.l.b16 %v3976
    %v4177 = vunpack.c.l.b16 %v3977
    %v4178 = vunpack.c.l.b16 %v3978
    %v4179 = vunpack.c.l.b16 %v3979
    %v4180 = vunpack.c.l.b16 %v3980
    %v4181 = vunpack.c.l.b16 %v3981
    %v4182 = vunpack.c.l.b16 %v3982
    %v4183 = vunpack.c.l.b16 %v3983
    %v4184 = vunpack.c.l.b16 %v3984
    %v4185 = vunpack.c.l.b16 %v3985
    %v4186 = vunpack.c.l.b16 %v3986
    %v4187 = vunpack.c.l.b16 %v3987
    %v4188 = vunpack.c.l.b16 %v3988
    %v4189 = vunpack.c.l.b16 %v3989
    %v4190 = vunpack.c.l.b16 %v3990
    %v4191 = vunpack.c.l.b16 %v3991
    %v4192 = vunpack.c.l.b16 %v3992
    %v4193 = vunpack.c.l.b16 %v3993
    %v4194 = vunpack.c.l.b16 %v3994
    %v4195 = vunpack.c.l.b16 %v3995
    %v4196 = vunpack.c.l.b16 %v3996
    %v4197 = vunpack.c.l.b16 %v3997
    %v4198 = vunpack.c.l.b16 %v3998
    %v4199 = vunpack.c.l.b16 %v3999
    %v4200 = vunpack.c.l.b16 %v4000
    %v4201 = vunpack.c.l.b16 %v4001
    %v4202 = vunpack.c.l.b16 %v4002
    %v4203 = vunpack.c.l.b16 %v4003
    %v4204 = vunpack.c.l.b16 %v4004
    %v4205 = vunpack.c.l.b16 %v4005
    %v4206 = vunpack.c.l.b16 %v4006
    %v4207 = vunpack.c.l.b16 %v4007
    %v4208 = vunpack.c.l.b16 %v4008
    %v4209 = vunpack.c.l.b16 %v4009
    %v4210 = vunpack.c.l.b16 %v4010
    %v4211 = vunpack.c.l.b16 %v4011
    %v4212 = vunpack.c.l.b16 %v4012
    %v4213 = vunpack.c.l.b16 %v4013
    %v4214 = vunpack.c.l.b16 %v4014
    %v4215 = vunpack.c.l.b16 %v4015
    %v4216 = vunpack.c.l.b16 %v4016
    %v4217 = vunpack.c.l.b16 %v4017
    %v4218 = vunpack.c.l.b16 %v4018
    %v4219 = vunpack.c.l.b16 %v4019
    %v4220 = vunpack.c.l.b16 %v4020
    %v4221 = vunpack.c.l.b16 %v4021
    %v4222 = vunpack.c.l.b16 %v4022
    %v4223 = vunpack.c.l.b16 %v4023
    %v4224 = vunpack.c.l.b16 %v4024
    %v4225 = vunpack.c.l.b16 %v4025
    %v4226 = vunpack.c.l.b16 %v4026
    %v4227 = vunpack.c.l.b16 %v4027
    %v4228 = vunpack.c.l.b16 %v4028
    %v4229 = vpack.c.b16 %v4132, %v4131
    %v4230 = vpack.c.b16 %v4134, %v4133
    %v4231 = vpack.c.b16 %v4136, %v4135
    %v4232 = vpack.c.b16 %v4138, %v4137
    %v4233 = vpack.c.b16 %v4140, %v4139
    %v4234 = vpack.c.b16 %v4142, %v4141
    %v4235 = vpack.c.b16 %v4144, %v4143
    %v4236 = vpack.c.b16 %v4146, %v4145
    %v4237 = vpack.c.b16 %v4148, %v4147
    %v4238 = vpack.c.b16 %v4150, %v4149
    %v4239 = vpack.c.b16 %v4152, %v4151
    %v4240 = vpack.c.b16 %v4154, %v4153
    %v4241 = vpack.c.b16 %v4156, %v4155
    %v4242 = vpack.c.b16 %v4158, %v4157
    %v4243 = vpack.c.b16 %v4160, %v4159
    %v4244 = vpack.c.b16 %v4162, %v4161
    %v4245 = vpack.c.b16 %v4164, %v4163
    %v4246 = vpack.c.b16 %v4166, %v4165
    %v4247 = vpack.c.b16 %v4168, %v4167
    %v4248 = vpack.c.b16 %v4170, %v4169
    %v4249 = vpack.c.b16 %v4172, %v4171
    %v4250 = vpack.c.b16 %v4174, %v4173
    %v4251 = vpack.c.b16 %v4176, %v4175
    %v4252 = vpack.c.b16 %v4178, %v4177
    %v4253 = vpack.c.b16 %v4180, %v4179
    %v4254 = vpack.c.b16 %v4182, %v4181
    %v4255 = vpack.c.b16 %v4184, %v4183
    %v4256 = vpack.c.b16 %v4186, %v4185
    %v4257 = vpack.c.b16 %v4188, %v4187
    %v4258 = vpack.c.b16 %v4190, %v4189
    %v4259 = vpack.c.b16 %v4192, %v4191
    %v4260 = vpack.c.b16 %v4194, %v4193
    %v4261 = vpack.c.b16 %v4196, %v4195
    %v4262 = vpack.c.b16 %v4198, %v4197
    %v4263 = vpack.c.b16 %v4200, %v4199
    %v4264 = vpack.c.b16 %v4202, %v4201
    %v4265 = vpack.c.b16 %v4204, %v4203
    %v4266 = vpack.c.b16 %v4206, %v4205
    %v4267 = vpack.c.b16 %v4208, %v4207
    %v4268 = vpack.c.b16 %v4210, %v4209
    %v4269 = vpack.c.b16 %v4212, %v4211
    %v4270 = vpack.c.b16 %v4214, %v4213
    %v4271 = vpack.c.b16 %v4216, %v4215
    %v4272 = vpack.c.b16 %v4218, %v4217
    %v4273 = vpack.c.b16 %v4220, %v4219
    %v4274 = vpack.c.b16 %v4222, %v4221
    %v4275 = vpack.c.b16 %v4224, %v4223
    %v4276 = vpack.c.b16 %v4226, %v4225
    %v4277 = vpack.c.b16 %v4228, %v4227
    %vm4327 = vcmask 130048
    %v4329 = vsel %vm4327, %v3930, 0
    %4331 = vmatpush.bf16.msra.mxu0 %v4236
    %4332 = vmatpush.bf16.msra.mxu0 %v4235
    %4333 = vmatpush.bf16.msra.mxu0 %v4234
    %4334 = vmatpush.bf16.msra.mxu0 %v4233
    %4335 = vmatpush.bf16.msra.mxu0 %v4232
    %4336 = vmatpush.bf16.msra.mxu0 %v4231
    %4337 = vmatpush.bf16.msra.mxu0 %v4230
    %4338 = vmatpush.bf16.msra.mxu0 %v4229
    %4339 = vmatmul.bf16.gmra.mxu0 %v3924
    %v4340 = vpop.f32.mrf.mxu0
    %v4341 = vadd.f32 %v4031, %v4340
    %v4342 = vpop.f32.mrf.mxu0
    %4343 = vdwg.mxu0
    %4344 = vmatpush.bf16.msra.mxu0 %v4244
    %4345 = vmatpush.bf16.msra.mxu0 %v4243
    %4346 = vmatpush.bf16.msra.mxu0 %v4242
    %4347 = vmatpush.bf16.msra.mxu0 %v4241
    %4348 = vmatpush.bf16.msra.mxu0 %v4240
    %4349 = vmatpush.bf16.msra.mxu0 %v4239
    %4350 = vmatpush.bf16.msra.mxu0 %v4238
    %4351 = vmatpush.bf16.msra.mxu0 %v4237
    %4352 = vmatmul.bf16.gmra.mxu0 %v3925
    %v4353 = vpop.f32.mrf.mxu0
    %v4354 = vadd.f32 %v4341, %v4353
    %v4355 = vpop.f32.mrf.mxu0
    %4356 = vdwg.mxu0
    %4357 = vmatpush.bf16.msra.mxu0 %v4252
    %4358 = vmatpush.bf16.msra.mxu0 %v4251
    %4359 = vmatpush.bf16.msra.mxu0 %v4250
    %4360 = vmatpush.bf16.msra.mxu0 %v4249
    %4361 = vmatpush.bf16.msra.mxu0 %v4248
    %4362 = vmatpush.bf16.msra.mxu0 %v4247
    %4363 = vmatpush.bf16.msra.mxu0 %v4246
    %4364 = vmatpush.bf16.msra.mxu0 %v4245
    %4365 = vmatmul.bf16.gmra.mxu0 %v3926
    %v4366 = vpop.f32.mrf.mxu0
    %v4367 = vadd.f32 %v4354, %v4366
    %v4368 = vpop.f32.mrf.mxu0
    %4369 = vdwg.mxu0
    %4370 = vmatpush.bf16.msra.mxu0 %v4260
    %4371 = vmatpush.bf16.msra.mxu0 %v4259
    %4372 = vmatpush.bf16.msra.mxu0 %v4258
    %4373 = vmatpush.bf16.msra.mxu0 %v4257
    %4374 = vmatpush.bf16.msra.mxu0 %v4256
    %4375 = vmatpush.bf16.msra.mxu0 %v4255
    %4376 = vmatpush.bf16.msra.mxu0 %v4254
    %4377 = vmatpush.bf16.msra.mxu0 %v4253
    %4378 = vmatmul.bf16.gmra.mxu0 %v3927
    %v4379 = vpop.f32.mrf.mxu0
    %v4380 = vadd.f32 %v4367, %v4379
    %v4381 = vpop.f32.mrf.mxu0
    %4382 = vdwg.mxu0
    %4383 = vmatpush.bf16.msra.mxu0 %v4268
    %4384 = vmatpush.bf16.msra.mxu0 %v4267
    %4385 = vmatpush.bf16.msra.mxu0 %v4266
    %4386 = vmatpush.bf16.msra.mxu0 %v4265
    %4387 = vmatpush.bf16.msra.mxu0 %v4264
    %4388 = vmatpush.bf16.msra.mxu0 %v4263
    %4389 = vmatpush.bf16.msra.mxu0 %v4262
    %4390 = vmatpush.bf16.msra.mxu0 %v4261
    %4391 = vmatmul.bf16.gmra.mxu0 %v3928
    %v4392 = vpop.f32.mrf.mxu0
    %v4393 = vadd.f32 %v4380, %v4392
    %v4394 = vpop.f32.mrf.mxu0
    %4395 = vdwg.mxu0
    %4396 = vmatpush.bf16.msra.mxu0 %v4276
    %4397 = vmatpush.bf16.msra.mxu0 %v4275
    %4398 = vmatpush.bf16.msra.mxu0 %v4274
    %4399 = vmatpush.bf16.msra.mxu0 %v4273
    %4400 = vmatpush.bf16.msra.mxu0 %v4272
    %4401 = vmatpush.bf16.msra.mxu0 %v4271
    %4402 = vmatpush.bf16.msra.mxu0 %v4270
    %4403 = vmatpush.bf16.msra.mxu0 %v4269
    %4404 = vmatmul.bf16.gmra.mxu0 %v3929
    %v4405 = vpop.f32.mrf.mxu0
    %v4406 = vadd.f32 %v4393, %v4405
    %v4407 = vpop.f32.mrf.mxu0
    %4408 = vdwg.mxu0
    %4409 = vmatpush.bf16.msra.mxu0 0
    %4410 = vmatpush.bf16.msra.mxu0 0
    %4411 = vmatpush.bf16.msra.mxu0 0
    %4412 = vmatpush.bf16.msra.mxu0 0
    %4413 = vmatpush.bf16.msra.mxu0 0
    %4414 = vmatpush.bf16.msra.mxu0 0
    %4415 = vmatpush.bf16.msra.mxu0 0
    %4416 = vmatpush.bf16.msra.mxu0 %v4277
    %4417 = vmatmul.bf16.gmra.mxu0 %v4329
    %v4418 = vpop.f32.mrf.mxu0
    %v4419 = vadd.f32 %v4406, %v4418
    %v4420 = vpop.f32.mrf.mxu0
    %4421 = vdwg.mxu0
    %v4422 = vmax.f32 %v4419, 0.0
    %v4423 = vpack.c.bf16 %v4422, %v4422
    %v4424 = vld [vmem:[%s9] sm:$0xf]
    %v4425 = vld [vmem:[%s9 + $0x4] sm:$0xf]
    %v4426 = vld [vmem:[%s9 + $0x8] sm:$0xf]
    %v4427 = vld [vmem:[%s9 + $0xc] sm:$0xf]
    %v4428 = vld [vmem:[%s10] sm:$0x1]
    %v4430 = vperm.slane %v4428, 0
    %v4436 = vunpack.c.l.b16 %v4424
    %v4437 = vunpack.c.l.b16 %v4425
    %v4438 = vunpack.c.l.b16 %v4426
    %v4439 = vunpack.c.l.b16 %v4427
    %v4440 = vpack.c.b16 %v4437, %v4436
    %v4441 = vpack.c.b16 %v4439, %v4438
    %vm4444 = vcmask 261120
    %v4446 = vsel %vm4444, %v4423, 0
    %4448 = vmatpush.bf16.msra.mxu0 0
    %4449 = vmatpush.bf16.msra.mxu0 0
    %4450 = vmatpush.bf16.msra.mxu0 0
    %4451 = vmatpush.bf16.msra.mxu0 0
    %4452 = vmatpush.bf16.msra.mxu0 0
    %4453 = vmatpush.bf16.msra.mxu0 0
    %4454 = vmatpush.bf16.msra.mxu0 %v4441
    %4455 = vmatpush.bf16.msra.mxu0 %v4440
    %4456 = vmatmul.bf16.gmra.mxu0 %v4446
    %v4457 = vpop.f32.mrf.mxu0
    %v4458 = vadd.f32 %v4430, %v4457
    %v4459 = vpop.f32.mrf.mxu0
    %4460 = vdwg.mxu0
    %vm4461 = vcmask 74752
    %4462 = vst.msk [vmem:[#allocation6] sm:$0x3] %vm4461, %v4458
    // Predicated region
    $region50: #{simple_cnn_forward.1} parent=1 // pred_check
      _
    $region51: #{simple_cnn_forward.1} parent=1 // pred_check_branch
      %4464 = sbr.rel (0) target = $region53
    $region52: #{simple_cnn_forward.1} parent=1 // pred_region
      %4466 = vsyncadd [#allocation5], 0
      %s4468 = sshll.u32 [#allocation6], 4
      %s4469 = int_to_ptr.vmem [resolvable:$true] %s4468
      %s4470 = sshll.u32 %s11, 4
      %s4471 = int_to_ptr.hbm [resolvable:$true] %s4470
      %4473 = dma.vmem_to_hbm [thread:$0]  %s4469, 32, %s4471, [#allocation5]
    $region53: #{simple_cnn_forward.1} parent=1 // pred_fallthru
      _
    // Predicated region
    $region54: #{simple_cnn_forward.1} parent=1 // pred_check
      _
    $region55: #{simple_cnn_forward.1} parent=1 // pred_check_branch
      %4475 = sbr.rel (0) target = $region57
    $region56: #{simple_cnn_forward.1} parent=1 // pred_region
      %4477 = dma.done [#allocation5], 32
    $region57: #{simple_cnn_forward.1} parent=1 // pred_fallthru
      _
    %4478 = vsyncpa [#allocation4], 1
    %4479 = vsyncpa [#allocation5], 1

</llo_original>
